<compile_context>
chip_gen: v7x
topology: tpu7x:2x2x1
jax: 0.10.0
libtpu: 0.0.40
codegen_flags: <defaults>
</compile_context>

<pallas_src>
import functools

import numpy as np

import jax
import jax.numpy as jnp
from jax import lax
from jax.experimental import pallas as pl
from jax.experimental.pallas import tpu as pltpu


def _conv_out(n: int, k: int, s: int) -> int:
    return (n - k) // s + 1


def _selection_matrix(ih, iw, kh, kw, stride):
    """One-hot matrices S[t, m, r]: output position m of kernel-offset t reads
    input row r (rows = flattened (ih, iw) spatial grid of the previous layer's
    activation).  Lets the in-kernel im2col gather run on the MXU."""
    oh, ow = _conv_out(ih, kh, stride), _conv_out(iw, kw, stride)
    sel = np.zeros((kh * kw, oh * ow, ih * iw), np.float32)
    for di in range(kh):
        for dj in range(kw):
            t = di * kw + dj
            for p in range(oh):
                for q in range(ow):
                    sel[t, p * ow + q, (stride * p + di) * iw + (stride * q + dj)] = 1.0
    return jnp.asarray(sel, jnp.bfloat16)


def pack_params(params, c, h, w):
    """One-time (init-path) packing: bf16 weights in GEMM-ready layouts plus the
    one-hot im2col selection matrices for layers 2 and 3."""
    (w1, b1), (w2, b2), (w3, b3) = params
    d1, d2 = w, h                         # module reshapes input to (-1, c, w, h)
    o1 = (_conv_out(d1, 8, 4), _conv_out(d2, 8, 4))
    o2 = (_conv_out(o1[0], 4, 2), _conv_out(o1[1], 4, 2))

    co1, co2, co3 = w1.shape[0], w2.shape[0], w3.shape[0]
    # Layer 1: plain [K, Cout] matrix; K ordered (cin, kh, kw) to match the
    # host-side im2col column order.
    w1p = jnp.asarray(w1).reshape(co1, -1).T.astype(jnp.bfloat16)            # (c*64, 32)
    # Layers 2/3: per-kernel-offset [Cin, Cout] matrices, offset t = di*kw + dj.
    w2p = (jnp.asarray(w2).transpose(2, 3, 1, 0)
           .reshape(4 * 4, w2.shape[1], co2).astype(jnp.bfloat16))           # (16, 32, 64)
    w3p = (jnp.asarray(w3).transpose(2, 3, 1, 0)
           .reshape(3 * 3, w3.shape[1], co3).astype(jnp.bfloat16))           # (9, 64, 64)

    s2 = _selection_matrix(o1[0], o1[1], 4, 4, 2)                            # (16, 9, 64)
    s3 = _selection_matrix(o2[0], o2[1], 3, 3, 1)                            # (9, 1, 9)

    b1p = jnp.asarray(b1, jnp.float32).reshape(1, co1)
    b2p = jnp.asarray(b2, jnp.float32).reshape(1, co2)
    b3p = jnp.asarray(b3, jnp.float32).reshape(1, co3)
    return (w1p, b1p, s2, w2p, b2p, s3, w3p, b3p)


def _fused_dqn_kernel(a1_ref, w1_ref, b1_ref, s2_ref, w2_ref, b2_ref,
                      s3_ref, w3_ref, b3_ref, o_ref):
    """Whole conv stack for one batch element; activations stay in VMEM/vregs."""

    def conv_stage(h_prev_bf16, s_ref, w_ref, b_ref):
        # Conv as: for each kernel offset t, gather the needed activation rows
        # with an (exact) one-hot matmul, then contract over input channels.
        n_off = s_ref.shape[0]
        m_out, cout = s_ref.shape[1], w_ref.shape[2]
        acc = jnp.zeros((m_out, cout), jnp.float32)
        for t in range(n_off):                               # static, unrolled
            g = jnp.dot(s_ref[t], h_prev_bf16,
                        preferred_element_type=jnp.float32)  # (m_out, cin), f32
            acc = acc + jnp.dot(g.astype(jnp.bfloat16), w_ref[t],
                                preferred_element_type=jnp.float32)
        return jnp.maximum(acc + b_ref[...], 0.0)            # f32 epilogue (VPU)

    # Layer 1: im2col GEMM (patch matrix precomputed on host), bf16 x bf16 -> f32.
    h1 = jnp.dot(a1_ref[0], w1_ref[...], preferred_element_type=jnp.float32)
    h1 = jnp.maximum(h1 + b1_ref[...], 0.0).astype(jnp.bfloat16)     # (M1, 32)

    h2 = conv_stage(h1, s2_ref, w2_ref, b2_ref).astype(jnp.bfloat16)  # (M2, 64)
    h3 = conv_stage(h2, s3_ref, w3_ref, b3_ref)                       # (M3, 64) f32
    o_ref[...] = h3.reshape(o_ref.shape)


def dqn_forward(x, packed, c, h, w):
    """Mimics DQN.forward: x.reshape(-1, c, w, h) -> conv stack -> Flatten."""
    w1p, b1p, s2, w2p, b2p, s3, w3p, b3p = packed
    x = x.astype(jnp.float32).reshape(-1, c, w, h)
    B, _, d1, d2 = x.shape
    KH = KW = 8
    S = 4
    OH, OW = _conv_out(d1, KH, S), _conv_out(d2, KW, S)

    # Host-side im2col for layer 1 only (single cheap gather of the raw input);
    # columns ordered (cin, kh, kw) to match w1p.
    cols = []
    for di in range(KH):
        for dj in range(KW):
            cols.append(x[:, :, di:di + S * OH:S, dj:dj + S * OW:S])
    patches = jnp.stack(cols, axis=2).reshape(B, c, KH, KW, OH, OW)
    a1 = patches.transpose(0, 4, 5, 1, 2, 3).reshape(B, OH * OW, c * KH * KW)
    a1 = a1.astype(jnp.bfloat16)

    M1, K1 = OH * OW, c * KH * KW
    M3, CO3 = s3.shape[1], w3p.shape[2]

    out = pl.pallas_call(
        _fused_dqn_kernel,
        out_shape=jax.ShapeDtypeStruct((B, M3, CO3), jnp.float32),
        grid=(B,),
        in_specs=[
            pl.BlockSpec((1, M1, K1), lambda b: (b, 0, 0)),
            pl.BlockSpec(w1p.shape, lambda b: (0, 0)),
            pl.BlockSpec(b1p.shape, lambda b: (0, 0)),
            pl.BlockSpec(s2.shape, lambda b: (0, 0, 0)),
            pl.BlockSpec(w2p.shape, lambda b: (0, 0, 0)),
            pl.BlockSpec(b2p.shape, lambda b: (0, 0)),
            pl.BlockSpec(s3.shape, lambda b: (0, 0, 0)),
            pl.BlockSpec(w3p.shape, lambda b: (0, 0, 0)),
            pl.BlockSpec(b3p.shape, lambda b: (0, 0)),
        ],
        out_specs=pl.BlockSpec((1, M3, CO3), lambda b: (b, 0, 0)),
        compiler_params=pltpu.CompilerParams(
            dimension_semantics=("parallel",)),   # batch splits across v7x's 2 TCs
    )(a1, w1p, b1p, s2, w2p, b2p, s3, w3p, b3p)

    # PyTorch Flatten is channel-major: (N, Cout, OH3, OW3) -> (N, Cout*OH3*OW3).
    return out.transpose(0, 2, 1).reshape(B, -1)


def dqn_forward_ref(x, params, c, h, w):
    """Reference: lax.conv in f32 (HIGHEST) on bf16-rounded operands, mirroring
    the kernel's bf16-operand / f32-accumulate GEMMs."""
    x = x.astype(jnp.float32).reshape(-1, c, w, h)
    strides = (4, 2, 1)
    for (wk, bk), s in zip(params, strides):
        xb = x.astype(jnp.bfloat16).astype(jnp.float32)
        wb = wk.astype(jnp.bfloat16).astype(jnp.float32)
        y = lax.conv_general_dilated(
            xb, wb, (s, s), "VALID",
            dimension_numbers=("NCHW", "OIHW", "NCHW"),
            precision=lax.Precision.HIGHEST)
        x = jnp.maximum(y + bk[None, :, None, None], 0.0)
    return x.reshape(x.shape[0], -1)


def init_params(key, c: int):
    """Deterministic synthetic weights with PyTorch Conv2d shapes."""
    shapes = [
        ((32, c, 8, 8), (32,)),
        ((64, 32, 4, 4), (64,)),
        ((64, 64, 3, 3), (64,)),
    ]
    params = []
    for ws, bs in shapes:
        key, k1, k2 = jax.random.split(key, 3)
        fan_in = ws[1] * ws[2] * ws[3]
        scale = 1.0 / jnp.sqrt(jnp.float32(fan_in))
        params.append((
            jax.random.normal(k1, ws, jnp.float32) * scale,
            jax.random.normal(k2, bs, jnp.float32) * scale,
        ))
    return params


if __name__ == "__main__":
    # Minimal spatial size for the 8/4 -> 4/2 -> 3/1 stack: 36 -> 8 -> 3 -> 1.
    B, C, H, W = 2, 4, 36, 36
    key = jax.random.PRNGKey(0)
    kx, kp = jax.random.split(key)
    x = jax.random.normal(kx, (B, C, H, W), jnp.float32)
    params = init_params(kp, C)
    packed = pack_params(params, C, H, W)

    fwd = jax.jit(functools.partial(dqn_forward, c=C, h=H, w=W))
    out = fwd(x, packed)
    jax.block_until_ready(out)

    ref = dqn_forward_ref(x, params, C, H, W)
    assert out.shape == (B, 64), out.shape              # output_dim = 64*1*1
    assert jnp.allclose(out, ref, atol=1e-2, rtol=1e-2), (
        "mismatch vs reference, max abs err = %f"
        % float(jnp.max(jnp.abs(out - ref))))

    print("KERNEL_OK")
</pallas_src>

<mosaic_0001>
module attributes {stable_mosaic.version = 11 : i64} {
  func.func @_fused_dqn_kernel(%arg0: i32, %arg1: memref<1x64x256xbf16, #tpu.memory_space<vmem>>, %arg2: memref<256x32xbf16, #tpu.memory_space<vmem>>, %arg3: memref<1x32xf32, #tpu.memory_space<vmem>>, %arg4: memref<16x9x64xbf16, #tpu.memory_space<vmem>>, %arg5: memref<16x32x64xbf16, #tpu.memory_space<vmem>>, %arg6: memref<1x64xf32, #tpu.memory_space<vmem>>, %arg7: memref<9x1x9xbf16, #tpu.memory_space<vmem>>, %arg8: memref<9x64x64xbf16, #tpu.memory_space<vmem>>, %arg9: memref<1x64xf32, #tpu.memory_space<vmem>>, %arg10: memref<1x1x64xf32, #tpu.memory_space<vmem>>) attributes {dimension_semantics = [#tpu.dimension_semantics<parallel>], iteration_bounds = array<i64: 2>, scalar_prefetch = 0 : i64, scratch_operands = 0 : i64, tpu.core_type = #tpu.core_type<tc>, window_params = [{transform_indices = @transform_0, window_bounds = array<i64: 1, 64, 256>}, {pipeline_mode = #tpu.pipeline_mode<synchronous>, transform_indices = @transform_1, window_bounds = array<i64: 256, 32>}, {pipeline_mode = #tpu.pipeline_mode<synchronous>, transform_indices = @transform_2, window_bounds = array<i64: 1, 32>}, {pipeline_mode = #tpu.pipeline_mode<synchronous>, transform_indices = @transform_3, window_bounds = array<i64: 16, 9, 64>}, {pipeline_mode = #tpu.pipeline_mode<synchronous>, transform_indices = @transform_4, window_bounds = array<i64: 16, 32, 64>}, {pipeline_mode = #tpu.pipeline_mode<synchronous>, transform_indices = @transform_5, window_bounds = array<i64: 1, 64>}, {pipeline_mode = #tpu.pipeline_mode<synchronous>, transform_indices = @transform_6, window_bounds = array<i64: 9, 1, 9>}, {pipeline_mode = #tpu.pipeline_mode<synchronous>, transform_indices = @transform_7, window_bounds = array<i64: 9, 64, 64>}, {pipeline_mode = #tpu.pipeline_mode<synchronous>, transform_indices = @transform_8, window_bounds = array<i64: 1, 64>}, {transform_indices = @transform_9, window_bounds = array<i64: 1, 1, 64>}]} {
    %c0 = arith.constant 0 : index
    %c0_0 = arith.constant 0 : index
    %c0_1 = arith.constant 0 : index
    %0 = vector.load %arg1[%c0, %c0_0, %c0_1] : memref<1x64x256xbf16, #tpu.memory_space<vmem>>, vector<1x64x256xbf16>
    %1 = vector.shape_cast %0 : vector<1x64x256xbf16> to vector<64x256xbf16>
    %c0_2 = arith.constant 0 : index
    %c0_3 = arith.constant 0 : index
    %2 = vector.load %arg2[%c0_2, %c0_3] : memref<256x32xbf16, #tpu.memory_space<vmem>>, vector<256x32xbf16>
    %cst = arith.constant dense<0.000000e+00> : vector<64x32xf32>
    %3 = tpu.matmul %1, %2, %cst {dimension_numbers = #tpu.dot_dimension_numbers<[1], [0], [0], [1], [0, 0, 1, 1], [], []>} : vector<64x256xbf16>, vector<256x32xbf16>, vector<64x32xf32> -> vector<64x32xf32>
    %c0_4 = arith.constant 0 : index
    %c0_5 = arith.constant 0 : index
    %4 = vector.load %arg3[%c0_4, %c0_5] : memref<1x32xf32, #tpu.memory_space<vmem>>, vector<1x32xf32>
    %5 = vector.broadcast %4 : vector<1x32xf32> to vector<64x32xf32>
    %6 = arith.addf %3, %5 : vector<64x32xf32>
    %cst_6 = arith.constant 0.000000e+00 : f32
    %7 = vector.broadcast %cst_6 : f32 to vector<64x32xf32>
    %8 = arith.maximumf %6, %7 : vector<64x32xf32>
    %9 = arith.truncf %8 : vector<64x32xf32> to vector<64x32xbf16>
    %cst_7 = arith.constant 0.000000e+00 : f32
    %10 = vector.broadcast %cst_7 : f32 to vector<9x64xf32>
    %c0_8 = arith.constant 0 : index
    %c0_9 = arith.constant 0 : index
    %c0_10 = arith.constant 0 : index
    %11 = vector.load %arg4[%c0_8, %c0_9, %c0_10] : memref<16x9x64xbf16, #tpu.memory_space<vmem>>, vector<1x9x64xbf16>
    %12 = vector.shape_cast %11 : vector<1x9x64xbf16> to vector<9x64xbf16>
    %cst_11 = arith.constant dense<0.000000e+00> : vector<9x32xf32>
    %13 = tpu.matmul %12, %9, %cst_11 {dimension_numbers = #tpu.dot_dimension_numbers<[1], [0], [0], [1], [0, 0, 1, 1], [], []>} : vector<9x64xbf16>, vector<64x32xbf16>, vector<9x32xf32> -> vector<9x32xf32>
    %14 = arith.truncf %13 : vector<9x32xf32> to vector<9x32xbf16>
    %c0_12 = arith.constant 0 : index
    %c0_13 = arith.constant 0 : index
    %c0_14 = arith.constant 0 : index
    %15 = vector.load %arg5[%c0_12, %c0_13, %c0_14] : memref<16x32x64xbf16, #tpu.memory_space<vmem>>, vector<1x32x64xbf16>
    %16 = vector.shape_cast %15 : vector<1x32x64xbf16> to vector<32x64xbf16>
    %cst_15 = arith.constant dense<0.000000e+00> : vector<9x64xf32>
    %17 = tpu.matmul %14, %16, %cst_15 {dimension_numbers = #tpu.dot_dimension_numbers<[1], [0], [0], [1], [0, 0, 1, 1], [], []>} : vector<9x32xbf16>, vector<32x64xbf16>, vector<9x64xf32> -> vector<9x64xf32>
    %18 = arith.addf %10, %17 : vector<9x64xf32>
    %c1 = arith.constant 1 : index
    %c0_16 = arith.constant 0 : index
    %c0_17 = arith.constant 0 : index
    %19 = vector.load %arg4[%c1, %c0_16, %c0_17] : memref<16x9x64xbf16, #tpu.memory_space<vmem>>, vector<1x9x64xbf16>
    %20 = vector.shape_cast %19 : vector<1x9x64xbf16> to vector<9x64xbf16>
    %cst_18 = arith.constant dense<0.000000e+00> : vector<9x32xf32>
    %21 = tpu.matmul %20, %9, %cst_18 {dimension_numbers = #tpu.dot_dimension_numbers<[1], [0], [0], [1], [0, 0, 1, 1], [], []>} : vector<9x64xbf16>, vector<64x32xbf16>, vector<9x32xf32> -> vector<9x32xf32>
    %22 = arith.truncf %21 : vector<9x32xf32> to vector<9x32xbf16>
    %c1_19 = arith.constant 1 : index
    %c0_20 = arith.constant 0 : index
    %c0_21 = arith.constant 0 : index
    %23 = vector.load %arg5[%c1_19, %c0_20, %c0_21] : memref<16x32x64xbf16, #tpu.memory_space<vmem>>, vector<1x32x64xbf16>
    %24 = vector.shape_cast %23 : vector<1x32x64xbf16> to vector<32x64xbf16>
    %cst_22 = arith.constant dense<0.000000e+00> : vector<9x64xf32>
    %25 = tpu.matmul %22, %24, %cst_22 {dimension_numbers = #tpu.dot_dimension_numbers<[1], [0], [0], [1], [0, 0, 1, 1], [], []>} : vector<9x32xbf16>, vector<32x64xbf16>, vector<9x64xf32> -> vector<9x64xf32>
    %26 = arith.addf %18, %25 : vector<9x64xf32>
    %c2 = arith.constant 2 : index
    %c0_23 = arith.constant 0 : index
    %c0_24 = arith.constant 0 : index
    %27 = vector.load %arg4[%c2, %c0_23, %c0_24] : memref<16x9x64xbf16, #tpu.memory_space<vmem>>, vector<1x9x64xbf16>
    %28 = vector.shape_cast %27 : vector<1x9x64xbf16> to vector<9x64xbf16>
    %cst_25 = arith.constant dense<0.000000e+00> : vector<9x32xf32>
    %29 = tpu.matmul %28, %9, %cst_25 {dimension_numbers = #tpu.dot_dimension_numbers<[1], [0], [0], [1], [0, 0, 1, 1], [], []>} : vector<9x64xbf16>, vector<64x32xbf16>, vector<9x32xf32> -> vector<9x32xf32>
    %30 = arith.truncf %29 : vector<9x32xf32> to vector<9x32xbf16>
    %c2_26 = arith.constant 2 : index
    %c0_27 = arith.constant 0 : index
    %c0_28 = arith.constant 0 : index
    %31 = vector.load %arg5[%c2_26, %c0_27, %c0_28] : memref<16x32x64xbf16, #tpu.memory_space<vmem>>, vector<1x32x64xbf16>
    %32 = vector.shape_cast %31 : vector<1x32x64xbf16> to vector<32x64xbf16>
    %cst_29 = arith.constant dense<0.000000e+00> : vector<9x64xf32>
    %33 = tpu.matmul %30, %32, %cst_29 {dimension_numbers = #tpu.dot_dimension_numbers<[1], [0], [0], [1], [0, 0, 1, 1], [], []>} : vector<9x32xbf16>, vector<32x64xbf16>, vector<9x64xf32> -> vector<9x64xf32>
    %34 = arith.addf %26, %33 : vector<9x64xf32>
    %c3 = arith.constant 3 : index
    %c0_30 = arith.constant 0 : index
    %c0_31 = arith.constant 0 : index
    %35 = vector.load %arg4[%c3, %c0_30, %c0_31] : memref<16x9x64xbf16, #tpu.memory_space<vmem>>, vector<1x9x64xbf16>
    %36 = vector.shape_cast %35 : vector<1x9x64xbf16> to vector<9x64xbf16>
    %cst_32 = arith.constant dense<0.000000e+00> : vector<9x32xf32>
    %37 = tpu.matmul %36, %9, %cst_32 {dimension_numbers = #tpu.dot_dimension_numbers<[1], [0], [0], [1], [0, 0, 1, 1], [], []>} : vector<9x64xbf16>, vector<64x32xbf16>, vector<9x32xf32> -> vector<9x32xf32>
    %38 = arith.truncf %37 : vector<9x32xf32> to vector<9x32xbf16>
    %c3_33 = arith.constant 3 : index
    %c0_34 = arith.constant 0 : index
    %c0_35 = arith.constant 0 : index
    %39 = vector.load %arg5[%c3_33, %c0_34, %c0_35] : memref<16x32x64xbf16, #tpu.memory_space<vmem>>, vector<1x32x64xbf16>
    %40 = vector.shape_cast %39 : vector<1x32x64xbf16> to vector<32x64xbf16>
    %cst_36 = arith.constant dense<0.000000e+00> : vector<9x64xf32>
    %41 = tpu.matmul %38, %40, %cst_36 {dimension_numbers = #tpu.dot_dimension_numbers<[1], [0], [0], [1], [0, 0, 1, 1], [], []>} : vector<9x32xbf16>, vector<32x64xbf16>, vector<9x64xf32> -> vector<9x64xf32>
    %42 = arith.addf %34, %41 : vector<9x64xf32>
    %c4 = arith.constant 4 : index
    %c0_37 = arith.constant 0 : index
    %c0_38 = arith.constant 0 : index
    %43 = vector.load %arg4[%c4, %c0_37, %c0_38] : memref<16x9x64xbf16, #tpu.memory_space<vmem>>, vector<1x9x64xbf16>
    %44 = vector.shape_cast %43 : vector<1x9x64xbf16> to vector<9x64xbf16>
    %cst_39 = arith.constant dense<0.000000e+00> : vector<9x32xf32>
    %45 = tpu.matmul %44, %9, %cst_39 {dimension_numbers = #tpu.dot_dimension_numbers<[1], [0], [0], [1], [0, 0, 1, 1], [], []>} : vector<9x64xbf16>, vector<64x32xbf16>, vector<9x32xf32> -> vector<9x32xf32>
    %46 = arith.truncf %45 : vector<9x32xf32> to vector<9x32xbf16>
    %c4_40 = arith.constant 4 : index
    %c0_41 = arith.constant 0 : index
    %c0_42 = arith.constant 0 : index
    %47 = vector.load %arg5[%c4_40, %c0_41, %c0_42] : memref<16x32x64xbf16, #tpu.memory_space<vmem>>, vector<1x32x64xbf16>
    %48 = vector.shape_cast %47 : vector<1x32x64xbf16> to vector<32x64xbf16>
    %cst_43 = arith.constant dense<0.000000e+00> : vector<9x64xf32>
    %49 = tpu.matmul %46, %48, %cst_43 {dimension_numbers = #tpu.dot_dimension_numbers<[1], [0], [0], [1], [0, 0, 1, 1], [], []>} : vector<9x32xbf16>, vector<32x64xbf16>, vector<9x64xf32> -> vector<9x64xf32>
    %50 = arith.addf %42, %49 : vector<9x64xf32>
    %c5 = arith.constant 5 : index
    %c0_44 = arith.constant 0 : index
    %c0_45 = arith.constant 0 : index
    %51 = vector.load %arg4[%c5, %c0_44, %c0_45] : memref<16x9x64xbf16, #tpu.memory_space<vmem>>, vector<1x9x64xbf16>
    %52 = vector.shape_cast %51 : vector<1x9x64xbf16> to vector<9x64xbf16>
    %cst_46 = arith.constant dense<0.000000e+00> : vector<9x32xf32>
    %53 = tpu.matmul %52, %9, %cst_46 {dimension_numbers = #tpu.dot_dimension_numbers<[1], [0], [0], [1], [0, 0, 1, 1], [], []>} : vector<9x64xbf16>, vector<64x32xbf16>, vector<9x32xf32> -> vector<9x32xf32>
    %54 = arith.truncf %53 : vector<9x32xf32> to vector<9x32xbf16>
    %c5_47 = arith.constant 5 : index
    %c0_48 = arith.constant 0 : index
    %c0_49 = arith.constant 0 : index
    %55 = vector.load %arg5[%c5_47, %c0_48, %c0_49] : memref<16x32x64xbf16, #tpu.memory_space<vmem>>, vector<1x32x64xbf16>
    %56 = vector.shape_cast %55 : vector<1x32x64xbf16> to vector<32x64xbf16>
    %cst_50 = arith.constant dense<0.000000e+00> : vector<9x64xf32>
    %57 = tpu.matmul %54, %56, %cst_50 {dimension_numbers = #tpu.dot_dimension_numbers<[1], [0], [0], [1], [0, 0, 1, 1], [], []>} : vector<9x32xbf16>, vector<32x64xbf16>, vector<9x64xf32> -> vector<9x64xf32>
    %58 = arith.addf %50, %57 : vector<9x64xf32>
    %c6 = arith.constant 6 : index
    %c0_51 = arith.constant 0 : index
    %c0_52 = arith.constant 0 : index
    %59 = vector.load %arg4[%c6, %c0_51, %c0_52] : memref<16x9x64xbf16, #tpu.memory_space<vmem>>, vector<1x9x64xbf16>
    %60 = vector.shape_cast %59 : vector<1x9x64xbf16> to vector<9x64xbf16>
    %cst_53 = arith.constant dense<0.000000e+00> : vector<9x32xf32>
    %61 = tpu.matmul %60, %9, %cst_53 {dimension_numbers = #tpu.dot_dimension_numbers<[1], [0], [0], [1], [0, 0, 1, 1], [], []>} : vector<9x64xbf16>, vector<64x32xbf16>, vector<9x32xf32> -> vector<9x32xf32>
    %62 = arith.truncf %61 : vector<9x32xf32> to vector<9x32xbf16>
    %c6_54 = arith.constant 6 : index
    %c0_55 = arith.constant 0 : index
    %c0_56 = arith.constant 0 : index
    %63 = vector.load %arg5[%c6_54, %c0_55, %c0_56] : memref<16x32x64xbf16, #tpu.memory_space<vmem>>, vector<1x32x64xbf16>
    %64 = vector.shape_cast %63 : vector<1x32x64xbf16> to vector<32x64xbf16>
    %cst_57 = arith.constant dense<0.000000e+00> : vector<9x64xf32>
    %65 = tpu.matmul %62, %64, %cst_57 {dimension_numbers = #tpu.dot_dimension_numbers<[1], [0], [0], [1], [0, 0, 1, 1], [], []>} : vector<9x32xbf16>, vector<32x64xbf16>, vector<9x64xf32> -> vector<9x64xf32>
    %66 = arith.addf %58, %65 : vector<9x64xf32>
    %c7 = arith.constant 7 : index
    %c0_58 = arith.constant 0 : index
    %c0_59 = arith.constant 0 : index
    %67 = vector.load %arg4[%c7, %c0_58, %c0_59] : memref<16x9x64xbf16, #tpu.memory_space<vmem>>, vector<1x9x64xbf16>
    %68 = vector.shape_cast %67 : vector<1x9x64xbf16> to vector<9x64xbf16>
    %cst_60 = arith.constant dense<0.000000e+00> : vector<9x32xf32>
    %69 = tpu.matmul %68, %9, %cst_60 {dimension_numbers = #tpu.dot_dimension_numbers<[1], [0], [0], [1], [0, 0, 1, 1], [], []>} : vector<9x64xbf16>, vector<64x32xbf16>, vector<9x32xf32> -> vector<9x32xf32>
    %70 = arith.truncf %69 : vector<9x32xf32> to vector<9x32xbf16>
    %c7_61 = arith.constant 7 : index
    %c0_62 = arith.constant 0 : index
    %c0_63 = arith.constant 0 : index
    %71 = vector.load %arg5[%c7_61, %c0_62, %c0_63] : memref<16x32x64xbf16, #tpu.memory_space<vmem>>, vector<1x32x64xbf16>
    %72 = vector.shape_cast %71 : vector<1x32x64xbf16> to vector<32x64xbf16>
    %cst_64 = arith.constant dense<0.000000e+00> : vector<9x64xf32>
    %73 = tpu.matmul %70, %72, %cst_64 {dimension_numbers = #tpu.dot_dimension_numbers<[1], [0], [0], [1], [0, 0, 1, 1], [], []>} : vector<9x32xbf16>, vector<32x64xbf16>, vector<9x64xf32> -> vector<9x64xf32>
    %74 = arith.addf %66, %73 : vector<9x64xf32>
    %c8 = arith.constant 8 : index
    %c0_65 = arith.constant 0 : index
    %c0_66 = arith.constant 0 : index
    %75 = vector.load %arg4[%c8, %c0_65, %c0_66] : memref<16x9x64xbf16, #tpu.memory_space<vmem>>, vector<1x9x64xbf16>
    %76 = vector.shape_cast %75 : vector<1x9x64xbf16> to vector<9x64xbf16>
    %cst_67 = arith.constant dense<0.000000e+00> : vector<9x32xf32>
    %77 = tpu.matmul %76, %9, %cst_67 {dimension_numbers = #tpu.dot_dimension_numbers<[1], [0], [0], [1], [0, 0, 1, 1], [], []>} : vector<9x64xbf16>, vector<64x32xbf16>, vector<9x32xf32> -> vector<9x32xf32>
    %78 = arith.truncf %77 : vector<9x32xf32> to vector<9x32xbf16>
    %c8_68 = arith.constant 8 : index
    %c0_69 = arith.constant 0 : index
    %c0_70 = arith.constant 0 : index
    %79 = vector.load %arg5[%c8_68, %c0_69, %c0_70] : memref<16x32x64xbf16, #tpu.memory_space<vmem>>, vector<1x32x64xbf16>
    %80 = vector.shape_cast %79 : vector<1x32x64xbf16> to vector<32x64xbf16>
    %cst_71 = arith.constant dense<0.000000e+00> : vector<9x64xf32>
    %81 = tpu.matmul %78, %80, %cst_71 {dimension_numbers = #tpu.dot_dimension_numbers<[1], [0], [0], [1], [0, 0, 1, 1], [], []>} : vector<9x32xbf16>, vector<32x64xbf16>, vector<9x64xf32> -> vector<9x64xf32>
    %82 = arith.addf %74, %81 : vector<9x64xf32>
    %c9 = arith.constant 9 : index
    %c0_72 = arith.constant 0 : index
    %c0_73 = arith.constant 0 : index
    %83 = vector.load %arg4[%c9, %c0_72, %c0_73] : memref<16x9x64xbf16, #tpu.memory_space<vmem>>, vector<1x9x64xbf16>
    %84 = vector.shape_cast %83 : vector<1x9x64xbf16> to vector<9x64xbf16>
    %cst_74 = arith.constant dense<0.000000e+00> : vector<9x32xf32>
    %85 = tpu.matmul %84, %9, %cst_74 {dimension_numbers = #tpu.dot_dimension_numbers<[1], [0], [0], [1], [0, 0, 1, 1], [], []>} : vector<9x64xbf16>, vector<64x32xbf16>, vector<9x32xf32> -> vector<9x32xf32>
    %86 = arith.truncf %85 : vector<9x32xf32> to vector<9x32xbf16>
    %c9_75 = arith.constant 9 : index
    %c0_76 = arith.constant 0 : index
    %c0_77 = arith.constant 0 : index
    %87 = vector.load %arg5[%c9_75, %c0_76, %c0_77] : memref<16x32x64xbf16, #tpu.memory_space<vmem>>, vector<1x32x64xbf16>
    %88 = vector.shape_cast %87 : vector<1x32x64xbf16> to vector<32x64xbf16>
    %cst_78 = arith.constant dense<0.000000e+00> : vector<9x64xf32>
    %89 = tpu.matmul %86, %88, %cst_78 {dimension_numbers = #tpu.dot_dimension_numbers<[1], [0], [0], [1], [0, 0, 1, 1], [], []>} : vector<9x32xbf16>, vector<32x64xbf16>, vector<9x64xf32> -> vector<9x64xf32>
    %90 = arith.addf %82, %89 : vector<9x64xf32>
    %c10 = arith.constant 10 : index
    %c0_79 = arith.constant 0 : index
    %c0_80 = arith.constant 0 : index
    %91 = vector.load %arg4[%c10, %c0_79, %c0_80] : memref<16x9x64xbf16, #tpu.memory_space<vmem>>, vector<1x9x64xbf16>
    %92 = vector.shape_cast %91 : vector<1x9x64xbf16> to vector<9x64xbf16>
    %cst_81 = arith.constant dense<0.000000e+00> : vector<9x32xf32>
    %93 = tpu.matmul %92, %9, %cst_81 {dimension_numbers = #tpu.dot_dimension_numbers<[1], [0], [0], [1], [0, 0, 1, 1], [], []>} : vector<9x64xbf16>, vector<64x32xbf16>, vector<9x32xf32> -> vector<9x32xf32>
    %94 = arith.truncf %93 : vector<9x32xf32> to vector<9x32xbf16>
    %c10_82 = arith.constant 10 : index
    %c0_83 = arith.constant 0 : index
    %c0_84 = arith.constant 0 : index
    %95 = vector.load %arg5[%c10_82, %c0_83, %c0_84] : memref<16x32x64xbf16, #tpu.memory_space<vmem>>, vector<1x32x64xbf16>
    %96 = vector.shape_cast %95 : vector<1x32x64xbf16> to vector<32x64xbf16>
    %cst_85 = arith.constant dense<0.000000e+00> : vector<9x64xf32>
    %97 = tpu.matmul %94, %96, %cst_85 {dimension_numbers = #tpu.dot_dimension_numbers<[1], [0], [0], [1], [0, 0, 1, 1], [], []>} : vector<9x32xbf16>, vector<32x64xbf16>, vector<9x64xf32> -> vector<9x64xf32>
    %98 = arith.addf %90, %97 : vector<9x64xf32>
    %c11 = arith.constant 11 : index
    %c0_86 = arith.constant 0 : index
    %c0_87 = arith.constant 0 : index
    %99 = vector.load %arg4[%c11, %c0_86, %c0_87] : memref<16x9x64xbf16, #tpu.memory_space<vmem>>, vector<1x9x64xbf16>
    %100 = vector.shape_cast %99 : vector<1x9x64xbf16> to vector<9x64xbf16>
    %cst_88 = arith.constant dense<0.000000e+00> : vector<9x32xf32>
    %101 = tpu.matmul %100, %9, %cst_88 {dimension_numbers = #tpu.dot_dimension_numbers<[1], [0], [0], [1], [0, 0, 1, 1], [], []>} : vector<9x64xbf16>, vector<64x32xbf16>, vector<9x32xf32> -> vector<9x32xf32>
    %102 = arith.truncf %101 : vector<9x32xf32> to vector<9x32xbf16>
    %c11_89 = arith.constant 11 : index
    %c0_90 = arith.constant 0 : index
    %c0_91 = arith.constant 0 : index
    %103 = vector.load %arg5[%c11_89, %c0_90, %c0_91] : memref<16x32x64xbf16, #tpu.memory_space<vmem>>, vector<1x32x64xbf16>
    %104 = vector.shape_cast %103 : vector<1x32x64xbf16> to vector<32x64xbf16>
    %cst_92 = arith.constant dense<0.000000e+00> : vector<9x64xf32>
    %105 = tpu.matmul %102, %104, %cst_92 {dimension_numbers = #tpu.dot_dimension_numbers<[1], [0], [0], [1], [0, 0, 1, 1], [], []>} : vector<9x32xbf16>, vector<32x64xbf16>, vector<9x64xf32> -> vector<9x64xf32>
    %106 = arith.addf %98, %105 : vector<9x64xf32>
    %c12 = arith.constant 12 : index
    %c0_93 = arith.constant 0 : index
    %c0_94 = arith.constant 0 : index
    %107 = vector.load %arg4[%c12, %c0_93, %c0_94] : memref<16x9x64xbf16, #tpu.memory_space<vmem>>, vector<1x9x64xbf16>
    %108 = vector.shape_cast %107 : vector<1x9x64xbf16> to vector<9x64xbf16>
    %cst_95 = arith.constant dense<0.000000e+00> : vector<9x32xf32>
    %109 = tpu.matmul %108, %9, %cst_95 {dimension_numbers = #tpu.dot_dimension_numbers<[1], [0], [0], [1], [0, 0, 1, 1], [], []>} : vector<9x64xbf16>, vector<64x32xbf16>, vector<9x32xf32> -> vector<9x32xf32>
    %110 = arith.truncf %109 : vector<9x32xf32> to vector<9x32xbf16>
    %c12_96 = arith.constant 12 : index
    %c0_97 = arith.constant 0 : index
    %c0_98 = arith.constant 0 : index
    %111 = vector.load %arg5[%c12_96, %c0_97, %c0_98] : memref<16x32x64xbf16, #tpu.memory_space<vmem>>, vector<1x32x64xbf16>
    %112 = vector.shape_cast %111 : vector<1x32x64xbf16> to vector<32x64xbf16>
    %cst_99 = arith.constant dense<0.000000e+00> : vector<9x64xf32>
    %113 = tpu.matmul %110, %112, %cst_99 {dimension_numbers = #tpu.dot_dimension_numbers<[1], [0], [0], [1], [0, 0, 1, 1], [], []>} : vector<9x32xbf16>, vector<32x64xbf16>, vector<9x64xf32> -> vector<9x64xf32>
    %114 = arith.addf %106, %113 : vector<9x64xf32>
    %c13 = arith.constant 13 : index
    %c0_100 = arith.constant 0 : index
    %c0_101 = arith.constant 0 : index
    %115 = vector.load %arg4[%c13, %c0_100, %c0_101] : memref<16x9x64xbf16, #tpu.memory_space<vmem>>, vector<1x9x64xbf16>
    %116 = vector.shape_cast %115 : vector<1x9x64xbf16> to vector<9x64xbf16>
    %cst_102 = arith.constant dense<0.000000e+00> : vector<9x32xf32>
    %117 = tpu.matmul %116, %9, %cst_102 {dimension_numbers = #tpu.dot_dimension_numbers<[1], [0], [0], [1], [0, 0, 1, 1], [], []>} : vector<9x64xbf16>, vector<64x32xbf16>, vector<9x32xf32> -> vector<9x32xf32>
    %118 = arith.truncf %117 : vector<9x32xf32> to vector<9x32xbf16>
    %c13_103 = arith.constant 13 : index
    %c0_104 = arith.constant 0 : index
    %c0_105 = arith.constant 0 : index
    %119 = vector.load %arg5[%c13_103, %c0_104, %c0_105] : memref<16x32x64xbf16, #tpu.memory_space<vmem>>, vector<1x32x64xbf16>
    %120 = vector.shape_cast %119 : vector<1x32x64xbf16> to vector<32x64xbf16>
    %cst_106 = arith.constant dense<0.000000e+00> : vector<9x64xf32>
    %121 = tpu.matmul %118, %120, %cst_106 {dimension_numbers = #tpu.dot_dimension_numbers<[1], [0], [0], [1], [0, 0, 1, 1], [], []>} : vector<9x32xbf16>, vector<32x64xbf16>, vector<9x64xf32> -> vector<9x64xf32>
    %122 = arith.addf %114, %121 : vector<9x64xf32>
    %c14 = arith.constant 14 : index
    %c0_107 = arith.constant 0 : index
    %c0_108 = arith.constant 0 : index
    %123 = vector.load %arg4[%c14, %c0_107, %c0_108] : memref<16x9x64xbf16, #tpu.memory_space<vmem>>, vector<1x9x64xbf16>
    %124 = vector.shape_cast %123 : vector<1x9x64xbf16> to vector<9x64xbf16>
    %cst_109 = arith.constant dense<0.000000e+00> : vector<9x32xf32>
    %125 = tpu.matmul %124, %9, %cst_109 {dimension_numbers = #tpu.dot_dimension_numbers<[1], [0], [0], [1], [0, 0, 1, 1], [], []>} : vector<9x64xbf16>, vector<64x32xbf16>, vector<9x32xf32> -> vector<9x32xf32>
    %126 = arith.truncf %125 : vector<9x32xf32> to vector<9x32xbf16>
    %c14_110 = arith.constant 14 : index
    %c0_111 = arith.constant 0 : index
    %c0_112 = arith.constant 0 : index
    %127 = vector.load %arg5[%c14_110, %c0_111, %c0_112] : memref<16x32x64xbf16, #tpu.memory_space<vmem>>, vector<1x32x64xbf16>
    %128 = vector.shape_cast %127 : vector<1x32x64xbf16> to vector<32x64xbf16>
    %cst_113 = arith.constant dense<0.000000e+00> : vector<9x64xf32>
    %129 = tpu.matmul %126, %128, %cst_113 {dimension_numbers = #tpu.dot_dimension_numbers<[1], [0], [0], [1], [0, 0, 1, 1], [], []>} : vector<9x32xbf16>, vector<32x64xbf16>, vector<9x64xf32> -> vector<9x64xf32>
    %130 = arith.addf %122, %129 : vector<9x64xf32>
    %c15 = arith.constant 15 : index
    %c0_114 = arith.constant 0 : index
    %c0_115 = arith.constant 0 : index
    %131 = vector.load %arg4[%c15, %c0_114, %c0_115] : memref<16x9x64xbf16, #tpu.memory_space<vmem>>, vector<1x9x64xbf16>
    %132 = vector.shape_cast %131 : vector<1x9x64xbf16> to vector<9x64xbf16>
    %cst_116 = arith.constant dense<0.000000e+00> : vector<9x32xf32>
    %133 = tpu.matmul %132, %9, %cst_116 {dimension_numbers = #tpu.dot_dimension_numbers<[1], [0], [0], [1], [0, 0, 1, 1], [], []>} : vector<9x64xbf16>, vector<64x32xbf16>, vector<9x32xf32> -> vector<9x32xf32>
    %134 = arith.truncf %133 : vector<9x32xf32> to vector<9x32xbf16>
    %c15_117 = arith.constant 15 : index
    %c0_118 = arith.constant 0 : index
    %c0_119 = arith.constant 0 : index
    %135 = vector.load %arg5[%c15_117, %c0_118, %c0_119] : memref<16x32x64xbf16, #tpu.memory_space<vmem>>, vector<1x32x64xbf16>
    %136 = vector.shape_cast %135 : vector<1x32x64xbf16> to vector<32x64xbf16>
    %cst_120 = arith.constant dense<0.000000e+00> : vector<9x64xf32>
    %137 = tpu.matmul %134, %136, %cst_120 {dimension_numbers = #tpu.dot_dimension_numbers<[1], [0], [0], [1], [0, 0, 1, 1], [], []>} : vector<9x32xbf16>, vector<32x64xbf16>, vector<9x64xf32> -> vector<9x64xf32>
    %138 = arith.addf %130, %137 : vector<9x64xf32>
    %c0_121 = arith.constant 0 : index
    %c0_122 = arith.constant 0 : index
    %139 = vector.load %arg6[%c0_121, %c0_122] : memref<1x64xf32, #tpu.memory_space<vmem>>, vector<1x64xf32>
    %140 = vector.broadcast %139 : vector<1x64xf32> to vector<9x64xf32>
    %141 = arith.addf %138, %140 : vector<9x64xf32>
    %cst_123 = arith.constant 0.000000e+00 : f32
    %142 = vector.broadcast %cst_123 : f32 to vector<9x64xf32>
    %143 = arith.maximumf %141, %142 : vector<9x64xf32>
    %144 = arith.truncf %143 : vector<9x64xf32> to vector<9x64xbf16>
    %cst_124 = arith.constant 0.000000e+00 : f32
    %145 = vector.broadcast %cst_124 : f32 to vector<1x64xf32>
    %c0_125 = arith.constant 0 : index
    %c0_126 = arith.constant 0 : index
    %c0_127 = arith.constant 0 : index
    %146 = vector.load %arg7[%c0_125, %c0_126, %c0_127] : memref<9x1x9xbf16, #tpu.memory_space<vmem>>, vector<1x1x9xbf16>
    %147 = vector.shape_cast %146 : vector<1x1x9xbf16> to vector<1x9xbf16>
    %cst_128 = arith.constant dense<0.000000e+00> : vector<1x64xf32>
    %148 = tpu.matmul %147, %144, %cst_128 {dimension_numbers = #tpu.dot_dimension_numbers<[1], [0], [0], [1], [0, 0, 1, 1], [], []>} : vector<1x9xbf16>, vector<9x64xbf16>, vector<1x64xf32> -> vector<1x64xf32>
    %149 = arith.truncf %148 : vector<1x64xf32> to vector<1x64xbf16>
    %c0_129 = arith.constant 0 : index
    %c0_130 = arith.constant 0 : index
    %c0_131 = arith.constant 0 : index
    %150 = vector.load %arg8[%c0_129, %c0_130, %c0_131] : memref<9x64x64xbf16, #tpu.memory_space<vmem>>, vector<1x64x64xbf16>
    %151 = vector.shape_cast %150 : vector<1x64x64xbf16> to vector<64x64xbf16>
    %cst_132 = arith.constant dense<0.000000e+00> : vector<1x64xf32>
    %152 = tpu.matmul %149, %151, %cst_132 {dimension_numbers = #tpu.dot_dimension_numbers<[1], [0], [0], [1], [0, 0, 1, 1], [], []>} : vector<1x64xbf16>, vector<64x64xbf16>, vector<1x64xf32> -> vector<1x64xf32>
    %153 = arith.addf %145, %152 : vector<1x64xf32>
    %c1_133 = arith.constant 1 : index
    %c0_134 = arith.constant 0 : index
    %c0_135 = arith.constant 0 : index
    %154 = vector.load %arg7[%c1_133, %c0_134, %c0_135] : memref<9x1x9xbf16, #tpu.memory_space<vmem>>, vector<1x1x9xbf16>
    %155 = vector.shape_cast %154 : vector<1x1x9xbf16> to vector<1x9xbf16>
    %cst_136 = arith.constant dense<0.000000e+00> : vector<1x64xf32>
    %156 = tpu.matmul %155, %144, %cst_136 {dimension_numbers = #tpu.dot_dimension_numbers<[1], [0], [0], [1], [0, 0, 1, 1], [], []>} : vector<1x9xbf16>, vector<9x64xbf16>, vector<1x64xf32> -> vector<1x64xf32>
    %157 = arith.truncf %156 : vector<1x64xf32> to vector<1x64xbf16>
    %c1_137 = arith.constant 1 : index
    %c0_138 = arith.constant 0 : index
    %c0_139 = arith.constant 0 : index
    %158 = vector.load %arg8[%c1_137, %c0_138, %c0_139] : memref<9x64x64xbf16, #tpu.memory_space<vmem>>, vector<1x64x64xbf16>
    %159 = vector.shape_cast %158 : vector<1x64x64xbf16> to vector<64x64xbf16>
    %cst_140 = arith.constant dense<0.000000e+00> : vector<1x64xf32>
    %160 = tpu.matmul %157, %159, %cst_140 {dimension_numbers = #tpu.dot_dimension_numbers<[1], [0], [0], [1], [0, 0, 1, 1], [], []>} : vector<1x64xbf16>, vector<64x64xbf16>, vector<1x64xf32> -> vector<1x64xf32>
    %161 = arith.addf %153, %160 : vector<1x64xf32>
    %c2_141 = arith.constant 2 : index
    %c0_142 = arith.constant 0 : index
    %c0_143 = arith.constant 0 : index
    %162 = vector.load %arg7[%c2_141, %c0_142, %c0_143] : memref<9x1x9xbf16, #tpu.memory_space<vmem>>, vector<1x1x9xbf16>
    %163 = vector.shape_cast %162 : vector<1x1x9xbf16> to vector<1x9xbf16>
    %cst_144 = arith.constant dense<0.000000e+00> : vector<1x64xf32>
    %164 = tpu.matmul %163, %144, %cst_144 {dimension_numbers = #tpu.dot_dimension_numbers<[1], [0], [0], [1], [0, 0, 1, 1], [], []>} : vector<1x9xbf16>, vector<9x64xbf16>, vector<1x64xf32> -> vector<1x64xf32>
    %165 = arith.truncf %164 : vector<1x64xf32> to vector<1x64xbf16>
    %c2_145 = arith.constant 2 : index
    %c0_146 = arith.constant 0 : index
    %c0_147 = arith.constant 0 : index
    %166 = vector.load %arg8[%c2_145, %c0_146, %c0_147] : memref<9x64x64xbf16, #tpu.memory_space<vmem>>, vector<1x64x64xbf16>
    %167 = vector.shape_cast %166 : vector<1x64x64xbf16> to vector<64x64xbf16>
    %cst_148 = arith.constant dense<0.000000e+00> : vector<1x64xf32>
    %168 = tpu.matmul %165, %167, %cst_148 {dimension_numbers = #tpu.dot_dimension_numbers<[1], [0], [0], [1], [0, 0, 1, 1], [], []>} : vector<1x64xbf16>, vector<64x64xbf16>, vector<1x64xf32> -> vector<1x64xf32>
    %169 = arith.addf %161, %168 : vector<1x64xf32>
    %c3_149 = arith.constant 3 : index
    %c0_150 = arith.constant 0 : index
    %c0_151 = arith.constant 0 : index
    %170 = vector.load %arg7[%c3_149, %c0_150, %c0_151] : memref<9x1x9xbf16, #tpu.memory_space<vmem>>, vector<1x1x9xbf16>
    %171 = vector.shape_cast %170 : vector<1x1x9xbf16> to vector<1x9xbf16>
    %cst_152 = arith.constant dense<0.000000e+00> : vector<1x64xf32>
    %172 = tpu.matmul %171, %144, %cst_152 {dimension_numbers = #tpu.dot_dimension_numbers<[1], [0], [0], [1], [0, 0, 1, 1], [], []>} : vector<1x9xbf16>, vector<9x64xbf16>, vector<1x64xf32> -> vector<1x64xf32>
    %173 = arith.truncf %172 : vector<1x64xf32> to vector<1x64xbf16>
    %c3_153 = arith.constant 3 : index
    %c0_154 = arith.constant 0 : index
    %c0_155 = arith.constant 0 : index
    %174 = vector.load %arg8[%c3_153, %c0_154, %c0_155] : memref<9x64x64xbf16, #tpu.memory_space<vmem>>, vector<1x64x64xbf16>
    %175 = vector.shape_cast %174 : vector<1x64x64xbf16> to vector<64x64xbf16>
    %cst_156 = arith.constant dense<0.000000e+00> : vector<1x64xf32>
    %176 = tpu.matmul %173, %175, %cst_156 {dimension_numbers = #tpu.dot_dimension_numbers<[1], [0], [0], [1], [0, 0, 1, 1], [], []>} : vector<1x64xbf16>, vector<64x64xbf16>, vector<1x64xf32> -> vector<1x64xf32>
    %177 = arith.addf %169, %176 : vector<1x64xf32>
    %c4_157 = arith.constant 4 : index
    %c0_158 = arith.constant 0 : index
    %c0_159 = arith.constant 0 : index
    %178 = vector.load %arg7[%c4_157, %c0_158, %c0_159] : memref<9x1x9xbf16, #tpu.memory_space<vmem>>, vector<1x1x9xbf16>
    %179 = vector.shape_cast %178 : vector<1x1x9xbf16> to vector<1x9xbf16>
    %cst_160 = arith.constant dense<0.000000e+00> : vector<1x64xf32>
    %180 = tpu.matmul %179, %144, %cst_160 {dimension_numbers = #tpu.dot_dimension_numbers<[1], [0], [0], [1], [0, 0, 1, 1], [], []>} : vector<1x9xbf16>, vector<9x64xbf16>, vector<1x64xf32> -> vector<1x64xf32>
    %181 = arith.truncf %180 : vector<1x64xf32> to vector<1x64xbf16>
    %c4_161 = arith.constant 4 : index
    %c0_162 = arith.constant 0 : index
    %c0_163 = arith.constant 0 : index
    %182 = vector.load %arg8[%c4_161, %c0_162, %c0_163] : memref<9x64x64xbf16, #tpu.memory_space<vmem>>, vector<1x64x64xbf16>
    %183 = vector.shape_cast %182 : vector<1x64x64xbf16> to vector<64x64xbf16>
    %cst_164 = arith.constant dense<0.000000e+00> : vector<1x64xf32>
    %184 = tpu.matmul %181, %183, %cst_164 {dimension_numbers = #tpu.dot_dimension_numbers<[1], [0], [0], [1], [0, 0, 1, 1], [], []>} : vector<1x64xbf16>, vector<64x64xbf16>, vector<1x64xf32> -> vector<1x64xf32>
    %185 = arith.addf %177, %184 : vector<1x64xf32>
    %c5_165 = arith.constant 5 : index
    %c0_166 = arith.constant 0 : index
    %c0_167 = arith.constant 0 : index
    %186 = vector.load %arg7[%c5_165, %c0_166, %c0_167] : memref<9x1x9xbf16, #tpu.memory_space<vmem>>, vector<1x1x9xbf16>
    %187 = vector.shape_cast %186 : vector<1x1x9xbf16> to vector<1x9xbf16>
    %cst_168 = arith.constant dense<0.000000e+00> : vector<1x64xf32>
    %188 = tpu.matmul %187, %144, %cst_168 {dimension_numbers = #tpu.dot_dimension_numbers<[1], [0], [0], [1], [0, 0, 1, 1], [], []>} : vector<1x9xbf16>, vector<9x64xbf16>, vector<1x64xf32> -> vector<1x64xf32>
    %189 = arith.truncf %188 : vector<1x64xf32> to vector<1x64xbf16>
    %c5_169 = arith.constant 5 : index
    %c0_170 = arith.constant 0 : index
    %c0_171 = arith.constant 0 : index
    %190 = vector.load %arg8[%c5_169, %c0_170, %c0_171] : memref<9x64x64xbf16, #tpu.memory_space<vmem>>, vector<1x64x64xbf16>
    %191 = vector.shape_cast %190 : vector<1x64x64xbf16> to vector<64x64xbf16>
    %cst_172 = arith.constant dense<0.000000e+00> : vector<1x64xf32>
    %192 = tpu.matmul %189, %191, %cst_172 {dimension_numbers = #tpu.dot_dimension_numbers<[1], [0], [0], [1], [0, 0, 1, 1], [], []>} : vector<1x64xbf16>, vector<64x64xbf16>, vector<1x64xf32> -> vector<1x64xf32>
    %193 = arith.addf %185, %192 : vector<1x64xf32>
    %c6_173 = arith.constant 6 : index
    %c0_174 = arith.constant 0 : index
    %c0_175 = arith.constant 0 : index
    %194 = vector.load %arg7[%c6_173, %c0_174, %c0_175] : memref<9x1x9xbf16, #tpu.memory_space<vmem>>, vector<1x1x9xbf16>
    %195 = vector.shape_cast %194 : vector<1x1x9xbf16> to vector<1x9xbf16>
    %cst_176 = arith.constant dense<0.000000e+00> : vector<1x64xf32>
    %196 = tpu.matmul %195, %144, %cst_176 {dimension_numbers = #tpu.dot_dimension_numbers<[1], [0], [0], [1], [0, 0, 1, 1], [], []>} : vector<1x9xbf16>, vector<9x64xbf16>, vector<1x64xf32> -> vector<1x64xf32>
    %197 = arith.truncf %196 : vector<1x64xf32> to vector<1x64xbf16>
    %c6_177 = arith.constant 6 : index
    %c0_178 = arith.constant 0 : index
    %c0_179 = arith.constant 0 : index
    %198 = vector.load %arg8[%c6_177, %c0_178, %c0_179] : memref<9x64x64xbf16, #tpu.memory_space<vmem>>, vector<1x64x64xbf16>
    %199 = vector.shape_cast %198 : vector<1x64x64xbf16> to vector<64x64xbf16>
    %cst_180 = arith.constant dense<0.000000e+00> : vector<1x64xf32>
    %200 = tpu.matmul %197, %199, %cst_180 {dimension_numbers = #tpu.dot_dimension_numbers<[1], [0], [0], [1], [0, 0, 1, 1], [], []>} : vector<1x64xbf16>, vector<64x64xbf16>, vector<1x64xf32> -> vector<1x64xf32>
    %201 = arith.addf %193, %200 : vector<1x64xf32>
    %c7_181 = arith.constant 7 : index
    %c0_182 = arith.constant 0 : index
    %c0_183 = arith.constant 0 : index
    %202 = vector.load %arg7[%c7_181, %c0_182, %c0_183] : memref<9x1x9xbf16, #tpu.memory_space<vmem>>, vector<1x1x9xbf16>
    %203 = vector.shape_cast %202 : vector<1x1x9xbf16> to vector<1x9xbf16>
    %cst_184 = arith.constant dense<0.000000e+00> : vector<1x64xf32>
    %204 = tpu.matmul %203, %144, %cst_184 {dimension_numbers = #tpu.dot_dimension_numbers<[1], [0], [0], [1], [0, 0, 1, 1], [], []>} : vector<1x9xbf16>, vector<9x64xbf16>, vector<1x64xf32> -> vector<1x64xf32>
    %205 = arith.truncf %204 : vector<1x64xf32> to vector<1x64xbf16>
    %c7_185 = arith.constant 7 : index
    %c0_186 = arith.constant 0 : index
    %c0_187 = arith.constant 0 : index
    %206 = vector.load %arg8[%c7_185, %c0_186, %c0_187] : memref<9x64x64xbf16, #tpu.memory_space<vmem>>, vector<1x64x64xbf16>
    %207 = vector.shape_cast %206 : vector<1x64x64xbf16> to vector<64x64xbf16>
    %cst_188 = arith.constant dense<0.000000e+00> : vector<1x64xf32>
    %208 = tpu.matmul %205, %207, %cst_188 {dimension_numbers = #tpu.dot_dimension_numbers<[1], [0], [0], [1], [0, 0, 1, 1], [], []>} : vector<1x64xbf16>, vector<64x64xbf16>, vector<1x64xf32> -> vector<1x64xf32>
    %209 = arith.addf %201, %208 : vector<1x64xf32>
    %c8_189 = arith.constant 8 : index
    %c0_190 = arith.constant 0 : index
    %c0_191 = arith.constant 0 : index
    %210 = vector.load %arg7[%c8_189, %c0_190, %c0_191] : memref<9x1x9xbf16, #tpu.memory_space<vmem>>, vector<1x1x9xbf16>
    %211 = vector.shape_cast %210 : vector<1x1x9xbf16> to vector<1x9xbf16>
    %cst_192 = arith.constant dense<0.000000e+00> : vector<1x64xf32>
    %212 = tpu.matmul %211, %144, %cst_192 {dimension_numbers = #tpu.dot_dimension_numbers<[1], [0], [0], [1], [0, 0, 1, 1], [], []>} : vector<1x9xbf16>, vector<9x64xbf16>, vector<1x64xf32> -> vector<1x64xf32>
    %213 = arith.truncf %212 : vector<1x64xf32> to vector<1x64xbf16>
    %c8_193 = arith.constant 8 : index
    %c0_194 = arith.constant 0 : index
    %c0_195 = arith.constant 0 : index
    %214 = vector.load %arg8[%c8_193, %c0_194, %c0_195] : memref<9x64x64xbf16, #tpu.memory_space<vmem>>, vector<1x64x64xbf16>
    %215 = vector.shape_cast %214 : vector<1x64x64xbf16> to vector<64x64xbf16>
    %cst_196 = arith.constant dense<0.000000e+00> : vector<1x64xf32>
    %216 = tpu.matmul %213, %215, %cst_196 {dimension_numbers = #tpu.dot_dimension_numbers<[1], [0], [0], [1], [0, 0, 1, 1], [], []>} : vector<1x64xbf16>, vector<64x64xbf16>, vector<1x64xf32> -> vector<1x64xf32>
    %217 = arith.addf %209, %216 : vector<1x64xf32>
    %c0_197 = arith.constant 0 : index
    %c0_198 = arith.constant 0 : index
    %218 = vector.load %arg9[%c0_197, %c0_198] : memref<1x64xf32, #tpu.memory_space<vmem>>, vector<1x64xf32>
    %219 = arith.addf %217, %218 : vector<1x64xf32>
    %cst_199 = arith.constant 0.000000e+00 : f32
    %220 = vector.broadcast %cst_199 : f32 to vector<1x64xf32>
    %221 = arith.maximumf %219, %220 : vector<1x64xf32>
    %222 = vector.shape_cast %221 : vector<1x64xf32> to vector<1x1x64xf32>
    %c0_200 = arith.constant 0 : index
    %c0_201 = arith.constant 0 : index
    %c0_202 = arith.constant 0 : index
    %223 = vector.load %arg10[%c0_200, %c0_201, %c0_202] : memref<1x1x64xf32, #tpu.memory_space<vmem>>, vector<1x1x64xf32>
    tpu.vector_store %arg10[%c0_200, %c0_201, %c0_202], %222 {strides = array<i32>} : memref<1x1x64xf32, #tpu.memory_space<vmem>>, vector<1x1x64xf32>,
    return
  }
  func.func @transform_0(%arg0: i32) -> (i32, i32, i32) {
    %c0_i32 = arith.constant 0 : i32
    %c0_i32_0 = arith.constant 0 : i32
    %c0_i32_1 = arith.constant 0 : i32
    return %arg0, %c0_i32, %c0_i32_0 : i32, i32, i32
  }
  func.func @transform_1(%arg0: i32) -> (i32, i32) {
    %c0_i32 = arith.constant 0 : i32
    %c0_i32_0 = arith.constant 0 : i32
    %c0_i32_1 = arith.constant 0 : i32
    return %c0_i32, %c0_i32_0 : i32, i32
  }
  func.func @transform_2(%arg0: i32) -> (i32, i32) {
    %c0_i32 = arith.constant 0 : i32
    %c0_i32_0 = arith.constant 0 : i32
    %c0_i32_1 = arith.constant 0 : i32
    return %c0_i32, %c0_i32_0 : i32, i32
  }
  func.func @transform_3(%arg0: i32) -> (i32, i32, i32) {
    %c0_i32 = arith.constant 0 : i32
    %c0_i32_0 = arith.constant 0 : i32
    %c0_i32_1 = arith.constant 0 : i32
    %c0_i32_2 = arith.constant 0 : i32
    return %c0_i32, %c0_i32_0, %c0_i32_1 : i32, i32, i32
  }
  func.func @transform_4(%arg0: i32) -> (i32, i32, i32) {
    %c0_i32 = arith.constant 0 : i32
    %c0_i32_0 = arith.constant 0 : i32
    %c0_i32_1 = arith.constant 0 : i32
    %c0_i32_2 = arith.constant 0 : i32
    return %c0_i32, %c0_i32_0, %c0_i32_1 : i32, i32, i32
  }
  func.func @transform_5(%arg0: i32) -> (i32, i32) {
    %c0_i32 = arith.constant 0 : i32
    %c0_i32_0 = arith.constant 0 : i32
    %c0_i32_1 = arith.constant 0 : i32
    return %c0_i32, %c0_i32_0 : i32, i32
  }
  func.func @transform_6(%arg0: i32) -> (i32, i32, i32) {
    %c0_i32 = arith.constant 0 : i32
    %c0_i32_0 = arith.constant 0 : i32
    %c0_i32_1 = arith.constant 0 : i32
    %c0_i32_2 = arith.constant 0 : i32
    return %c0_i32, %c0_i32_0, %c0_i32_1 : i32, i32, i32
  }
  func.func @transform_7(%arg0: i32) -> (i32, i32, i32) {
    %c0_i32 = arith.constant 0 : i32
    %c0_i32_0 = arith.constant 0 : i32
    %c0_i32_1 = arith.constant 0 : i32
    %c0_i32_2 = arith.constant 0 : i32
    return %c0_i32, %c0_i32_0, %c0_i32_1 : i32, i32, i32
  }
  func.func @transform_8(%arg0: i32) -> (i32, i32) {
    %c0_i32 = arith.constant 0 : i32
    %c0_i32_0 = arith.constant 0 : i32
    %c0_i32_1 = arith.constant 0 : i32
    return %c0_i32, %c0_i32_0 : i32, i32
  }
  func.func @transform_9(%arg0: i32) -> (i32, i32, i32) {
    %c0_i32 = arith.constant 0 : i32
    %c0_i32_0 = arith.constant 0 : i32
    %c0_i32_1 = arith.constant 0 : i32
    return %arg0, %c0_i32, %c0_i32_0 : i32, i32, i32
  }
}

</mosaic_0001>

<llo_original>
// kernel: dqn_forward.1
$region0: #{dqn_forward.1}
  #allocation0 [shape = 'u32[]', space=smem, size = 0x4, offset = 0x4, fixed_abs, tag = 'smem constant byte address 0x4 - core index']
  #allocation1 [shape = 'u32[144,128]{1,0:T(1,128)}', space=vmem, size = 0x12000, scoped, tag = 'internal scratch']
  %s0 = inlined_call_operand.vmem [shape: bf16[2,64,256], index: 0, kind: input, shape index: {}]
  %s1 = inlined_call_operand.vmem [shape: bf16[256,32], index: 1, kind: input, shape index: {}]
  %s2 = inlined_call_operand.vmem [shape: f32[1,32], index: 2, kind: input, shape index: {}]
  %s3 = inlined_call_operand.vmem [shape: bf16[16,9,64], index: 3, kind: input, shape index: {}]
  %s4 = inlined_call_operand.vmem [shape: bf16[16,32,64], index: 4, kind: input, shape index: {}]
  %s5 = inlined_call_operand.vmem [shape: f32[1,64], index: 5, kind: input, shape index: {}]
  %s6 = inlined_call_operand.vmem [shape: bf16[9,1,9], index: 6, kind: input, shape index: {}]
  %s7 = inlined_call_operand.vmem [shape: bf16[9,64,64], index: 7, kind: input, shape index: {}]
  %s8 = inlined_call_operand.vmem [shape: f32[1,64], index: 8, kind: input, shape index: {}]
  %s9 = inlined_call_operand.hbm [shape: f32[2,1,64], index: 9, kind: output, shape index: {}]
  %s10 = sld [smem:[#allocation0]]
  $region69: #{dqn_forward.1} parent=0
    _
  %s12 = ssub.s32 1, %s10
  %s13 = scalar_select 0, %s12, %s10
  $region1: #{dqn_forward.1} parent=0
    #allocation2 [shape = 'u8[1024]{0}', space=vmem, size = 0x400, scoped, tag = 'output window, operand 0']
    #allocation3 [shape = 's32[2]{0}', space=sflag, size = 0x8, scoped, tag = 'scoped memory for dqn_forward.1']
    %14 = vsyncpa [#allocation3], 0
    %s15 = scalar_lea.sflag [#allocation3], 1
    %16 = vsyncpa %s15, 0
    loop: start=0, step=1, limit=4
    $region2: #{dqn_forward.1} parent=1 // loop_pre_header
      _
    $region3: #{dqn_forward.1} parent=1 // loop_header
      %s18 = sphi 0, %s22
      %p19 = scmp.ge.s32.totalorder %s18, 4
      %s28 = sphi 0, %s30
      %s31 = sphi 0, %s28
      %s32 = sphi 0, %s31
      %s48 = sphi 0, %s32
      %s52 = sphi 0, %s52
      %s54 = sphi 0, %s52
      %s55 = sphi 0, %s54
      %s69 = sphi 0, %s55
      %s73 = sphi 0, %s73
      %s75 = sphi 0, %s73
      %s76 = sphi 0, %s75
      %s90 = sphi 0, %s76
      %s94 = sphi 0, %s94
      %s96 = sphi 0, %s94
      %s97 = sphi 0, %s96
      %s111 = sphi 0, %s97
      %s115 = sphi 0, %s115
      %s117 = sphi 0, %s115
      %s118 = sphi 0, %s117
      %s132 = sphi 0, %s118
      %s136 = sphi 0, %s136
      %s138 = sphi 0, %s136
      %s139 = sphi 0, %s138
      %s153 = sphi 0, %s139
      %s157 = sphi 0, %s157
      %s159 = sphi 0, %s157
      %s160 = sphi 0, %s159
      %s174 = sphi 0, %s160
      %s178 = sphi 0, %s178
      %s180 = sphi 0, %s178
      %s181 = sphi 0, %s180
      %s195 = sphi 0, %s181
      %s199 = sphi 0, %s199
      %s201 = sphi 0, %s199
      %s202 = sphi 0, %s201
      %s216 = sphi 0, %s202
      %s222 = sphi 0, %s224
      %s225 = sphi 0, %s222
      %s226 = sphi 0, %s225
      %s242 = sphi 0, %s226
    $region4: #{dqn_forward.1} parent=1 // loop_header_branch
      %21 = sbr.rel (%p19) target = $region8
    $region5: #{dqn_forward.1} parent=1 // loop_body
      %s23 = ssub.s32 %s18, 1
      %s24 = ssub.s32 %s18, 2
      %s25 = sadd.s32 %s18, 1
      %s26 = ssub.s32 %s18, %s25
      %p27 = scmp.eq.s32.totalorder %s26, 0
      %s29 = sadd.s32 %s28, 1
      %s30 = scalar_select %p27, %s28, %s29
      %p33 = pneg %p27
      %p34 = scmp.eq.s32.totalorder %s18, 1
      %p35 = por %p33, %p34
      %p36 = scmp.ne.s32.totalorder %s28, %s31
      %p37 = scmp.eq.s32.totalorder %s18, 0
      %p38 = por %p36, %p37
      %p39 = scmp.ne.s32.totalorder %s28, %s31
      %p40 = scmp.eq.s32.totalorder %s23, 1
      %p41 = por %p39, %p40
      %p42 = scmp.ne.s32.totalorder %s31, %s32
      %p43 = scmp.eq.s32.totalorder %s23, 0
      %p44 = por %p42, %p43
      %p45 = scmp.ne.s32.totalorder %s31, %s32
      %p46 = scmp.eq.s32.totalorder %s24, 1
      %p47 = por %p45, %p46
      %p49 = scmp.ne.s32.totalorder %s32, %s48
      %p50 = scmp.eq.s32.totalorder %s24, 0
      %p51 = por %p49, %p50
      %s53 = sadd.s32 %s52, 1
      %p56 = scmp.eq.s32.totalorder %s18, 1
      %p57 = scmp.ne.s32.totalorder %s52, %s54
      %p58 = scmp.eq.s32.totalorder %s18, 0
      %p59 = por %p57, %p58
      %p60 = scmp.ne.s32.totalorder %s52, %s54
      %p61 = scmp.eq.s32.totalorder %s23, 1
      %p62 = por %p60, %p61
      %p63 = scmp.ne.s32.totalorder %s54, %s55
      %p64 = scmp.eq.s32.totalorder %s23, 0
      %p65 = por %p63, %p64
      %p66 = scmp.ne.s32.totalorder %s54, %s55
      %p67 = scmp.eq.s32.totalorder %s24, 1
      %p68 = por %p66, %p67
      %p70 = scmp.ne.s32.totalorder %s55, %s69
      %p71 = scmp.eq.s32.totalorder %s24, 0
      %p72 = por %p70, %p71
      %s74 = sadd.s32 %s73, 1
      %p77 = scmp.eq.s32.totalorder %s18, 1
      %p78 = scmp.ne.s32.totalorder %s73, %s75
      %p79 = scmp.eq.s32.totalorder %s18, 0
      %p80 = por %p78, %p79
      %p81 = scmp.ne.s32.totalorder %s73, %s75
      %p82 = scmp.eq.s32.totalorder %s23, 1
      %p83 = por %p81, %p82
      %p84 = scmp.ne.s32.totalorder %s75, %s76
      %p85 = scmp.eq.s32.totalorder %s23, 0
      %p86 = por %p84, %p85
      %p87 = scmp.ne.s32.totalorder %s75, %s76
      %p88 = scmp.eq.s32.totalorder %s24, 1
      %p89 = por %p87, %p88
      %p91 = scmp.ne.s32.totalorder %s76, %s90
      %p92 = scmp.eq.s32.totalorder %s24, 0
      %p93 = por %p91, %p92
      %s95 = sadd.s32 %s94, 1
      %p98 = scmp.eq.s32.totalorder %s18, 1
      %p99 = scmp.ne.s32.totalorder %s94, %s96
      %p100 = scmp.eq.s32.totalorder %s18, 0
      %p101 = por %p99, %p100
      %p102 = scmp.ne.s32.totalorder %s94, %s96
      %p103 = scmp.eq.s32.totalorder %s23, 1
      %p104 = por %p102, %p103
      %p105 = scmp.ne.s32.totalorder %s96, %s97
      %p106 = scmp.eq.s32.totalorder %s23, 0
      %p107 = por %p105, %p106
      %p108 = scmp.ne.s32.totalorder %s96, %s97
      %p109 = scmp.eq.s32.totalorder %s24, 1
      %p110 = por %p108, %p109
      %p112 = scmp.ne.s32.totalorder %s97, %s111
      %p113 = scmp.eq.s32.totalorder %s24, 0
      %p114 = por %p112, %p113
      %s116 = sadd.s32 %s115, 1
      %p119 = scmp.eq.s32.totalorder %s18, 1
      %p120 = scmp.ne.s32.totalorder %s115, %s117
      %p121 = scmp.eq.s32.totalorder %s18, 0
      %p122 = por %p120, %p121
      %p123 = scmp.ne.s32.totalorder %s115, %s117
      %p124 = scmp.eq.s32.totalorder %s23, 1
      %p125 = por %p123, %p124
      %p126 = scmp.ne.s32.totalorder %s117, %s118
      %p127 = scmp.eq.s32.totalorder %s23, 0
      %p128 = por %p126, %p127
      %p129 = scmp.ne.s32.totalorder %s117, %s118
      %p130 = scmp.eq.s32.totalorder %s24, 1
      %p131 = por %p129, %p130
      %p133 = scmp.ne.s32.totalorder %s118, %s132
      %p134 = scmp.eq.s32.totalorder %s24, 0
      %p135 = por %p133, %p134
      %s137 = sadd.s32 %s136, 1
      %p140 = scmp.eq.s32.totalorder %s18, 1
      %p141 = scmp.ne.s32.totalorder %s136, %s138
      %p142 = scmp.eq.s32.totalorder %s18, 0
      %p143 = por %p141, %p142
      %p144 = scmp.ne.s32.totalorder %s136, %s138
      %p145 = scmp.eq.s32.totalorder %s23, 1
      %p146 = por %p144, %p145
      %p147 = scmp.ne.s32.totalorder %s138, %s139
      %p148 = scmp.eq.s32.totalorder %s23, 0
      %p149 = por %p147, %p148
      %p150 = scmp.ne.s32.totalorder %s138, %s139
      %p151 = scmp.eq.s32.totalorder %s24, 1
      %p152 = por %p150, %p151
      %p154 = scmp.ne.s32.totalorder %s139, %s153
      %p155 = scmp.eq.s32.totalorder %s24, 0
      %p156 = por %p154, %p155
      %s158 = sadd.s32 %s157, 1
      %p161 = scmp.eq.s32.totalorder %s18, 1
      %p162 = scmp.ne.s32.totalorder %s157, %s159
      %p163 = scmp.eq.s32.totalorder %s18, 0
      %p164 = por %p162, %p163
      %p165 = scmp.ne.s32.totalorder %s157, %s159
      %p166 = scmp.eq.s32.totalorder %s23, 1
      %p167 = por %p165, %p166
      %p168 = scmp.ne.s32.totalorder %s159, %s160
      %p169 = scmp.eq.s32.totalorder %s23, 0
      %p170 = por %p168, %p169
      %p171 = scmp.ne.s32.totalorder %s159, %s160
      %p172 = scmp.eq.s32.totalorder %s24, 1
      %p173 = por %p171, %p172
      %p175 = scmp.ne.s32.totalorder %s160, %s174
      %p176 = scmp.eq.s32.totalorder %s24, 0
      %p177 = por %p175, %p176
      %s179 = sadd.s32 %s178, 1
      %p182 = scmp.eq.s32.totalorder %s18, 1
      %p183 = scmp.ne.s32.totalorder %s178, %s180
      %p184 = scmp.eq.s32.totalorder %s18, 0
      %p185 = por %p183, %p184
      %p186 = scmp.ne.s32.totalorder %s178, %s180
      %p187 = scmp.eq.s32.totalorder %s23, 1
      %p188 = por %p186, %p187
      %p189 = scmp.ne.s32.totalorder %s180, %s181
      %p190 = scmp.eq.s32.totalorder %s23, 0
      %p191 = por %p189, %p190
      %p192 = scmp.ne.s32.totalorder %s180, %s181
      %p193 = scmp.eq.s32.totalorder %s24, 1
      %p194 = por %p192, %p193
      %p196 = scmp.ne.s32.totalorder %s181, %s195
      %p197 = scmp.eq.s32.totalorder %s24, 0
      %p198 = por %p196, %p197
      %s200 = sadd.s32 %s199, 1
      %p203 = scmp.eq.s32.totalorder %s18, 1
      %p204 = scmp.ne.s32.totalorder %s199, %s201
      %p205 = scmp.eq.s32.totalorder %s18, 0
      %p206 = por %p204, %p205
      %p207 = scmp.ne.s32.totalorder %s199, %s201
      %p208 = scmp.eq.s32.totalorder %s23, 1
      %p209 = por %p207, %p208
      %p210 = scmp.ne.s32.totalorder %s201, %s202
      %p211 = scmp.eq.s32.totalorder %s23, 0
      %p212 = por %p210, %p211
      %p213 = scmp.ne.s32.totalorder %s201, %s202
      %p214 = scmp.eq.s32.totalorder %s24, 1
      %p215 = por %p213, %p214
      %p217 = scmp.ne.s32.totalorder %s202, %s216
      %p218 = scmp.eq.s32.totalorder %s24, 0
      %p219 = por %p217, %p218
      %s220 = ssub.s32 %s18, %s25
      %p221 = scmp.eq.s32.totalorder %s220, 0
      %s223 = sadd.s32 %s222, 1
      %s224 = scalar_select %p221, %s222, %s223
      %p227 = pneg %p221
      %p228 = scmp.eq.s32.totalorder %s18, 1
      %p229 = por %p227, %p228
      %p230 = scmp.ne.s32.totalorder %s222, %s225
      %p231 = scmp.eq.s32.totalorder %s18, 0
      %p232 = por %p230, %p231
      %p233 = scmp.ne.s32.totalorder %s222, %s225
      %p234 = scmp.eq.s32.totalorder %s23, 1
      %p235 = por %p233, %p234
      %p236 = scmp.ne.s32.totalorder %s225, %s226
      %p237 = scmp.eq.s32.totalorder %s23, 0
      %p238 = por %p236, %p237
      %p239 = scmp.ne.s32.totalorder %s225, %s226
      %p240 = scmp.eq.s32.totalorder %s24, 1
      %p241 = por %p239, %p240
      %p243 = scmp.ne.s32.totalorder %s226, %s242
      %p244 = scmp.eq.s32.totalorder %s24, 0
      %p245 = por %p243, %p244
      %p246 = scmp.le.s32.totalorder 1, %s18
      %p247 = scmp.lt.s32.totalorder %s18, 3
      %p248 = pnand %p246, %p247
      %p249 = pneg %p248
      // Predicated region
      $region9: #{dqn_forward.1} parent=5 // pred_check
        _
      $region10: #{dqn_forward.1} parent=5 // pred_check_branch
        %251 = sbr.rel (%p248) target = $region12
      $region11: #{dqn_forward.1} parent=5 // pred_region
        %s252 = ssub.s32 %s18, 1
        // Predicated region
        $region13: #{dqn_forward.1} parent=11 // pred_check
          %p253 = pneg %p65
        $region14: #{dqn_forward.1} parent=11 // pred_check_branch
          %255 = sbr.rel (%p253) target = $region16
        $region15: #{dqn_forward.1} parent=11 // pred_region
          _
        $region16: #{dqn_forward.1} parent=11 // pred_fallthru
          _
        // Predicated region
        $region17: #{dqn_forward.1} parent=11 // pred_check
          %p256 = pneg %p86
        $region18: #{dqn_forward.1} parent=11 // pred_check_branch
          %258 = sbr.rel (%p256) target = $region20
        $region19: #{dqn_forward.1} parent=11 // pred_region
          _
        $region20: #{dqn_forward.1} parent=11 // pred_fallthru
          _
        // Predicated region
        $region21: #{dqn_forward.1} parent=11 // pred_check
          %p259 = pneg %p107
        $region22: #{dqn_forward.1} parent=11 // pred_check_branch
          %261 = sbr.rel (%p259) target = $region24
        $region23: #{dqn_forward.1} parent=11 // pred_region
          _
        $region24: #{dqn_forward.1} parent=11 // pred_fallthru
          _
        // Predicated region
        $region25: #{dqn_forward.1} parent=11 // pred_check
          %p262 = pneg %p128
        $region26: #{dqn_forward.1} parent=11 // pred_check_branch
          %264 = sbr.rel (%p262) target = $region28
        $region27: #{dqn_forward.1} parent=11 // pred_region
          _
        $region28: #{dqn_forward.1} parent=11 // pred_fallthru
          _
        // Predicated region
        $region29: #{dqn_forward.1} parent=11 // pred_check
          %p265 = pneg %p149
        $region30: #{dqn_forward.1} parent=11 // pred_check_branch
          %267 = sbr.rel (%p265) target = $region32
        $region31: #{dqn_forward.1} parent=11 // pred_region
          _
        $region32: #{dqn_forward.1} parent=11 // pred_fallthru
          _
        // Predicated region
        $region33: #{dqn_forward.1} parent=11 // pred_check
          %p268 = pneg %p170
        $region34: #{dqn_forward.1} parent=11 // pred_check_branch
          %270 = sbr.rel (%p268) target = $region36
        $region35: #{dqn_forward.1} parent=11 // pred_region
          _
        $region36: #{dqn_forward.1} parent=11 // pred_fallthru
          _
        // Predicated region
        $region37: #{dqn_forward.1} parent=11 // pred_check
          %p271 = pneg %p191
        $region38: #{dqn_forward.1} parent=11 // pred_check_branch
          %273 = sbr.rel (%p271) target = $region40
        $region39: #{dqn_forward.1} parent=11 // pred_region
          _
        $region40: #{dqn_forward.1} parent=11 // pred_fallthru
          _
        // Predicated region
        $region41: #{dqn_forward.1} parent=11 // pred_check
          %p274 = pneg %p212
        $region42: #{dqn_forward.1} parent=11 // pred_check_branch
          %276 = sbr.rel (%p274) target = $region44
        $region43: #{dqn_forward.1} parent=11 // pred_region
          _
        $region44: #{dqn_forward.1} parent=11 // pred_fallthru
          _
      $region12: #{dqn_forward.1} parent=5 // pred_fallthru
        _
      %p277 = scmp.lt.s32.totalorder %s18, 2
      // Predicated region
      $region45: #{dqn_forward.1} parent=5 // pred_check
        %p278 = pneg %p277
      $region46: #{dqn_forward.1} parent=5 // pred_check_branch
        %280 = sbr.rel (%p278) target = $region48
      $region47: #{dqn_forward.1} parent=5 // pred_region
        // Predicated region
        $region49: #{dqn_forward.1} parent=47 // pred_check
          %p281 = pneg %p38
        $region50: #{dqn_forward.1} parent=47 // pred_check_branch
          %283 = sbr.rel (%p281) target = $region52
        $region51: #{dqn_forward.1} parent=47 // pred_region
          %p284 = scmp.lt.s32.totalorder %s18, 1
          %s285 = scalar_select %p284, %s18, 1
          %s286 = smul.addr %s285, 16
          %s287 = smul.addr %s286, 4
          %s288 = scalar_lea.vmem %s0, %s287
        $region52: #{dqn_forward.1} parent=47 // pred_fallthru
          _
      $region48: #{dqn_forward.1} parent=5 // pred_fallthru
        _
      %p289 = scmp.le.s32.totalorder 1, %s18
      %p290 = scmp.lt.s32.totalorder %s18, 3
      %p291 = pnand %p289, %p290
      %p292 = pneg %p291
      // Predicated region
      $region53: #{dqn_forward.1} parent=5 // pred_check
        _
      $region54: #{dqn_forward.1} parent=5 // pred_check_branch
        %294 = sbr.rel (%p291) target = $region56
      $region55: #{dqn_forward.1} parent=5 // pred_region
        %s295 = ssub.s32 %s18, 1
        %p296 = scmp.lt.s32.totalorder %s23, 1
        %s297 = scalar_select %p296, %s23, 1
        %s298 = smul.addr %s297, 16
        %s299 = smul.addr %s298, 4
        %s300 = scalar_lea.vmem %s0, %s299
        %p301 = pneg %p44
        %p302 = pneg %p41
        %p303 = pneg %p65
        %p304 = pneg %p62
        %p305 = pneg %p86
        %p306 = pneg %p83
        %p307 = pneg %p107
        %p308 = pneg %p104
        %p309 = pneg %p128
        %p310 = pneg %p125
        %p311 = pneg %p149
        %p312 = pneg %p146
        %p313 = pneg %p170
        %p314 = pneg %p167
        %p315 = pneg %p191
        %p316 = pneg %p188
        %p317 = pneg %p212
        %p318 = pneg %p209
        %p319 = pneg %p238
        %p320 = pneg %p235
        %s321 = sand.u32 %s225, 1
        %s322 = scalar_lea.sflag [#allocation3], %s321
        %s323 = sand.u32 %s225, 1
        %s324 = scalar_lea.vmem [#allocation2], %s323
        %p325 = scmp.lt.s32.totalorder %s23, 1
        %s326 = scalar_select %p325, %s23, 1
        %s327 = smul.addr %s326, 16
        %s328 = smul.addr %s327, 4
        %s329 = scalar_lea.vmem %s0, %s328
        %v331 = vld [vmem:[%s329] sm:$0xff]
        %v332 = vld [vmem:[%s329 + $0x8] sm:$0xff]
        %v333 = vld [vmem:[%s329 + $0x10] sm:$0xff]
        %v334 = vld [vmem:[%s329 + $0x18] sm:$0xff]
        %v335 = vld [vmem:[%s329 + $0x20] sm:$0xff]
        %v336 = vld [vmem:[%s329 + $0x28] sm:$0xff]
        %v337 = vld [vmem:[%s329 + $0x30] sm:$0xff]
        %v338 = vld [vmem:[%s329 + $0x38] sm:$0xff]
        %v339 = vld [vmem:[%s1] sm:$0xf]
        %v340 = vld [vmem:[%s1 + $0x4] sm:$0xf]
        %v341 = vld [vmem:[%s1 + $0x8] sm:$0xf]
        %v342 = vld [vmem:[%s1 + $0xc] sm:$0xf]
        %v343 = vld [vmem:[%s1 + $0x10] sm:$0xf]
        %v344 = vld [vmem:[%s1 + $0x14] sm:$0xf]
        %v345 = vld [vmem:[%s1 + $0x18] sm:$0xf]
        %v346 = vld [vmem:[%s1 + $0x1c] sm:$0xf]
        %v347 = vld [vmem:[%s1 + $0x20] sm:$0xf]
        %v348 = vld [vmem:[%s1 + $0x24] sm:$0xf]
        %v349 = vld [vmem:[%s1 + $0x28] sm:$0xf]
        %v350 = vld [vmem:[%s1 + $0x2c] sm:$0xf]
        %v351 = vld [vmem:[%s1 + $0x30] sm:$0xf]
        %v352 = vld [vmem:[%s1 + $0x34] sm:$0xf]
        %v353 = vld [vmem:[%s1 + $0x38] sm:$0xf]
        %v354 = vld [vmem:[%s1 + $0x3c] sm:$0xf]
        %v355 = vld [vmem:[%s1 + $0x40] sm:$0xf]
        %v356 = vld [vmem:[%s1 + $0x44] sm:$0xf]
        %v357 = vld [vmem:[%s1 + $0x48] sm:$0xf]
        %v358 = vld [vmem:[%s1 + $0x4c] sm:$0xf]
        %v359 = vld [vmem:[%s1 + $0x50] sm:$0xf]
        %v360 = vld [vmem:[%s1 + $0x54] sm:$0xf]
        %v361 = vld [vmem:[%s1 + $0x58] sm:$0xf]
        %v362 = vld [vmem:[%s1 + $0x5c] sm:$0xf]
        %v363 = vld [vmem:[%s1 + $0x60] sm:$0xf]
        %v364 = vld [vmem:[%s1 + $0x64] sm:$0xf]
        %v365 = vld [vmem:[%s1 + $0x68] sm:$0xf]
        %v366 = vld [vmem:[%s1 + $0x6c] sm:$0xf]
        %v367 = vld [vmem:[%s1 + $0x70] sm:$0xf]
        %v368 = vld [vmem:[%s1 + $0x74] sm:$0xf]
        %v369 = vld [vmem:[%s1 + $0x78] sm:$0xf]
        %v370 = vld [vmem:[%s1 + $0x7c] sm:$0xf]
        %v371 = vld [vmem:[%s2] sm:$0x1]
        %v373 = vlaneseq
        %v374 = vshrl.u32 %v373, 7
        %v375 = vsub.s32 0, %v374
        %v376 = vrot.slane %v371, %v375
        %v386 = vunpack.c.l.b16 %v331
        %v387 = vunpack.c.h.b16 %v331
        %v388 = vunpack.c.l.b16 %v332
        %v389 = vunpack.c.h.b16 %v332
        %v390 = vunpack.c.l.b16 %v333
        %v391 = vunpack.c.h.b16 %v333
        %v392 = vunpack.c.l.b16 %v334
        %v393 = vunpack.c.h.b16 %v334
        %v394 = vunpack.c.l.b16 %v335
        %v395 = vunpack.c.h.b16 %v335
        %v396 = vunpack.c.l.b16 %v336
        %v397 = vunpack.c.h.b16 %v336
        %v398 = vunpack.c.l.b16 %v337
        %v399 = vunpack.c.h.b16 %v337
        %v400 = vunpack.c.l.b16 %v338
        %v401 = vunpack.c.h.b16 %v338
        %v402 = vpack.c.b16 %v388, %v386
        %v403 = vpack.c.b16 %v389, %v387
        %v404 = vpack.c.b16 %v392, %v390
        %v405 = vpack.c.b16 %v393, %v391
        %v406 = vpack.c.b16 %v396, %v394
        %v407 = vpack.c.b16 %v397, %v395
        %v408 = vpack.c.b16 %v400, %v398
        %v409 = vpack.c.b16 %v401, %v399
        %v450 = vunpack.c.l.b16 %v339
        %v451 = vunpack.c.l.b16 %v340
        %v452 = vunpack.c.l.b16 %v341
        %v453 = vunpack.c.l.b16 %v342
        %v454 = vunpack.c.l.b16 %v343
        %v455 = vunpack.c.l.b16 %v344
        %v456 = vunpack.c.l.b16 %v345
        %v457 = vunpack.c.l.b16 %v346
        %v458 = vunpack.c.l.b16 %v347
        %v459 = vunpack.c.l.b16 %v348
        %v460 = vunpack.c.l.b16 %v349
        %v461 = vunpack.c.l.b16 %v350
        %v462 = vunpack.c.l.b16 %v351
        %v463 = vunpack.c.l.b16 %v352
        %v464 = vunpack.c.l.b16 %v353
        %v465 = vunpack.c.l.b16 %v354
        %v466 = vunpack.c.l.b16 %v355
        %v467 = vunpack.c.l.b16 %v356
        %v468 = vunpack.c.l.b16 %v357
        %v469 = vunpack.c.l.b16 %v358
        %v470 = vunpack.c.l.b16 %v359
        %v471 = vunpack.c.l.b16 %v360
        %v472 = vunpack.c.l.b16 %v361
        %v473 = vunpack.c.l.b16 %v362
        %v474 = vunpack.c.l.b16 %v363
        %v475 = vunpack.c.l.b16 %v364
        %v476 = vunpack.c.l.b16 %v365
        %v477 = vunpack.c.l.b16 %v366
        %v478 = vunpack.c.l.b16 %v367
        %v479 = vunpack.c.l.b16 %v368
        %v480 = vunpack.c.l.b16 %v369
        %v481 = vunpack.c.l.b16 %v370
        %v482 = vpack.c.b16 %v451, %v450
        %v483 = vpack.c.b16 %v453, %v452
        %v484 = vpack.c.b16 %v455, %v454
        %v485 = vpack.c.b16 %v457, %v456
        %v486 = vpack.c.b16 %v459, %v458
        %v487 = vpack.c.b16 %v461, %v460
        %v488 = vpack.c.b16 %v463, %v462
        %v489 = vpack.c.b16 %v465, %v464
        %v490 = vpack.c.b16 %v467, %v466
        %v491 = vpack.c.b16 %v469, %v468
        %v492 = vpack.c.b16 %v471, %v470
        %v493 = vpack.c.b16 %v473, %v472
        %v494 = vpack.c.b16 %v475, %v474
        %v495 = vpack.c.b16 %v477, %v476
        %v496 = vpack.c.b16 %v479, %v478
        %v497 = vpack.c.b16 %v481, %v480
        %514 = vmatprep.subr.bf16.mxu0 0
        %515 = vmatpush1.bf16.msra.mxu0 %v482
        %516 = vmatprep.subr.bf16.mxu0 0
        %517 = vmatpush1.bf16.msra.mxu0 %v483
        %518 = vmatprep.subr.bf16.mxu0 0
        %519 = vmatpush1.bf16.msra.mxu0 %v484
        %520 = vmatprep.subr.bf16.mxu0 0
        %521 = vmatpush1.bf16.msra.mxu0 %v485
        %522 = vmatprep.subr.bf16.mxu0 0
        %523 = vmatpush1.bf16.msra.mxu0 %v486
        %524 = vmatprep.subr.bf16.mxu0 0
        %525 = vmatpush1.bf16.msra.mxu0 %v487
        %526 = vmatprep.subr.bf16.mxu0 0
        %527 = vmatpush1.bf16.msra.mxu0 %v488
        %528 = vmatprep.subr.bf16.mxu0 0
        %529 = vmatpush1.bf16.msra.mxu0 %v489
        %530 = vmatprep.subr.bf16.mxu0 0
        %531 = vmatpush1.bf16.msra.mxu0 %v490
        %532 = vmatprep.subr.bf16.mxu0 0
        %533 = vmatpush1.bf16.msra.mxu0 %v491
        %534 = vmatprep.subr.bf16.mxu0 0
        %535 = vmatpush1.bf16.msra.mxu0 %v492
        %536 = vmatprep.subr.bf16.mxu0 0
        %537 = vmatpush1.bf16.msra.mxu0 %v493
        %538 = vmatprep.subr.bf16.mxu0 0
        %539 = vmatpush1.bf16.msra.mxu0 %v494
        %540 = vmatprep.subr.bf16.mxu0 0
        %541 = vmatpush1.bf16.msra.mxu0 %v495
        %542 = vmatprep.subr.bf16.mxu0 0
        %543 = vmatpush1.bf16.msra.mxu0 %v496
        %544 = vmatprep.subr.bf16.mxu0 0
        %545 = vmatpush1.bf16.msra.mxu0 %v497
        %546 = vmatprep.mubr.bf16.mxu0 %v403
        %547 = vmatmul.mubr.bf16.gmra.mrb[0].mxu0 %v402
        %v548 = vpop.f32.mrb[0].mxu0
        %v549 = vadd.f32 %v376, %v548
        %v550 = vpop.f32.mrb[0].mxu0
        %v551 = vpop.f32.mrb[0].mxu0
        %v552 = vadd.f32 %v376, %v551
        %v553 = vpop.f32.mrb[0].mxu0
        %554 = vmatprep.mubr.bf16.mxu0 %v405
        %555 = vmatmul.mubr.bf16.gmra.mrb[0].mxu0 %v404
        %v556 = vpop.f32.mrb[0].mxu0
        %v557 = vadd.f32 %v376, %v556
        %v558 = vpop.f32.mrb[0].mxu0
        %v559 = vpop.f32.mrb[0].mxu0
        %v560 = vadd.f32 %v376, %v559
        %v561 = vpop.f32.mrb[0].mxu0
        %562 = vmatprep.mubr.bf16.mxu0 %v407
        %563 = vmatmul.mubr.bf16.gmra.mrb[0].mxu0 %v406
        %v564 = vpop.f32.mrb[0].mxu0
        %v565 = vadd.f32 %v376, %v564
        %v566 = vpop.f32.mrb[0].mxu0
        %v567 = vpop.f32.mrb[0].mxu0
        %v568 = vadd.f32 %v376, %v567
        %v569 = vpop.f32.mrb[0].mxu0
        %570 = vmatprep.mubr.bf16.mxu0 %v409
        %571 = vmatmul.mubr.bf16.gmra.mrb[0].mxu0 %v408
        %v572 = vpop.f32.mrb[0].mxu0
        %v573 = vadd.f32 %v376, %v572
        %v574 = vpop.f32.mrb[0].mxu0
        %v575 = vpop.f32.mrb[0].mxu0
        %v576 = vadd.f32 %v376, %v575
        %v577 = vpop.f32.mrb[0].mxu0
        %578 = vdwg.mxu0
        %v579 = vmax.f32 %v549, 0.0
        %v580 = vmax.f32 %v552, 0.0
        %v581 = vmax.f32 %v557, 0.0
        %v582 = vmax.f32 %v560, 0.0
        %v583 = vmax.f32 %v565, 0.0
        %v584 = vmax.f32 %v568, 0.0
        %v585 = vmax.f32 %v573, 0.0
        %v586 = vmax.f32 %v576, 0.0
        %v587 = vpack.c.bf16 %v580, %v579
        %v588 = vpack.c.bf16 %v582, %v581
        %v589 = vpack.c.bf16 %v584, %v583
        %v590 = vpack.c.bf16 %v586, %v585
        %v591 = vld [vmem:[%s3] sm:$0xf]
        %v592 = vld [vmem:[%s3 + $0x4] sm:$0x1]
        %v595 = vunpack.c.l.b16 %v591
        %v596 = vunpack.c.l.b16 %v592
        %v597 = vpack.c.b16 %v596, %v595
        %vm598 = vcmask 523264
        %v600 = vsel %vm598, %v597, 0
        %602 = vmatprep.subr.bf16.mxu0 0
        %603 = vmatpush1.bf16.msra.mxu0 %v587
        %604 = vmatprep.subr.bf16.mxu0 0
        %605 = vmatpush1.bf16.msra.mxu0 %v588
        %606 = vmatprep.subr.bf16.mxu0 0
        %607 = vmatpush1.bf16.msra.mxu0 %v589
        %608 = vmatprep.subr.bf16.mxu0 0
        %609 = vmatpush1.bf16.msra.mxu0 %v590
        %610 = vmatprep.subr.bf16.mxu0 0
        %611 = vmatpush1.bf16.msra.mxu0 0
        %612 = vmatprep.subr.bf16.mxu0 0
        %613 = vmatpush1.bf16.msra.mxu0 0
        %614 = vmatprep.subr.bf16.mxu0 0
        %615 = vmatpush1.bf16.msra.mxu0 0
        %616 = vmatprep.subr.bf16.mxu0 0
        %617 = vmatpush1.bf16.msra.mxu0 0
        %618 = vmatprep.subr.bf16.mxu0 0
        %619 = vmatpush1.bf16.msra.mxu0 0
        %620 = vmatprep.subr.bf16.mxu0 0
        %621 = vmatpush1.bf16.msra.mxu0 0
        %622 = vmatprep.subr.bf16.mxu0 0
        %623 = vmatpush1.bf16.msra.mxu0 0
        %624 = vmatprep.subr.bf16.mxu0 0
        %625 = vmatpush1.bf16.msra.mxu0 0
        %626 = vmatprep.subr.bf16.mxu0 0
        %627 = vmatpush1.bf16.msra.mxu0 0
        %628 = vmatprep.subr.bf16.mxu0 0
        %629 = vmatpush1.bf16.msra.mxu0 0
        %630 = vmatprep.subr.bf16.mxu0 0
        %631 = vmatpush1.bf16.msra.mxu0 0
        %632 = vmatprep.subr.bf16.mxu0 0
        %633 = vmatpush1.bf16.msra.mxu0 0
        %634 = vmatprep.mubr.bf16.mxu0 0
        %635 = vmatmul.mubr.bf16.gmra.mrb[0].mxu0 %v600
        %v636 = vpop.f32.mrb[0].mxu0
        %v637 = vadd.f32 0.0, %v636
        %v638 = vpop.f32.mrb[0].mxu0
        %v639 = vpop.f32.mrb[0].mxu0
        %v640 = vadd.f32 0.0, %v639
        %v641 = vpop.f32.mrb[0].mxu0
        %642 = vdwg.mxu0
        %v643 = vpack.c.bf16 %v640, %v637
        %v644 = vld [vmem:[%s4] sm:$0xf]
        %v645 = vld [vmem:[%s4 + $0x4] sm:$0xf]
        %v646 = vld [vmem:[%s4 + $0x8] sm:$0xf]
        %v647 = vld [vmem:[%s4 + $0xc] sm:$0xf]
        %s648 = scalar_lea.vmem %s3, 8
        %v649 = vld [vmem:[%s648] sm:$0xf]
        %v650 = vld [vmem:[%s648 + $0x4] sm:$0x1]
        %v653 = vunpack.c.l.b16 %v649
        %v654 = vunpack.c.l.b16 %v650
        %v655 = vpack.c.b16 %v654, %v653
        %v657 = vsel %vm598, %v655, 0
        %659 = vmatprep.subr.bf16.mxu0 0
        %660 = vmatpush1.bf16.msra.mxu0 %v587
        %661 = vmatprep.subr.bf16.mxu0 0
        %662 = vmatpush1.bf16.msra.mxu0 %v588
        %663 = vmatprep.subr.bf16.mxu0 0
        %664 = vmatpush1.bf16.msra.mxu0 %v589
        %665 = vmatprep.subr.bf16.mxu0 0
        %666 = vmatpush1.bf16.msra.mxu0 %v590
        %667 = vmatprep.subr.bf16.mxu0 0
        %668 = vmatpush1.bf16.msra.mxu0 0
        %669 = vmatprep.subr.bf16.mxu0 0
        %670 = vmatpush1.bf16.msra.mxu0 0
        %671 = vmatprep.subr.bf16.mxu0 0
        %672 = vmatpush1.bf16.msra.mxu0 0
        %673 = vmatprep.subr.bf16.mxu0 0
        %674 = vmatpush1.bf16.msra.mxu0 0
        %675 = vmatprep.subr.bf16.mxu0 0
        %676 = vmatpush1.bf16.msra.mxu0 0
        %677 = vmatprep.subr.bf16.mxu0 0
        %678 = vmatpush1.bf16.msra.mxu0 0
        %679 = vmatprep.subr.bf16.mxu0 0
        %680 = vmatpush1.bf16.msra.mxu0 0
        %681 = vmatprep.subr.bf16.mxu0 0
        %682 = vmatpush1.bf16.msra.mxu0 0
        %683 = vmatprep.subr.bf16.mxu0 0
        %684 = vmatpush1.bf16.msra.mxu0 0
        %685 = vmatprep.subr.bf16.mxu0 0
        %686 = vmatpush1.bf16.msra.mxu0 0
        %687 = vmatprep.subr.bf16.mxu0 0
        %688 = vmatpush1.bf16.msra.mxu0 0
        %689 = vmatprep.subr.bf16.mxu0 0
        %690 = vmatpush1.bf16.msra.mxu0 0
        %691 = vmatprep.mubr.bf16.mxu0 0
        %692 = vmatmul.mubr.bf16.gmra.mrb[0].mxu0 %v657
        %v693 = vpop.f32.mrb[0].mxu0
        %v694 = vadd.f32 0.0, %v693
        %v695 = vpop.f32.mrb[0].mxu0
        %v696 = vpop.f32.mrb[0].mxu0
        %v697 = vadd.f32 0.0, %v696
        %v698 = vpop.f32.mrb[0].mxu0
        %699 = vdwg.mxu0
        %v700 = vpack.c.bf16 %v697, %v694
        %s701 = scalar_lea.vmem %s4, 16
        %v702 = vld [vmem:[%s701] sm:$0xf]
        %v703 = vld [vmem:[%s701 + $0x4] sm:$0xf]
        %v704 = vld [vmem:[%s701 + $0x8] sm:$0xf]
        %v705 = vld [vmem:[%s701 + $0xc] sm:$0xf]
        %v710 = vunpack.c.l.b16 %v702
        %v711 = vunpack.c.l.b16 %v703
        %v712 = vunpack.c.l.b16 %v704
        %v713 = vunpack.c.l.b16 %v705
        %v714 = vpack.c.b16 %v711, %v710
        %v715 = vpack.c.b16 %v713, %v712
        %vm718 = vcmask 261120
        %v720 = vsel %vm718, %v700, 0
        %722 = vmatprep.subr.bf16.mxu0 0
        %723 = vmatpush1.bf16.msra.mxu0 %v714
        %724 = vmatprep.subr.bf16.mxu0 0
        %725 = vmatpush1.bf16.msra.mxu0 %v715
        %726 = vmatprep.subr.bf16.mxu0 0
        %727 = vmatpush1.bf16.msra.mxu0 0
        %728 = vmatprep.subr.bf16.mxu0 0
        %729 = vmatpush1.bf16.msra.mxu0 0
        %730 = vmatprep.subr.bf16.mxu0 0
        %731 = vmatpush1.bf16.msra.mxu0 0
        %732 = vmatprep.subr.bf16.mxu0 0
        %733 = vmatpush1.bf16.msra.mxu0 0
        %734 = vmatprep.subr.bf16.mxu0 0
        %735 = vmatpush1.bf16.msra.mxu0 0
        %736 = vmatprep.subr.bf16.mxu0 0
        %737 = vmatpush1.bf16.msra.mxu0 0
        %738 = vmatprep.subr.bf16.mxu0 0
        %739 = vmatpush1.bf16.msra.mxu0 0
        %740 = vmatprep.subr.bf16.mxu0 0
        %741 = vmatpush1.bf16.msra.mxu0 0
        %742 = vmatprep.subr.bf16.mxu0 0
        %743 = vmatpush1.bf16.msra.mxu0 0
        %744 = vmatprep.subr.bf16.mxu0 0
        %745 = vmatpush1.bf16.msra.mxu0 0
        %746 = vmatprep.subr.bf16.mxu0 0
        %747 = vmatpush1.bf16.msra.mxu0 0
        %748 = vmatprep.subr.bf16.mxu0 0
        %749 = vmatpush1.bf16.msra.mxu0 0
        %750 = vmatprep.subr.bf16.mxu0 0
        %751 = vmatpush1.bf16.msra.mxu0 0
        %752 = vmatprep.subr.bf16.mxu0 0
        %753 = vmatpush1.bf16.msra.mxu0 0
        %754 = vmatprep.mubr.bf16.mxu0 0
        %755 = vmatmul.mubr.bf16.gmra.mrb[0].mxu0 %v720
        %v756 = vpop.f32.mrb[0].mxu0
        %v757 = vadd.f32 0.0, %v756
        %v758 = vpop.f32.mrb[0].mxu0
        %v759 = vpop.f32.mrb[0].mxu0
        %v760 = vadd.f32 0.0, %v759
        %v761 = vpop.f32.mrb[0].mxu0
        %762 = vdwg.mxu0
        %v767 = vunpack.c.l.b16 %v644
        %v768 = vunpack.c.l.b16 %v645
        %v769 = vunpack.c.l.b16 %v646
        %v770 = vunpack.c.l.b16 %v647
        %v771 = vpack.c.b16 %v768, %v767
        %v772 = vpack.c.b16 %v770, %v769
        %v776 = vsel %vm718, %v643, 0
        %778 = vmatprep.subr.bf16.mxu0 0
        %779 = vmatpush1.bf16.msra.mxu0 %v771
        %780 = vmatprep.subr.bf16.mxu0 0
        %781 = vmatpush1.bf16.msra.mxu0 %v772
        %782 = vmatprep.subr.bf16.mxu0 0
        %783 = vmatpush1.bf16.msra.mxu0 0
        %784 = vmatprep.subr.bf16.mxu0 0
        %785 = vmatpush1.bf16.msra.mxu0 0
        %786 = vmatprep.subr.bf16.mxu0 0
        %787 = vmatpush1.bf16.msra.mxu0 0
        %788 = vmatprep.subr.bf16.mxu0 0
        %789 = vmatpush1.bf16.msra.mxu0 0
        %790 = vmatprep.subr.bf16.mxu0 0
        %791 = vmatpush1.bf16.msra.mxu0 0
        %792 = vmatprep.subr.bf16.mxu0 0
        %793 = vmatpush1.bf16.msra.mxu0 0
        %794 = vmatprep.subr.bf16.mxu0 0
        %795 = vmatpush1.bf16.msra.mxu0 0
        %796 = vmatprep.subr.bf16.mxu0 0
        %797 = vmatpush1.bf16.msra.mxu0 0
        %798 = vmatprep.subr.bf16.mxu0 0
        %799 = vmatpush1.bf16.msra.mxu0 0
        %800 = vmatprep.subr.bf16.mxu0 0
        %801 = vmatpush1.bf16.msra.mxu0 0
        %802 = vmatprep.subr.bf16.mxu0 0
        %803 = vmatpush1.bf16.msra.mxu0 0
        %804 = vmatprep.subr.bf16.mxu0 0
        %805 = vmatpush1.bf16.msra.mxu0 0
        %806 = vmatprep.subr.bf16.mxu0 0
        %807 = vmatpush1.bf16.msra.mxu0 0
        %808 = vmatprep.subr.bf16.mxu0 0
        %809 = vmatpush1.bf16.msra.mxu0 0
        %810 = vmatprep.mubr.bf16.mxu0 0
        %811 = vmatmul.mubr.bf16.gmra.mrb[0].mxu0 %v776
        %v812 = vpop.f32.mrb[0].mxu0
        %v813 = vadd.f32 %v757, %v812
        %v814 = vpop.f32.mrb[0].mxu0
        %v815 = vpop.f32.mrb[0].mxu0
        %v816 = vadd.f32 %v760, %v815
        %v817 = vpop.f32.mrb[0].mxu0
        %818 = vdwg.mxu0
        %s819 = scalar_lea.vmem %s3, 16
        %v820 = vld [vmem:[%s819] sm:$0xf]
        %v821 = vld [vmem:[%s819 + $0x4] sm:$0x1]
        %v824 = vunpack.c.l.b16 %v820
        %v825 = vunpack.c.l.b16 %v821
        %v826 = vpack.c.b16 %v825, %v824
        %v828 = vsel %vm598, %v826, 0
        %830 = vmatprep.subr.bf16.mxu0 0
        %831 = vmatpush1.bf16.msra.mxu0 %v587
        %832 = vmatprep.subr.bf16.mxu0 0
        %833 = vmatpush1.bf16.msra.mxu0 %v588
        %834 = vmatprep.subr.bf16.mxu0 0
        %835 = vmatpush1.bf16.msra.mxu0 %v589
        %836 = vmatprep.subr.bf16.mxu0 0
        %837 = vmatpush1.bf16.msra.mxu0 %v590
        %838 = vmatprep.subr.bf16.mxu0 0
        %839 = vmatpush1.bf16.msra.mxu0 0
        %840 = vmatprep.subr.bf16.mxu0 0
        %841 = vmatpush1.bf16.msra.mxu0 0
        %842 = vmatprep.subr.bf16.mxu0 0
        %843 = vmatpush1.bf16.msra.mxu0 0
        %844 = vmatprep.subr.bf16.mxu0 0
        %845 = vmatpush1.bf16.msra.mxu0 0
        %846 = vmatprep.subr.bf16.mxu0 0
        %847 = vmatpush1.bf16.msra.mxu0 0
        %848 = vmatprep.subr.bf16.mxu0 0
        %849 = vmatpush1.bf16.msra.mxu0 0
        %850 = vmatprep.subr.bf16.mxu0 0
        %851 = vmatpush1.bf16.msra.mxu0 0
        %852 = vmatprep.subr.bf16.mxu0 0
        %853 = vmatpush1.bf16.msra.mxu0 0
        %854 = vmatprep.subr.bf16.mxu0 0
        %855 = vmatpush1.bf16.msra.mxu0 0
        %856 = vmatprep.subr.bf16.mxu0 0
        %857 = vmatpush1.bf16.msra.mxu0 0
        %858 = vmatprep.subr.bf16.mxu0 0
        %859 = vmatpush1.bf16.msra.mxu0 0
        %860 = vmatprep.subr.bf16.mxu0 0
        %861 = vmatpush1.bf16.msra.mxu0 0
        %862 = vmatprep.mubr.bf16.mxu0 0
        %863 = vmatmul.mubr.bf16.gmra.mrb[0].mxu0 %v828
        %v864 = vpop.f32.mrb[0].mxu0
        %v865 = vadd.f32 0.0, %v864
        %v866 = vpop.f32.mrb[0].mxu0
        %v867 = vpop.f32.mrb[0].mxu0
        %v868 = vadd.f32 0.0, %v867
        %v869 = vpop.f32.mrb[0].mxu0
        %870 = vdwg.mxu0
        %v871 = vpack.c.bf16 %v868, %v865
        %s872 = scalar_lea.vmem %s4, 32
        %v873 = vld [vmem:[%s872] sm:$0xf]
        %v874 = vld [vmem:[%s872 + $0x4] sm:$0xf]
        %v875 = vld [vmem:[%s872 + $0x8] sm:$0xf]
        %v876 = vld [vmem:[%s872 + $0xc] sm:$0xf]
        %v881 = vunpack.c.l.b16 %v873
        %v882 = vunpack.c.l.b16 %v874
        %v883 = vunpack.c.l.b16 %v875
        %v884 = vunpack.c.l.b16 %v876
        %v885 = vpack.c.b16 %v882, %v881
        %v886 = vpack.c.b16 %v884, %v883
        %v890 = vsel %vm718, %v871, 0
        %892 = vmatprep.subr.bf16.mxu0 0
        %893 = vmatpush1.bf16.msra.mxu0 %v885
        %894 = vmatprep.subr.bf16.mxu0 0
        %895 = vmatpush1.bf16.msra.mxu0 %v886
        %896 = vmatprep.subr.bf16.mxu0 0
        %897 = vmatpush1.bf16.msra.mxu0 0
        %898 = vmatprep.subr.bf16.mxu0 0
        %899 = vmatpush1.bf16.msra.mxu0 0
        %900 = vmatprep.subr.bf16.mxu0 0
        %901 = vmatpush1.bf16.msra.mxu0 0
        %902 = vmatprep.subr.bf16.mxu0 0
        %903 = vmatpush1.bf16.msra.mxu0 0
        %904 = vmatprep.subr.bf16.mxu0 0
        %905 = vmatpush1.bf16.msra.mxu0 0
        %906 = vmatprep.subr.bf16.mxu0 0
        %907 = vmatpush1.bf16.msra.mxu0 0
        %908 = vmatprep.subr.bf16.mxu0 0
        %909 = vmatpush1.bf16.msra.mxu0 0
        %910 = vmatprep.subr.bf16.mxu0 0
        %911 = vmatpush1.bf16.msra.mxu0 0
        %912 = vmatprep.subr.bf16.mxu0 0
        %913 = vmatpush1.bf16.msra.mxu0 0
        %914 = vmatprep.subr.bf16.mxu0 0
        %915 = vmatpush1.bf16.msra.mxu0 0
        %916 = vmatprep.subr.bf16.mxu0 0
        %917 = vmatpush1.bf16.msra.mxu0 0
        %918 = vmatprep.subr.bf16.mxu0 0
        %919 = vmatpush1.bf16.msra.mxu0 0
        %920 = vmatprep.subr.bf16.mxu0 0
        %921 = vmatpush1.bf16.msra.mxu0 0
        %922 = vmatprep.subr.bf16.mxu0 0
        %923 = vmatpush1.bf16.msra.mxu0 0
        %924 = vmatprep.mubr.bf16.mxu0 0
        %925 = vmatmul.mubr.bf16.gmra.mrb[0].mxu0 %v890
        %v926 = vpop.f32.mrb[0].mxu0
        %v927 = vadd.f32 0.0, %v926
        %v928 = vpop.f32.mrb[0].mxu0
        %v929 = vpop.f32.mrb[0].mxu0
        %v930 = vadd.f32 0.0, %v929
        %v931 = vpop.f32.mrb[0].mxu0
        %932 = vdwg.mxu0
        %v933 = vadd.f32 %v813, %v927
        %v934 = vadd.f32 %v816, %v930
        %s935 = scalar_lea.vmem %s3, 24
        %v936 = vld [vmem:[%s935] sm:$0xf]
        %v937 = vld [vmem:[%s935 + $0x4] sm:$0x1]
        %v940 = vunpack.c.l.b16 %v936
        %v941 = vunpack.c.l.b16 %v937
        %v942 = vpack.c.b16 %v941, %v940
        %v944 = vsel %vm598, %v942, 0
        %946 = vmatprep.subr.bf16.mxu0 0
        %947 = vmatpush1.bf16.msra.mxu0 %v587
        %948 = vmatprep.subr.bf16.mxu0 0
        %949 = vmatpush1.bf16.msra.mxu0 %v588
        %950 = vmatprep.subr.bf16.mxu0 0
        %951 = vmatpush1.bf16.msra.mxu0 %v589
        %952 = vmatprep.subr.bf16.mxu0 0
        %953 = vmatpush1.bf16.msra.mxu0 %v590
        %954 = vmatprep.subr.bf16.mxu0 0
        %955 = vmatpush1.bf16.msra.mxu0 0
        %956 = vmatprep.subr.bf16.mxu0 0
        %957 = vmatpush1.bf16.msra.mxu0 0
        %958 = vmatprep.subr.bf16.mxu0 0
        %959 = vmatpush1.bf16.msra.mxu0 0
        %960 = vmatprep.subr.bf16.mxu0 0
        %961 = vmatpush1.bf16.msra.mxu0 0
        %962 = vmatprep.subr.bf16.mxu0 0
        %963 = vmatpush1.bf16.msra.mxu0 0
        %964 = vmatprep.subr.bf16.mxu0 0
        %965 = vmatpush1.bf16.msra.mxu0 0
        %966 = vmatprep.subr.bf16.mxu0 0
        %967 = vmatpush1.bf16.msra.mxu0 0
        %968 = vmatprep.subr.bf16.mxu0 0
        %969 = vmatpush1.bf16.msra.mxu0 0
        %970 = vmatprep.subr.bf16.mxu0 0
        %971 = vmatpush1.bf16.msra.mxu0 0
        %972 = vmatprep.subr.bf16.mxu0 0
        %973 = vmatpush1.bf16.msra.mxu0 0
        %974 = vmatprep.subr.bf16.mxu0 0
        %975 = vmatpush1.bf16.msra.mxu0 0
        %976 = vmatprep.subr.bf16.mxu0 0
        %977 = vmatpush1.bf16.msra.mxu0 0
        %978 = vmatprep.mubr.bf16.mxu0 0
        %979 = vmatmul.mubr.bf16.gmra.mrb[0].mxu0 %v944
        %v980 = vpop.f32.mrb[0].mxu0
        %v981 = vadd.f32 0.0, %v980
        %v982 = vpop.f32.mrb[0].mxu0
        %v983 = vpop.f32.mrb[0].mxu0
        %v984 = vadd.f32 0.0, %v983
        %v985 = vpop.f32.mrb[0].mxu0
        %986 = vdwg.mxu0
        %v987 = vpack.c.bf16 %v984, %v981
        %s988 = scalar_lea.vmem %s4, 48
        %v989 = vld [vmem:[%s988] sm:$0xf]
        %v990 = vld [vmem:[%s988 + $0x4] sm:$0xf]
        %v991 = vld [vmem:[%s988 + $0x8] sm:$0xf]
        %v992 = vld [vmem:[%s988 + $0xc] sm:$0xf]
        %v997 = vunpack.c.l.b16 %v989
        %v998 = vunpack.c.l.b16 %v990
        %v999 = vunpack.c.l.b16 %v991
        %v1000 = vunpack.c.l.b16 %v992
        %v1001 = vpack.c.b16 %v998, %v997
        %v1002 = vpack.c.b16 %v1000, %v999
        %v1006 = vsel %vm718, %v987, 0
        %1008 = vmatprep.subr.bf16.mxu0 0
        %1009 = vmatpush1.bf16.msra.mxu0 %v1001
        %1010 = vmatprep.subr.bf16.mxu0 0
        %1011 = vmatpush1.bf16.msra.mxu0 %v1002
        %1012 = vmatprep.subr.bf16.mxu0 0
        %1013 = vmatpush1.bf16.msra.mxu0 0
        %1014 = vmatprep.subr.bf16.mxu0 0
        %1015 = vmatpush1.bf16.msra.mxu0 0
        %1016 = vmatprep.subr.bf16.mxu0 0
        %1017 = vmatpush1.bf16.msra.mxu0 0
        %1018 = vmatprep.subr.bf16.mxu0 0
        %1019 = vmatpush1.bf16.msra.mxu0 0
        %1020 = vmatprep.subr.bf16.mxu0 0
        %1021 = vmatpush1.bf16.msra.mxu0 0
        %1022 = vmatprep.subr.bf16.mxu0 0
        %1023 = vmatpush1.bf16.msra.mxu0 0
        %1024 = vmatprep.subr.bf16.mxu0 0
        %1025 = vmatpush1.bf16.msra.mxu0 0
        %1026 = vmatprep.subr.bf16.mxu0 0
        %1027 = vmatpush1.bf16.msra.mxu0 0
        %1028 = vmatprep.subr.bf16.mxu0 0
        %1029 = vmatpush1.bf16.msra.mxu0 0
        %1030 = vmatprep.subr.bf16.mxu0 0
        %1031 = vmatpush1.bf16.msra.mxu0 0
        %1032 = vmatprep.subr.bf16.mxu0 0
        %1033 = vmatpush1.bf16.msra.mxu0 0
        %1034 = vmatprep.subr.bf16.mxu0 0
        %1035 = vmatpush1.bf16.msra.mxu0 0
        %1036 = vmatprep.subr.bf16.mxu0 0
        %1037 = vmatpush1.bf16.msra.mxu0 0
        %1038 = vmatprep.subr.bf16.mxu0 0
        %1039 = vmatpush1.bf16.msra.mxu0 0
        %1040 = vmatprep.mubr.bf16.mxu0 0
        %1041 = vmatmul.mubr.bf16.gmra.mrb[0].mxu0 %v1006
        %v1042 = vpop.f32.mrb[0].mxu0
        %v1043 = vadd.f32 0.0, %v1042
        %v1044 = vpop.f32.mrb[0].mxu0
        %v1045 = vpop.f32.mrb[0].mxu0
        %v1046 = vadd.f32 0.0, %v1045
        %v1047 = vpop.f32.mrb[0].mxu0
        %1048 = vdwg.mxu0
        %v1049 = vadd.f32 %v933, %v1043
        %v1050 = vadd.f32 %v934, %v1046
        %s1051 = scalar_lea.vmem %s3, 32
        %v1052 = vld [vmem:[%s1051] sm:$0xf]
        %v1053 = vld [vmem:[%s1051 + $0x4] sm:$0x1]
        %v1056 = vunpack.c.l.b16 %v1052
        %v1057 = vunpack.c.l.b16 %v1053
        %v1058 = vpack.c.b16 %v1057, %v1056
        %v1060 = vsel %vm598, %v1058, 0
        %1062 = vmatprep.subr.bf16.mxu0 0
        %1063 = vmatpush1.bf16.msra.mxu0 %v587
        %1064 = vmatprep.subr.bf16.mxu0 0
        %1065 = vmatpush1.bf16.msra.mxu0 %v588
        %1066 = vmatprep.subr.bf16.mxu0 0
        %1067 = vmatpush1.bf16.msra.mxu0 %v589
        %1068 = vmatprep.subr.bf16.mxu0 0
        %1069 = vmatpush1.bf16.msra.mxu0 %v590
        %1070 = vmatprep.subr.bf16.mxu0 0
        %1071 = vmatpush1.bf16.msra.mxu0 0
        %1072 = vmatprep.subr.bf16.mxu0 0
        %1073 = vmatpush1.bf16.msra.mxu0 0
        %1074 = vmatprep.subr.bf16.mxu0 0
        %1075 = vmatpush1.bf16.msra.mxu0 0
        %1076 = vmatprep.subr.bf16.mxu0 0
        %1077 = vmatpush1.bf16.msra.mxu0 0
        %1078 = vmatprep.subr.bf16.mxu0 0
        %1079 = vmatpush1.bf16.msra.mxu0 0
        %1080 = vmatprep.subr.bf16.mxu0 0
        %1081 = vmatpush1.bf16.msra.mxu0 0
        %1082 = vmatprep.subr.bf16.mxu0 0
        %1083 = vmatpush1.bf16.msra.mxu0 0
        %1084 = vmatprep.subr.bf16.mxu0 0
        %1085 = vmatpush1.bf16.msra.mxu0 0
        %1086 = vmatprep.subr.bf16.mxu0 0
        %1087 = vmatpush1.bf16.msra.mxu0 0
        %1088 = vmatprep.subr.bf16.mxu0 0
        %1089 = vmatpush1.bf16.msra.mxu0 0
        %1090 = vmatprep.subr.bf16.mxu0 0
        %1091 = vmatpush1.bf16.msra.mxu0 0
        %1092 = vmatprep.subr.bf16.mxu0 0
        %1093 = vmatpush1.bf16.msra.mxu0 0
        %1094 = vmatprep.mubr.bf16.mxu0 0
        %1095 = vmatmul.mubr.bf16.gmra.mrb[0].mxu0 %v1060
        %v1096 = vpop.f32.mrb[0].mxu0
        %v1097 = vadd.f32 0.0, %v1096
        %v1098 = vpop.f32.mrb[0].mxu0
        %v1099 = vpop.f32.mrb[0].mxu0
        %v1100 = vadd.f32 0.0, %v1099
        %v1101 = vpop.f32.mrb[0].mxu0
        %1102 = vdwg.mxu0
        %v1103 = vpack.c.bf16 %v1100, %v1097
        %s1104 = scalar_lea.vmem %s4, 64
        %v1105 = vld [vmem:[%s1104] sm:$0xf]
        %v1106 = vld [vmem:[%s1104 + $0x4] sm:$0xf]
        %v1107 = vld [vmem:[%s1104 + $0x8] sm:$0xf]
        %v1108 = vld [vmem:[%s1104 + $0xc] sm:$0xf]
        %v1113 = vunpack.c.l.b16 %v1105
        %v1114 = vunpack.c.l.b16 %v1106
        %v1115 = vunpack.c.l.b16 %v1107
        %v1116 = vunpack.c.l.b16 %v1108
        %v1117 = vpack.c.b16 %v1114, %v1113
        %v1118 = vpack.c.b16 %v1116, %v1115
        %v1122 = vsel %vm718, %v1103, 0
        %1124 = vmatprep.subr.bf16.mxu0 0
        %1125 = vmatpush1.bf16.msra.mxu0 %v1117
        %1126 = vmatprep.subr.bf16.mxu0 0
        %1127 = vmatpush1.bf16.msra.mxu0 %v1118
        %1128 = vmatprep.subr.bf16.mxu0 0
        %1129 = vmatpush1.bf16.msra.mxu0 0
        %1130 = vmatprep.subr.bf16.mxu0 0
        %1131 = vmatpush1.bf16.msra.mxu0 0
        %1132 = vmatprep.subr.bf16.mxu0 0
        %1133 = vmatpush1.bf16.msra.mxu0 0
        %1134 = vmatprep.subr.bf16.mxu0 0
        %1135 = vmatpush1.bf16.msra.mxu0 0
        %1136 = vmatprep.subr.bf16.mxu0 0
        %1137 = vmatpush1.bf16.msra.mxu0 0
        %1138 = vmatprep.subr.bf16.mxu0 0
        %1139 = vmatpush1.bf16.msra.mxu0 0
        %1140 = vmatprep.subr.bf16.mxu0 0
        %1141 = vmatpush1.bf16.msra.mxu0 0
        %1142 = vmatprep.subr.bf16.mxu0 0
        %1143 = vmatpush1.bf16.msra.mxu0 0
        %1144 = vmatprep.subr.bf16.mxu0 0
        %1145 = vmatpush1.bf16.msra.mxu0 0
        %1146 = vmatprep.subr.bf16.mxu0 0
        %1147 = vmatpush1.bf16.msra.mxu0 0
        %1148 = vmatprep.subr.bf16.mxu0 0
        %1149 = vmatpush1.bf16.msra.mxu0 0
        %1150 = vmatprep.subr.bf16.mxu0 0
        %1151 = vmatpush1.bf16.msra.mxu0 0
        %1152 = vmatprep.subr.bf16.mxu0 0
        %1153 = vmatpush1.bf16.msra.mxu0 0
        %1154 = vmatprep.subr.bf16.mxu0 0
        %1155 = vmatpush1.bf16.msra.mxu0 0
        %1156 = vmatprep.mubr.bf16.mxu0 0
        %1157 = vmatmul.mubr.bf16.gmra.mrb[0].mxu0 %v1122
        %v1158 = vpop.f32.mrb[0].mxu0
        %v1159 = vadd.f32 0.0, %v1158
        %v1160 = vpop.f32.mrb[0].mxu0
        %v1161 = vpop.f32.mrb[0].mxu0
        %v1162 = vadd.f32 0.0, %v1161
        %v1163 = vpop.f32.mrb[0].mxu0
        %1164 = vdwg.mxu0
        %v1165 = vadd.f32 %v1049, %v1159
        %v1166 = vadd.f32 %v1050, %v1162
        %s1167 = scalar_lea.vmem %s3, 40
        %v1168 = vld [vmem:[%s1167] sm:$0xf]
        %v1169 = vld [vmem:[%s1167 + $0x4] sm:$0x1]
        %v1172 = vunpack.c.l.b16 %v1168
        %v1173 = vunpack.c.l.b16 %v1169
        %v1174 = vpack.c.b16 %v1173, %v1172
        %v1176 = vsel %vm598, %v1174, 0
        %1178 = vmatprep.subr.bf16.mxu0 0
        %1179 = vmatpush1.bf16.msra.mxu0 %v587
        %1180 = vmatprep.subr.bf16.mxu0 0
        %1181 = vmatpush1.bf16.msra.mxu0 %v588
        %1182 = vmatprep.subr.bf16.mxu0 0
        %1183 = vmatpush1.bf16.msra.mxu0 %v589
        %1184 = vmatprep.subr.bf16.mxu0 0
        %1185 = vmatpush1.bf16.msra.mxu0 %v590
        %1186 = vmatprep.subr.bf16.mxu0 0
        %1187 = vmatpush1.bf16.msra.mxu0 0
        %1188 = vmatprep.subr.bf16.mxu0 0
        %1189 = vmatpush1.bf16.msra.mxu0 0
        %1190 = vmatprep.subr.bf16.mxu0 0
        %1191 = vmatpush1.bf16.msra.mxu0 0
        %1192 = vmatprep.subr.bf16.mxu0 0
        %1193 = vmatpush1.bf16.msra.mxu0 0
        %1194 = vmatprep.subr.bf16.mxu0 0
        %1195 = vmatpush1.bf16.msra.mxu0 0
        %1196 = vmatprep.subr.bf16.mxu0 0
        %1197 = vmatpush1.bf16.msra.mxu0 0
        %1198 = vmatprep.subr.bf16.mxu0 0
        %1199 = vmatpush1.bf16.msra.mxu0 0
        %1200 = vmatprep.subr.bf16.mxu0 0
        %1201 = vmatpush1.bf16.msra.mxu0 0
        %1202 = vmatprep.subr.bf16.mxu0 0
        %1203 = vmatpush1.bf16.msra.mxu0 0
        %1204 = vmatprep.subr.bf16.mxu0 0
        %1205 = vmatpush1.bf16.msra.mxu0 0
        %1206 = vmatprep.subr.bf16.mxu0 0
        %1207 = vmatpush1.bf16.msra.mxu0 0
        %1208 = vmatprep.subr.bf16.mxu0 0
        %1209 = vmatpush1.bf16.msra.mxu0 0
        %1210 = vmatprep.mubr.bf16.mxu0 0
        %1211 = vmatmul.mubr.bf16.gmra.mrb[0].mxu0 %v1176
        %v1212 = vpop.f32.mrb[0].mxu0
        %v1213 = vadd.f32 0.0, %v1212
        %v1214 = vpop.f32.mrb[0].mxu0
        %v1215 = vpop.f32.mrb[0].mxu0
        %v1216 = vadd.f32 0.0, %v1215
        %v1217 = vpop.f32.mrb[0].mxu0
        %1218 = vdwg.mxu0
        %v1219 = vpack.c.bf16 %v1216, %v1213
        %s1220 = scalar_lea.vmem %s4, 80
        %v1221 = vld [vmem:[%s1220] sm:$0xf]
        %v1222 = vld [vmem:[%s1220 + $0x4] sm:$0xf]
        %v1223 = vld [vmem:[%s1220 + $0x8] sm:$0xf]
        %v1224 = vld [vmem:[%s1220 + $0xc] sm:$0xf]
        %v1229 = vunpack.c.l.b16 %v1221
        %v1230 = vunpack.c.l.b16 %v1222
        %v1231 = vunpack.c.l.b16 %v1223
        %v1232 = vunpack.c.l.b16 %v1224
        %v1233 = vpack.c.b16 %v1230, %v1229
        %v1234 = vpack.c.b16 %v1232, %v1231
        %v1238 = vsel %vm718, %v1219, 0
        %1240 = vmatprep.subr.bf16.mxu0 0
        %1241 = vmatpush1.bf16.msra.mxu0 %v1233
        %1242 = vmatprep.subr.bf16.mxu0 0
        %1243 = vmatpush1.bf16.msra.mxu0 %v1234
        %1244 = vmatprep.subr.bf16.mxu0 0
        %1245 = vmatpush1.bf16.msra.mxu0 0
        %1246 = vmatprep.subr.bf16.mxu0 0
        %1247 = vmatpush1.bf16.msra.mxu0 0
        %1248 = vmatprep.subr.bf16.mxu0 0
        %1249 = vmatpush1.bf16.msra.mxu0 0
        %1250 = vmatprep.subr.bf16.mxu0 0
        %1251 = vmatpush1.bf16.msra.mxu0 0
        %1252 = vmatprep.subr.bf16.mxu0 0
        %1253 = vmatpush1.bf16.msra.mxu0 0
        %1254 = vmatprep.subr.bf16.mxu0 0
        %1255 = vmatpush1.bf16.msra.mxu0 0
        %1256 = vmatprep.subr.bf16.mxu0 0
        %1257 = vmatpush1.bf16.msra.mxu0 0
        %1258 = vmatprep.subr.bf16.mxu0 0
        %1259 = vmatpush1.bf16.msra.mxu0 0
        %1260 = vmatprep.subr.bf16.mxu0 0
        %1261 = vmatpush1.bf16.msra.mxu0 0
        %1262 = vmatprep.subr.bf16.mxu0 0
        %1263 = vmatpush1.bf16.msra.mxu0 0
        %1264 = vmatprep.subr.bf16.mxu0 0
        %1265 = vmatpush1.bf16.msra.mxu0 0
        %1266 = vmatprep.subr.bf16.mxu0 0
        %1267 = vmatpush1.bf16.msra.mxu0 0
        %1268 = vmatprep.subr.bf16.mxu0 0
        %1269 = vmatpush1.bf16.msra.mxu0 0
        %1270 = vmatprep.subr.bf16.mxu0 0
        %1271 = vmatpush1.bf16.msra.mxu0 0
        %1272 = vmatprep.mubr.bf16.mxu0 0
        %1273 = vmatmul.mubr.bf16.gmra.mrb[0].mxu0 %v1238
        %v1274 = vpop.f32.mrb[0].mxu0
        %v1275 = vadd.f32 0.0, %v1274
        %v1276 = vpop.f32.mrb[0].mxu0
        %v1277 = vpop.f32.mrb[0].mxu0
        %v1278 = vadd.f32 0.0, %v1277
        %v1279 = vpop.f32.mrb[0].mxu0
        %1280 = vdwg.mxu0
        %v1281 = vadd.f32 %v1165, %v1275
        %v1282 = vadd.f32 %v1166, %v1278
        %s1283 = scalar_lea.vmem %s3, 48
        %v1284 = vld [vmem:[%s1283] sm:$0xf]
        %v1285 = vld [vmem:[%s1283 + $0x4] sm:$0x1]
        %v1288 = vunpack.c.l.b16 %v1284
        %v1289 = vunpack.c.l.b16 %v1285
        %v1290 = vpack.c.b16 %v1289, %v1288
        %v1292 = vsel %vm598, %v1290, 0
        %1294 = vmatprep.subr.bf16.mxu0 0
        %1295 = vmatpush1.bf16.msra.mxu0 %v587
        %1296 = vmatprep.subr.bf16.mxu0 0
        %1297 = vmatpush1.bf16.msra.mxu0 %v588
        %1298 = vmatprep.subr.bf16.mxu0 0
        %1299 = vmatpush1.bf16.msra.mxu0 %v589
        %1300 = vmatprep.subr.bf16.mxu0 0
        %1301 = vmatpush1.bf16.msra.mxu0 %v590
        %1302 = vmatprep.subr.bf16.mxu0 0
        %1303 = vmatpush1.bf16.msra.mxu0 0
        %1304 = vmatprep.subr.bf16.mxu0 0
        %1305 = vmatpush1.bf16.msra.mxu0 0
        %1306 = vmatprep.subr.bf16.mxu0 0
        %1307 = vmatpush1.bf16.msra.mxu0 0
        %1308 = vmatprep.subr.bf16.mxu0 0
        %1309 = vmatpush1.bf16.msra.mxu0 0
        %1310 = vmatprep.subr.bf16.mxu0 0
        %1311 = vmatpush1.bf16.msra.mxu0 0
        %1312 = vmatprep.subr.bf16.mxu0 0
        %1313 = vmatpush1.bf16.msra.mxu0 0
        %1314 = vmatprep.subr.bf16.mxu0 0
        %1315 = vmatpush1.bf16.msra.mxu0 0
        %1316 = vmatprep.subr.bf16.mxu0 0
        %1317 = vmatpush1.bf16.msra.mxu0 0
        %1318 = vmatprep.subr.bf16.mxu0 0
        %1319 = vmatpush1.bf16.msra.mxu0 0
        %1320 = vmatprep.subr.bf16.mxu0 0
        %1321 = vmatpush1.bf16.msra.mxu0 0
        %1322 = vmatprep.subr.bf16.mxu0 0
        %1323 = vmatpush1.bf16.msra.mxu0 0
        %1324 = vmatprep.subr.bf16.mxu0 0
        %1325 = vmatpush1.bf16.msra.mxu0 0
        %1326 = vmatprep.mubr.bf16.mxu0 0
        %1327 = vmatmul.mubr.bf16.gmra.mrb[0].mxu0 %v1292
        %v1328 = vpop.f32.mrb[0].mxu0
        %v1329 = vadd.f32 0.0, %v1328
        %v1330 = vpop.f32.mrb[0].mxu0
        %v1331 = vpop.f32.mrb[0].mxu0
        %v1332 = vadd.f32 0.0, %v1331
        %v1333 = vpop.f32.mrb[0].mxu0
        %1334 = vdwg.mxu0
        %v1335 = vpack.c.bf16 %v1332, %v1329
        %s1336 = scalar_lea.vmem %s4, 96
        %v1337 = vld [vmem:[%s1336] sm:$0xf]
        %v1338 = vld [vmem:[%s1336 + $0x4] sm:$0xf]
        %v1339 = vld [vmem:[%s1336 + $0x8] sm:$0xf]
        %v1340 = vld [vmem:[%s1336 + $0xc] sm:$0xf]
        %v1345 = vunpack.c.l.b16 %v1337
        %v1346 = vunpack.c.l.b16 %v1338
        %v1347 = vunpack.c.l.b16 %v1339
        %v1348 = vunpack.c.l.b16 %v1340
        %v1349 = vpack.c.b16 %v1346, %v1345
        %v1350 = vpack.c.b16 %v1348, %v1347
        %v1354 = vsel %vm718, %v1335, 0
        %1356 = vmatprep.subr.bf16.mxu0 0
        %1357 = vmatpush1.bf16.msra.mxu0 %v1349
        %1358 = vmatprep.subr.bf16.mxu0 0
        %1359 = vmatpush1.bf16.msra.mxu0 %v1350
        %1360 = vmatprep.subr.bf16.mxu0 0
        %1361 = vmatpush1.bf16.msra.mxu0 0
        %1362 = vmatprep.subr.bf16.mxu0 0
        %1363 = vmatpush1.bf16.msra.mxu0 0
        %1364 = vmatprep.subr.bf16.mxu0 0
        %1365 = vmatpush1.bf16.msra.mxu0 0
        %1366 = vmatprep.subr.bf16.mxu0 0
        %1367 = vmatpush1.bf16.msra.mxu0 0
        %1368 = vmatprep.subr.bf16.mxu0 0
        %1369 = vmatpush1.bf16.msra.mxu0 0
        %1370 = vmatprep.subr.bf16.mxu0 0
        %1371 = vmatpush1.bf16.msra.mxu0 0
        %1372 = vmatprep.subr.bf16.mxu0 0
        %1373 = vmatpush1.bf16.msra.mxu0 0
        %1374 = vmatprep.subr.bf16.mxu0 0
        %1375 = vmatpush1.bf16.msra.mxu0 0
        %1376 = vmatprep.subr.bf16.mxu0 0
        %1377 = vmatpush1.bf16.msra.mxu0 0
        %1378 = vmatprep.subr.bf16.mxu0 0
        %1379 = vmatpush1.bf16.msra.mxu0 0
        %1380 = vmatprep.subr.bf16.mxu0 0
        %1381 = vmatpush1.bf16.msra.mxu0 0
        %1382 = vmatprep.subr.bf16.mxu0 0
        %1383 = vmatpush1.bf16.msra.mxu0 0
        %1384 = vmatprep.subr.bf16.mxu0 0
        %1385 = vmatpush1.bf16.msra.mxu0 0
        %1386 = vmatprep.subr.bf16.mxu0 0
        %1387 = vmatpush1.bf16.msra.mxu0 0
        %1388 = vmatprep.mubr.bf16.mxu0 0
        %1389 = vmatmul.mubr.bf16.gmra.mrb[0].mxu0 %v1354
        %v1390 = vpop.f32.mrb[0].mxu0
        %v1391 = vadd.f32 0.0, %v1390
        %v1392 = vpop.f32.mrb[0].mxu0
        %v1393 = vpop.f32.mrb[0].mxu0
        %v1394 = vadd.f32 0.0, %v1393
        %v1395 = vpop.f32.mrb[0].mxu0
        %1396 = vdwg.mxu0
        %v1397 = vadd.f32 %v1281, %v1391
        %v1398 = vadd.f32 %v1282, %v1394
        %s1399 = scalar_lea.vmem %s3, 56
        %v1400 = vld [vmem:[%s1399] sm:$0xf]
        %v1401 = vld [vmem:[%s1399 + $0x4] sm:$0x1]
        %v1404 = vunpack.c.l.b16 %v1400
        %v1405 = vunpack.c.l.b16 %v1401
        %v1406 = vpack.c.b16 %v1405, %v1404
        %v1408 = vsel %vm598, %v1406, 0
        %1410 = vmatprep.subr.bf16.mxu0 0
        %1411 = vmatpush1.bf16.msra.mxu0 %v587
        %1412 = vmatprep.subr.bf16.mxu0 0
        %1413 = vmatpush1.bf16.msra.mxu0 %v588
        %1414 = vmatprep.subr.bf16.mxu0 0
        %1415 = vmatpush1.bf16.msra.mxu0 %v589
        %1416 = vmatprep.subr.bf16.mxu0 0
        %1417 = vmatpush1.bf16.msra.mxu0 %v590
        %1418 = vmatprep.subr.bf16.mxu0 0
        %1419 = vmatpush1.bf16.msra.mxu0 0
        %1420 = vmatprep.subr.bf16.mxu0 0
        %1421 = vmatpush1.bf16.msra.mxu0 0
        %1422 = vmatprep.subr.bf16.mxu0 0
        %1423 = vmatpush1.bf16.msra.mxu0 0
        %1424 = vmatprep.subr.bf16.mxu0 0
        %1425 = vmatpush1.bf16.msra.mxu0 0
        %1426 = vmatprep.subr.bf16.mxu0 0
        %1427 = vmatpush1.bf16.msra.mxu0 0
        %1428 = vmatprep.subr.bf16.mxu0 0
        %1429 = vmatpush1.bf16.msra.mxu0 0
        %1430 = vmatprep.subr.bf16.mxu0 0
        %1431 = vmatpush1.bf16.msra.mxu0 0
        %1432 = vmatprep.subr.bf16.mxu0 0
        %1433 = vmatpush1.bf16.msra.mxu0 0
        %1434 = vmatprep.subr.bf16.mxu0 0
        %1435 = vmatpush1.bf16.msra.mxu0 0
        %1436 = vmatprep.subr.bf16.mxu0 0
        %1437 = vmatpush1.bf16.msra.mxu0 0
        %1438 = vmatprep.subr.bf16.mxu0 0
        %1439 = vmatpush1.bf16.msra.mxu0 0
        %1440 = vmatprep.subr.bf16.mxu0 0
        %1441 = vmatpush1.bf16.msra.mxu0 0
        %1442 = vmatprep.mubr.bf16.mxu0 0
        %1443 = vmatmul.mubr.bf16.gmra.mrb[0].mxu0 %v1408
        %v1444 = vpop.f32.mrb[0].mxu0
        %v1445 = vadd.f32 0.0, %v1444
        %v1446 = vpop.f32.mrb[0].mxu0
        %v1447 = vpop.f32.mrb[0].mxu0
        %v1448 = vadd.f32 0.0, %v1447
        %v1449 = vpop.f32.mrb[0].mxu0
        %1450 = vdwg.mxu0
        %v1451 = vpack.c.bf16 %v1448, %v1445
        %s1452 = scalar_lea.vmem %s4, 112
        %v1453 = vld [vmem:[%s1452] sm:$0xf]
        %v1454 = vld [vmem:[%s1452 + $0x4] sm:$0xf]
        %v1455 = vld [vmem:[%s1452 + $0x8] sm:$0xf]
        %v1456 = vld [vmem:[%s1452 + $0xc] sm:$0xf]
        %v1461 = vunpack.c.l.b16 %v1453
        %v1462 = vunpack.c.l.b16 %v1454
        %v1463 = vunpack.c.l.b16 %v1455
        %v1464 = vunpack.c.l.b16 %v1456
        %v1465 = vpack.c.b16 %v1462, %v1461
        %v1466 = vpack.c.b16 %v1464, %v1463
        %v1470 = vsel %vm718, %v1451, 0
        %1472 = vmatprep.subr.bf16.mxu0 0
        %1473 = vmatpush1.bf16.msra.mxu0 %v1465
        %1474 = vmatprep.subr.bf16.mxu0 0
        %1475 = vmatpush1.bf16.msra.mxu0 %v1466
        %1476 = vmatprep.subr.bf16.mxu0 0
        %1477 = vmatpush1.bf16.msra.mxu0 0
        %1478 = vmatprep.subr.bf16.mxu0 0
        %1479 = vmatpush1.bf16.msra.mxu0 0
        %1480 = vmatprep.subr.bf16.mxu0 0
        %1481 = vmatpush1.bf16.msra.mxu0 0
        %1482 = vmatprep.subr.bf16.mxu0 0
        %1483 = vmatpush1.bf16.msra.mxu0 0
        %1484 = vmatprep.subr.bf16.mxu0 0
        %1485 = vmatpush1.bf16.msra.mxu0 0
        %1486 = vmatprep.subr.bf16.mxu0 0
        %1487 = vmatpush1.bf16.msra.mxu0 0
        %1488 = vmatprep.subr.bf16.mxu0 0
        %1489 = vmatpush1.bf16.msra.mxu0 0
        %1490 = vmatprep.subr.bf16.mxu0 0
        %1491 = vmatpush1.bf16.msra.mxu0 0
        %1492 = vmatprep.subr.bf16.mxu0 0
        %1493 = vmatpush1.bf16.msra.mxu0 0
        %1494 = vmatprep.subr.bf16.mxu0 0
        %1495 = vmatpush1.bf16.msra.mxu0 0
        %1496 = vmatprep.subr.bf16.mxu0 0
        %1497 = vmatpush1.bf16.msra.mxu0 0
        %1498 = vmatprep.subr.bf16.mxu0 0
        %1499 = vmatpush1.bf16.msra.mxu0 0
        %1500 = vmatprep.subr.bf16.mxu0 0
        %1501 = vmatpush1.bf16.msra.mxu0 0
        %1502 = vmatprep.subr.bf16.mxu0 0
        %1503 = vmatpush1.bf16.msra.mxu0 0
        %1504 = vmatprep.mubr.bf16.mxu0 0
        %1505 = vmatmul.mubr.bf16.gmra.mrb[0].mxu0 %v1470
        %v1506 = vpop.f32.mrb[0].mxu0
        %v1507 = vadd.f32 0.0, %v1506
        %v1508 = vpop.f32.mrb[0].mxu0
        %v1509 = vpop.f32.mrb[0].mxu0
        %v1510 = vadd.f32 0.0, %v1509
        %v1511 = vpop.f32.mrb[0].mxu0
        %1512 = vdwg.mxu0
        %v1513 = vadd.f32 %v1397, %v1507
        %v1514 = vadd.f32 %v1398, %v1510
        %s1515 = scalar_lea.vmem %s3, 64
        %v1516 = vld [vmem:[%s1515] sm:$0xf]
        %v1517 = vld [vmem:[%s1515 + $0x4] sm:$0x1]
        %v1520 = vunpack.c.l.b16 %v1516
        %v1521 = vunpack.c.l.b16 %v1517
        %v1522 = vpack.c.b16 %v1521, %v1520
        %v1524 = vsel %vm598, %v1522, 0
        %1526 = vmatprep.subr.bf16.mxu0 0
        %1527 = vmatpush1.bf16.msra.mxu0 %v587
        %1528 = vmatprep.subr.bf16.mxu0 0
        %1529 = vmatpush1.bf16.msra.mxu0 %v588
        %1530 = vmatprep.subr.bf16.mxu0 0
        %1531 = vmatpush1.bf16.msra.mxu0 %v589
        %1532 = vmatprep.subr.bf16.mxu0 0
        %1533 = vmatpush1.bf16.msra.mxu0 %v590
        %1534 = vmatprep.subr.bf16.mxu0 0
        %1535 = vmatpush1.bf16.msra.mxu0 0
        %1536 = vmatprep.subr.bf16.mxu0 0
        %1537 = vmatpush1.bf16.msra.mxu0 0
        %1538 = vmatprep.subr.bf16.mxu0 0
        %1539 = vmatpush1.bf16.msra.mxu0 0
        %1540 = vmatprep.subr.bf16.mxu0 0
        %1541 = vmatpush1.bf16.msra.mxu0 0
        %1542 = vmatprep.subr.bf16.mxu0 0
        %1543 = vmatpush1.bf16.msra.mxu0 0
        %1544 = vmatprep.subr.bf16.mxu0 0
        %1545 = vmatpush1.bf16.msra.mxu0 0
        %1546 = vmatprep.subr.bf16.mxu0 0
        %1547 = vmatpush1.bf16.msra.mxu0 0
        %1548 = vmatprep.subr.bf16.mxu0 0
        %1549 = vmatpush1.bf16.msra.mxu0 0
        %1550 = vmatprep.subr.bf16.mxu0 0
        %1551 = vmatpush1.bf16.msra.mxu0 0
        %1552 = vmatprep.subr.bf16.mxu0 0
        %1553 = vmatpush1.bf16.msra.mxu0 0
        %1554 = vmatprep.subr.bf16.mxu0 0
        %1555 = vmatpush1.bf16.msra.mxu0 0
        %1556 = vmatprep.subr.bf16.mxu0 0
        %1557 = vmatpush1.bf16.msra.mxu0 0
        %1558 = vmatprep.mubr.bf16.mxu0 0
        %1559 = vmatmul.mubr.bf16.gmra.mrb[0].mxu0 %v1524
        %v1560 = vpop.f32.mrb[0].mxu0
        %v1561 = vadd.f32 0.0, %v1560
        %v1562 = vpop.f32.mrb[0].mxu0
        %v1563 = vpop.f32.mrb[0].mxu0
        %v1564 = vadd.f32 0.0, %v1563
        %v1565 = vpop.f32.mrb[0].mxu0
        %1566 = vdwg.mxu0
        %v1567 = vpack.c.bf16 %v1564, %v1561
        %s1568 = scalar_lea.vmem %s4, 128
        %v1569 = vld [vmem:[%s1568] sm:$0xf]
        %v1570 = vld [vmem:[%s1568 + $0x4] sm:$0xf]
        %v1571 = vld [vmem:[%s1568 + $0x8] sm:$0xf]
        %v1572 = vld [vmem:[%s1568 + $0xc] sm:$0xf]
        %v1577 = vunpack.c.l.b16 %v1569
        %v1578 = vunpack.c.l.b16 %v1570
        %v1579 = vunpack.c.l.b16 %v1571
        %v1580 = vunpack.c.l.b16 %v1572
        %v1581 = vpack.c.b16 %v1578, %v1577
        %v1582 = vpack.c.b16 %v1580, %v1579
        %v1586 = vsel %vm718, %v1567, 0
        %1588 = vmatprep.subr.bf16.mxu0 0
        %1589 = vmatpush1.bf16.msra.mxu0 %v1581
        %1590 = vmatprep.subr.bf16.mxu0 0
        %1591 = vmatpush1.bf16.msra.mxu0 %v1582
        %1592 = vmatprep.subr.bf16.mxu0 0
        %1593 = vmatpush1.bf16.msra.mxu0 0
        %1594 = vmatprep.subr.bf16.mxu0 0
        %1595 = vmatpush1.bf16.msra.mxu0 0
        %1596 = vmatprep.subr.bf16.mxu0 0
        %1597 = vmatpush1.bf16.msra.mxu0 0
        %1598 = vmatprep.subr.bf16.mxu0 0
        %1599 = vmatpush1.bf16.msra.mxu0 0
        %1600 = vmatprep.subr.bf16.mxu0 0
        %1601 = vmatpush1.bf16.msra.mxu0 0
        %1602 = vmatprep.subr.bf16.mxu0 0
        %1603 = vmatpush1.bf16.msra.mxu0 0
        %1604 = vmatprep.subr.bf16.mxu0 0
        %1605 = vmatpush1.bf16.msra.mxu0 0
        %1606 = vmatprep.subr.bf16.mxu0 0
        %1607 = vmatpush1.bf16.msra.mxu0 0
        %1608 = vmatprep.subr.bf16.mxu0 0
        %1609 = vmatpush1.bf16.msra.mxu0 0
        %1610 = vmatprep.subr.bf16.mxu0 0
        %1611 = vmatpush1.bf16.msra.mxu0 0
        %1612 = vmatprep.subr.bf16.mxu0 0
        %1613 = vmatpush1.bf16.msra.mxu0 0
        %1614 = vmatprep.subr.bf16.mxu0 0
        %1615 = vmatpush1.bf16.msra.mxu0 0
        %1616 = vmatprep.subr.bf16.mxu0 0
        %1617 = vmatpush1.bf16.msra.mxu0 0
        %1618 = vmatprep.subr.bf16.mxu0 0
        %1619 = vmatpush1.bf16.msra.mxu0 0
        %1620 = vmatprep.mubr.bf16.mxu0 0
        %1621 = vmatmul.mubr.bf16.gmra.mrb[0].mxu0 %v1586
        %v1622 = vpop.f32.mrb[0].mxu0
        %v1623 = vadd.f32 0.0, %v1622
        %v1624 = vpop.f32.mrb[0].mxu0
        %v1625 = vpop.f32.mrb[0].mxu0
        %v1626 = vadd.f32 0.0, %v1625
        %v1627 = vpop.f32.mrb[0].mxu0
        %1628 = vdwg.mxu0
        %v1629 = vadd.f32 %v1513, %v1623
        %v1630 = vadd.f32 %v1514, %v1626
        %s1631 = scalar_lea.vmem %s3, 72
        %v1632 = vld [vmem:[%s1631] sm:$0xf]
        %v1633 = vld [vmem:[%s1631 + $0x4] sm:$0x1]
        %v1636 = vunpack.c.l.b16 %v1632
        %v1637 = vunpack.c.l.b16 %v1633
        %v1638 = vpack.c.b16 %v1637, %v1636
        %v1640 = vsel %vm598, %v1638, 0
        %1642 = vmatprep.subr.bf16.mxu0 0
        %1643 = vmatpush1.bf16.msra.mxu0 %v587
        %1644 = vmatprep.subr.bf16.mxu0 0
        %1645 = vmatpush1.bf16.msra.mxu0 %v588
        %1646 = vmatprep.subr.bf16.mxu0 0
        %1647 = vmatpush1.bf16.msra.mxu0 %v589
        %1648 = vmatprep.subr.bf16.mxu0 0
        %1649 = vmatpush1.bf16.msra.mxu0 %v590
        %1650 = vmatprep.subr.bf16.mxu0 0
        %1651 = vmatpush1.bf16.msra.mxu0 0
        %1652 = vmatprep.subr.bf16.mxu0 0
        %1653 = vmatpush1.bf16.msra.mxu0 0
        %1654 = vmatprep.subr.bf16.mxu0 0
        %1655 = vmatpush1.bf16.msra.mxu0 0
        %1656 = vmatprep.subr.bf16.mxu0 0
        %1657 = vmatpush1.bf16.msra.mxu0 0
        %1658 = vmatprep.subr.bf16.mxu0 0
        %1659 = vmatpush1.bf16.msra.mxu0 0
        %1660 = vmatprep.subr.bf16.mxu0 0
        %1661 = vmatpush1.bf16.msra.mxu0 0
        %1662 = vmatprep.subr.bf16.mxu0 0
        %1663 = vmatpush1.bf16.msra.mxu0 0
        %1664 = vmatprep.subr.bf16.mxu0 0
        %1665 = vmatpush1.bf16.msra.mxu0 0
        %1666 = vmatprep.subr.bf16.mxu0 0
        %1667 = vmatpush1.bf16.msra.mxu0 0
        %1668 = vmatprep.subr.bf16.mxu0 0
        %1669 = vmatpush1.bf16.msra.mxu0 0
        %1670 = vmatprep.subr.bf16.mxu0 0
        %1671 = vmatpush1.bf16.msra.mxu0 0
        %1672 = vmatprep.subr.bf16.mxu0 0
        %1673 = vmatpush1.bf16.msra.mxu0 0
        %1674 = vmatprep.mubr.bf16.mxu0 0
        %1675 = vmatmul.mubr.bf16.gmra.mrb[0].mxu0 %v1640
        %v1676 = vpop.f32.mrb[0].mxu0
        %v1677 = vadd.f32 0.0, %v1676
        %v1678 = vpop.f32.mrb[0].mxu0
        %v1679 = vpop.f32.mrb[0].mxu0
        %v1680 = vadd.f32 0.0, %v1679
        %v1681 = vpop.f32.mrb[0].mxu0
        %1682 = vdwg.mxu0
        %v1683 = vpack.c.bf16 %v1680, %v1677
        %s1684 = scalar_lea.vmem %s4, 144
        %v1685 = vld [vmem:[%s1684] sm:$0xf]
        %v1686 = vld [vmem:[%s1684 + $0x4] sm:$0xf]
        %v1687 = vld [vmem:[%s1684 + $0x8] sm:$0xf]
        %v1688 = vld [vmem:[%s1684 + $0xc] sm:$0xf]
        %v1693 = vunpack.c.l.b16 %v1685
        %v1694 = vunpack.c.l.b16 %v1686
        %v1695 = vunpack.c.l.b16 %v1687
        %v1696 = vunpack.c.l.b16 %v1688
        %v1697 = vpack.c.b16 %v1694, %v1693
        %v1698 = vpack.c.b16 %v1696, %v1695
        %v1702 = vsel %vm718, %v1683, 0
        %1704 = vmatprep.subr.bf16.mxu0 0
        %1705 = vmatpush1.bf16.msra.mxu0 %v1697
        %1706 = vmatprep.subr.bf16.mxu0 0
        %1707 = vmatpush1.bf16.msra.mxu0 %v1698
        %1708 = vmatprep.subr.bf16.mxu0 0
        %1709 = vmatpush1.bf16.msra.mxu0 0
        %1710 = vmatprep.subr.bf16.mxu0 0
        %1711 = vmatpush1.bf16.msra.mxu0 0
        %1712 = vmatprep.subr.bf16.mxu0 0
        %1713 = vmatpush1.bf16.msra.mxu0 0
        %1714 = vmatprep.subr.bf16.mxu0 0
        %1715 = vmatpush1.bf16.msra.mxu0 0
        %1716 = vmatprep.subr.bf16.mxu0 0
        %1717 = vmatpush1.bf16.msra.mxu0 0
        %1718 = vmatprep.subr.bf16.mxu0 0
        %1719 = vmatpush1.bf16.msra.mxu0 0
        %1720 = vmatprep.subr.bf16.mxu0 0
        %1721 = vmatpush1.bf16.msra.mxu0 0
        %1722 = vmatprep.subr.bf16.mxu0 0
        %1723 = vmatpush1.bf16.msra.mxu0 0
        %1724 = vmatprep.subr.bf16.mxu0 0
        %1725 = vmatpush1.bf16.msra.mxu0 0
        %1726 = vmatprep.subr.bf16.mxu0 0
        %1727 = vmatpush1.bf16.msra.mxu0 0
        %1728 = vmatprep.subr.bf16.mxu0 0
        %1729 = vmatpush1.bf16.msra.mxu0 0
        %1730 = vmatprep.subr.bf16.mxu0 0
        %1731 = vmatpush1.bf16.msra.mxu0 0
        %1732 = vmatprep.subr.bf16.mxu0 0
        %1733 = vmatpush1.bf16.msra.mxu0 0
        %1734 = vmatprep.subr.bf16.mxu0 0
        %1735 = vmatpush1.bf16.msra.mxu0 0
        %1736 = vmatprep.mubr.bf16.mxu0 0
        %1737 = vmatmul.mubr.bf16.gmra.mrb[0].mxu0 %v1702
        %v1738 = vpop.f32.mrb[0].mxu0
        %v1739 = vadd.f32 0.0, %v1738
        %v1740 = vpop.f32.mrb[0].mxu0
        %v1741 = vpop.f32.mrb[0].mxu0
        %v1742 = vadd.f32 0.0, %v1741
        %v1743 = vpop.f32.mrb[0].mxu0
        %1744 = vdwg.mxu0
        %v1745 = vadd.f32 %v1629, %v1739
        %v1746 = vadd.f32 %v1630, %v1742
        %s1747 = scalar_lea.vmem %s3, 80
        %v1748 = vld [vmem:[%s1747] sm:$0xf]
        %v1749 = vld [vmem:[%s1747 + $0x4] sm:$0x1]
        %v1752 = vunpack.c.l.b16 %v1748
        %v1753 = vunpack.c.l.b16 %v1749
        %v1754 = vpack.c.b16 %v1753, %v1752
        %v1756 = vsel %vm598, %v1754, 0
        %1758 = vmatprep.subr.bf16.mxu0 0
        %1759 = vmatpush1.bf16.msra.mxu0 %v587
        %1760 = vmatprep.subr.bf16.mxu0 0
        %1761 = vmatpush1.bf16.msra.mxu0 %v588
        %1762 = vmatprep.subr.bf16.mxu0 0
        %1763 = vmatpush1.bf16.msra.mxu0 %v589
        %1764 = vmatprep.subr.bf16.mxu0 0
        %1765 = vmatpush1.bf16.msra.mxu0 %v590
        %1766 = vmatprep.subr.bf16.mxu0 0
        %1767 = vmatpush1.bf16.msra.mxu0 0
        %1768 = vmatprep.subr.bf16.mxu0 0
        %1769 = vmatpush1.bf16.msra.mxu0 0
        %1770 = vmatprep.subr.bf16.mxu0 0
        %1771 = vmatpush1.bf16.msra.mxu0 0
        %1772 = vmatprep.subr.bf16.mxu0 0
        %1773 = vmatpush1.bf16.msra.mxu0 0
        %1774 = vmatprep.subr.bf16.mxu0 0
        %1775 = vmatpush1.bf16.msra.mxu0 0
        %1776 = vmatprep.subr.bf16.mxu0 0
        %1777 = vmatpush1.bf16.msra.mxu0 0
        %1778 = vmatprep.subr.bf16.mxu0 0
        %1779 = vmatpush1.bf16.msra.mxu0 0
        %1780 = vmatprep.subr.bf16.mxu0 0
        %1781 = vmatpush1.bf16.msra.mxu0 0
        %1782 = vmatprep.subr.bf16.mxu0 0
        %1783 = vmatpush1.bf16.msra.mxu0 0
        %1784 = vmatprep.subr.bf16.mxu0 0
        %1785 = vmatpush1.bf16.msra.mxu0 0
        %1786 = vmatprep.subr.bf16.mxu0 0
        %1787 = vmatpush1.bf16.msra.mxu0 0
        %1788 = vmatprep.subr.bf16.mxu0 0
        %1789 = vmatpush1.bf16.msra.mxu0 0
        %1790 = vmatprep.mubr.bf16.mxu0 0
        %1791 = vmatmul.mubr.bf16.gmra.mrb[0].mxu0 %v1756
        %v1792 = vpop.f32.mrb[0].mxu0
        %v1793 = vadd.f32 0.0, %v1792
        %v1794 = vpop.f32.mrb[0].mxu0
        %v1795 = vpop.f32.mrb[0].mxu0
        %v1796 = vadd.f32 0.0, %v1795
        %v1797 = vpop.f32.mrb[0].mxu0
        %1798 = vdwg.mxu0
        %v1799 = vpack.c.bf16 %v1796, %v1793
        %s1800 = scalar_lea.vmem %s4, 160
        %v1801 = vld [vmem:[%s1800] sm:$0xf]
        %v1802 = vld [vmem:[%s1800 + $0x4] sm:$0xf]
        %v1803 = vld [vmem:[%s1800 + $0x8] sm:$0xf]
        %v1804 = vld [vmem:[%s1800 + $0xc] sm:$0xf]
        %v1809 = vunpack.c.l.b16 %v1801
        %v1810 = vunpack.c.l.b16 %v1802
        %v1811 = vunpack.c.l.b16 %v1803
        %v1812 = vunpack.c.l.b16 %v1804
        %v1813 = vpack.c.b16 %v1810, %v1809
        %v1814 = vpack.c.b16 %v1812, %v1811
        %v1818 = vsel %vm718, %v1799, 0
        %1820 = vmatprep.subr.bf16.mxu0 0
        %1821 = vmatpush1.bf16.msra.mxu0 %v1813
        %1822 = vmatprep.subr.bf16.mxu0 0
        %1823 = vmatpush1.bf16.msra.mxu0 %v1814
        %1824 = vmatprep.subr.bf16.mxu0 0
        %1825 = vmatpush1.bf16.msra.mxu0 0
        %1826 = vmatprep.subr.bf16.mxu0 0
        %1827 = vmatpush1.bf16.msra.mxu0 0
        %1828 = vmatprep.subr.bf16.mxu0 0
        %1829 = vmatpush1.bf16.msra.mxu0 0
        %1830 = vmatprep.subr.bf16.mxu0 0
        %1831 = vmatpush1.bf16.msra.mxu0 0
        %1832 = vmatprep.subr.bf16.mxu0 0
        %1833 = vmatpush1.bf16.msra.mxu0 0
        %1834 = vmatprep.subr.bf16.mxu0 0
        %1835 = vmatpush1.bf16.msra.mxu0 0
        %1836 = vmatprep.subr.bf16.mxu0 0
        %1837 = vmatpush1.bf16.msra.mxu0 0
        %1838 = vmatprep.subr.bf16.mxu0 0
        %1839 = vmatpush1.bf16.msra.mxu0 0
        %1840 = vmatprep.subr.bf16.mxu0 0
        %1841 = vmatpush1.bf16.msra.mxu0 0
        %1842 = vmatprep.subr.bf16.mxu0 0
        %1843 = vmatpush1.bf16.msra.mxu0 0
        %1844 = vmatprep.subr.bf16.mxu0 0
        %1845 = vmatpush1.bf16.msra.mxu0 0
        %1846 = vmatprep.subr.bf16.mxu0 0
        %1847 = vmatpush1.bf16.msra.mxu0 0
        %1848 = vmatprep.subr.bf16.mxu0 0
        %1849 = vmatpush1.bf16.msra.mxu0 0
        %1850 = vmatprep.subr.bf16.mxu0 0
        %1851 = vmatpush1.bf16.msra.mxu0 0
        %1852 = vmatprep.mubr.bf16.mxu0 0
        %1853 = vmatmul.mubr.bf16.gmra.mrb[0].mxu0 %v1818
        %v1854 = vpop.f32.mrb[0].mxu0
        %v1855 = vadd.f32 0.0, %v1854
        %v1856 = vpop.f32.mrb[0].mxu0
        %v1857 = vpop.f32.mrb[0].mxu0
        %v1858 = vadd.f32 0.0, %v1857
        %v1859 = vpop.f32.mrb[0].mxu0
        %1860 = vdwg.mxu0
        %v1861 = vadd.f32 %v1745, %v1855
        %v1862 = vadd.f32 %v1746, %v1858
        %s1863 = scalar_lea.vmem %s3, 88
        %v1864 = vld [vmem:[%s1863] sm:$0xf]
        %v1865 = vld [vmem:[%s1863 + $0x4] sm:$0x1]
        %v1868 = vunpack.c.l.b16 %v1864
        %v1869 = vunpack.c.l.b16 %v1865
        %v1870 = vpack.c.b16 %v1869, %v1868
        %v1872 = vsel %vm598, %v1870, 0
        %1874 = vmatprep.subr.bf16.mxu0 0
        %1875 = vmatpush1.bf16.msra.mxu0 %v587
        %1876 = vmatprep.subr.bf16.mxu0 0
        %1877 = vmatpush1.bf16.msra.mxu0 %v588
        %1878 = vmatprep.subr.bf16.mxu0 0
        %1879 = vmatpush1.bf16.msra.mxu0 %v589
        %1880 = vmatprep.subr.bf16.mxu0 0
        %1881 = vmatpush1.bf16.msra.mxu0 %v590
        %1882 = vmatprep.subr.bf16.mxu0 0
        %1883 = vmatpush1.bf16.msra.mxu0 0
        %1884 = vmatprep.subr.bf16.mxu0 0
        %1885 = vmatpush1.bf16.msra.mxu0 0
        %1886 = vmatprep.subr.bf16.mxu0 0
        %1887 = vmatpush1.bf16.msra.mxu0 0
        %1888 = vmatprep.subr.bf16.mxu0 0
        %1889 = vmatpush1.bf16.msra.mxu0 0
        %1890 = vmatprep.subr.bf16.mxu0 0
        %1891 = vmatpush1.bf16.msra.mxu0 0
        %1892 = vmatprep.subr.bf16.mxu0 0
        %1893 = vmatpush1.bf16.msra.mxu0 0
        %1894 = vmatprep.subr.bf16.mxu0 0
        %1895 = vmatpush1.bf16.msra.mxu0 0
        %1896 = vmatprep.subr.bf16.mxu0 0
        %1897 = vmatpush1.bf16.msra.mxu0 0
        %1898 = vmatprep.subr.bf16.mxu0 0
        %1899 = vmatpush1.bf16.msra.mxu0 0
        %1900 = vmatprep.subr.bf16.mxu0 0
        %1901 = vmatpush1.bf16.msra.mxu0 0
        %1902 = vmatprep.subr.bf16.mxu0 0
        %1903 = vmatpush1.bf16.msra.mxu0 0
        %1904 = vmatprep.subr.bf16.mxu0 0
        %1905 = vmatpush1.bf16.msra.mxu0 0
        %1906 = vmatprep.mubr.bf16.mxu0 0
        %1907 = vmatmul.mubr.bf16.gmra.mrb[0].mxu0 %v1872
        %v1908 = vpop.f32.mrb[0].mxu0
        %v1909 = vadd.f32 0.0, %v1908
        %v1910 = vpop.f32.mrb[0].mxu0
        %v1911 = vpop.f32.mrb[0].mxu0
        %v1912 = vadd.f32 0.0, %v1911
        %v1913 = vpop.f32.mrb[0].mxu0
        %1914 = vdwg.mxu0
        %v1915 = vpack.c.bf16 %v1912, %v1909
        %s1916 = scalar_lea.vmem %s4, 176
        %v1917 = vld [vmem:[%s1916] sm:$0xf]
        %v1918 = vld [vmem:[%s1916 + $0x4] sm:$0xf]
        %v1919 = vld [vmem:[%s1916 + $0x8] sm:$0xf]
        %v1920 = vld [vmem:[%s1916 + $0xc] sm:$0xf]
        %v1925 = vunpack.c.l.b16 %v1917
        %v1926 = vunpack.c.l.b16 %v1918
        %v1927 = vunpack.c.l.b16 %v1919
        %v1928 = vunpack.c.l.b16 %v1920
        %v1929 = vpack.c.b16 %v1926, %v1925
        %v1930 = vpack.c.b16 %v1928, %v1927
        %v1934 = vsel %vm718, %v1915, 0
        %1936 = vmatprep.subr.bf16.mxu0 0
        %1937 = vmatpush1.bf16.msra.mxu0 %v1929
        %1938 = vmatprep.subr.bf16.mxu0 0
        %1939 = vmatpush1.bf16.msra.mxu0 %v1930
        %1940 = vmatprep.subr.bf16.mxu0 0
        %1941 = vmatpush1.bf16.msra.mxu0 0
        %1942 = vmatprep.subr.bf16.mxu0 0
        %1943 = vmatpush1.bf16.msra.mxu0 0
        %1944 = vmatprep.subr.bf16.mxu0 0
        %1945 = vmatpush1.bf16.msra.mxu0 0
        %1946 = vmatprep.subr.bf16.mxu0 0
        %1947 = vmatpush1.bf16.msra.mxu0 0
        %1948 = vmatprep.subr.bf16.mxu0 0
        %1949 = vmatpush1.bf16.msra.mxu0 0
        %1950 = vmatprep.subr.bf16.mxu0 0
        %1951 = vmatpush1.bf16.msra.mxu0 0
        %1952 = vmatprep.subr.bf16.mxu0 0
        %1953 = vmatpush1.bf16.msra.mxu0 0
        %1954 = vmatprep.subr.bf16.mxu0 0
        %1955 = vmatpush1.bf16.msra.mxu0 0
        %1956 = vmatprep.subr.bf16.mxu0 0
        %1957 = vmatpush1.bf16.msra.mxu0 0
        %1958 = vmatprep.subr.bf16.mxu0 0
        %1959 = vmatpush1.bf16.msra.mxu0 0
        %1960 = vmatprep.subr.bf16.mxu0 0
        %1961 = vmatpush1.bf16.msra.mxu0 0
        %1962 = vmatprep.subr.bf16.mxu0 0
        %1963 = vmatpush1.bf16.msra.mxu0 0
        %1964 = vmatprep.subr.bf16.mxu0 0
        %1965 = vmatpush1.bf16.msra.mxu0 0
        %1966 = vmatprep.subr.bf16.mxu0 0
        %1967 = vmatpush1.bf16.msra.mxu0 0
        %1968 = vmatprep.mubr.bf16.mxu0 0
        %1969 = vmatmul.mubr.bf16.gmra.mrb[0].mxu0 %v1934
        %v1970 = vpop.f32.mrb[0].mxu0
        %v1971 = vadd.f32 0.0, %v1970
        %v1972 = vpop.f32.mrb[0].mxu0
        %v1973 = vpop.f32.mrb[0].mxu0
        %v1974 = vadd.f32 0.0, %v1973
        %v1975 = vpop.f32.mrb[0].mxu0
        %1976 = vdwg.mxu0
        %v1977 = vadd.f32 %v1861, %v1971
        %v1978 = vadd.f32 %v1862, %v1974
        %s1979 = scalar_lea.vmem %s3, 96
        %v1980 = vld [vmem:[%s1979] sm:$0xf]
        %v1981 = vld [vmem:[%s1979 + $0x4] sm:$0x1]
        %v1984 = vunpack.c.l.b16 %v1980
        %v1985 = vunpack.c.l.b16 %v1981
        %v1986 = vpack.c.b16 %v1985, %v1984
        %v1988 = vsel %vm598, %v1986, 0
        %1990 = vmatprep.subr.bf16.mxu0 0
        %1991 = vmatpush1.bf16.msra.mxu0 %v587
        %1992 = vmatprep.subr.bf16.mxu0 0
        %1993 = vmatpush1.bf16.msra.mxu0 %v588
        %1994 = vmatprep.subr.bf16.mxu0 0
        %1995 = vmatpush1.bf16.msra.mxu0 %v589
        %1996 = vmatprep.subr.bf16.mxu0 0
        %1997 = vmatpush1.bf16.msra.mxu0 %v590
        %1998 = vmatprep.subr.bf16.mxu0 0
        %1999 = vmatpush1.bf16.msra.mxu0 0
        %2000 = vmatprep.subr.bf16.mxu0 0
        %2001 = vmatpush1.bf16.msra.mxu0 0
        %2002 = vmatprep.subr.bf16.mxu0 0
        %2003 = vmatpush1.bf16.msra.mxu0 0
        %2004 = vmatprep.subr.bf16.mxu0 0
        %2005 = vmatpush1.bf16.msra.mxu0 0
        %2006 = vmatprep.subr.bf16.mxu0 0
        %2007 = vmatpush1.bf16.msra.mxu0 0
        %2008 = vmatprep.subr.bf16.mxu0 0
        %2009 = vmatpush1.bf16.msra.mxu0 0
        %2010 = vmatprep.subr.bf16.mxu0 0
        %2011 = vmatpush1.bf16.msra.mxu0 0
        %2012 = vmatprep.subr.bf16.mxu0 0
        %2013 = vmatpush1.bf16.msra.mxu0 0
        %2014 = vmatprep.subr.bf16.mxu0 0
        %2015 = vmatpush1.bf16.msra.mxu0 0
        %2016 = vmatprep.subr.bf16.mxu0 0
        %2017 = vmatpush1.bf16.msra.mxu0 0
        %2018 = vmatprep.subr.bf16.mxu0 0
        %2019 = vmatpush1.bf16.msra.mxu0 0
        %2020 = vmatprep.subr.bf16.mxu0 0
        %2021 = vmatpush1.bf16.msra.mxu0 0
        %2022 = vmatprep.mubr.bf16.mxu0 0
        %2023 = vmatmul.mubr.bf16.gmra.mrb[0].mxu0 %v1988
        %v2024 = vpop.f32.mrb[0].mxu0
        %v2025 = vadd.f32 0.0, %v2024
        %v2026 = vpop.f32.mrb[0].mxu0
        %v2027 = vpop.f32.mrb[0].mxu0
        %v2028 = vadd.f32 0.0, %v2027
        %v2029 = vpop.f32.mrb[0].mxu0
        %2030 = vdwg.mxu0
        %v2031 = vpack.c.bf16 %v2028, %v2025
        %s2032 = scalar_lea.vmem %s4, 192
        %v2033 = vld [vmem:[%s2032] sm:$0xf]
        %v2034 = vld [vmem:[%s2032 + $0x4] sm:$0xf]
        %v2035 = vld [vmem:[%s2032 + $0x8] sm:$0xf]
        %v2036 = vld [vmem:[%s2032 + $0xc] sm:$0xf]
        %v2041 = vunpack.c.l.b16 %v2033
        %v2042 = vunpack.c.l.b16 %v2034
        %v2043 = vunpack.c.l.b16 %v2035
        %v2044 = vunpack.c.l.b16 %v2036
        %v2045 = vpack.c.b16 %v2042, %v2041
        %v2046 = vpack.c.b16 %v2044, %v2043
        %v2050 = vsel %vm718, %v2031, 0
        %2052 = vmatprep.subr.bf16.mxu0 0
        %2053 = vmatpush1.bf16.msra.mxu0 %v2045
        %2054 = vmatprep.subr.bf16.mxu0 0
        %2055 = vmatpush1.bf16.msra.mxu0 %v2046
        %2056 = vmatprep.subr.bf16.mxu0 0
        %2057 = vmatpush1.bf16.msra.mxu0 0
        %2058 = vmatprep.subr.bf16.mxu0 0
        %2059 = vmatpush1.bf16.msra.mxu0 0
        %2060 = vmatprep.subr.bf16.mxu0 0
        %2061 = vmatpush1.bf16.msra.mxu0 0
        %2062 = vmatprep.subr.bf16.mxu0 0
        %2063 = vmatpush1.bf16.msra.mxu0 0
        %2064 = vmatprep.subr.bf16.mxu0 0
        %2065 = vmatpush1.bf16.msra.mxu0 0
        %2066 = vmatprep.subr.bf16.mxu0 0
        %2067 = vmatpush1.bf16.msra.mxu0 0
        %2068 = vmatprep.subr.bf16.mxu0 0
        %2069 = vmatpush1.bf16.msra.mxu0 0
        %2070 = vmatprep.subr.bf16.mxu0 0
        %2071 = vmatpush1.bf16.msra.mxu0 0
        %2072 = vmatprep.subr.bf16.mxu0 0
        %2073 = vmatpush1.bf16.msra.mxu0 0
        %2074 = vmatprep.subr.bf16.mxu0 0
        %2075 = vmatpush1.bf16.msra.mxu0 0
        %2076 = vmatprep.subr.bf16.mxu0 0
        %2077 = vmatpush1.bf16.msra.mxu0 0
        %2078 = vmatprep.subr.bf16.mxu0 0
        %2079 = vmatpush1.bf16.msra.mxu0 0
        %2080 = vmatprep.subr.bf16.mxu0 0
        %2081 = vmatpush1.bf16.msra.mxu0 0
        %2082 = vmatprep.subr.bf16.mxu0 0
        %2083 = vmatpush1.bf16.msra.mxu0 0
        %2084 = vmatprep.mubr.bf16.mxu0 0
        %2085 = vmatmul.mubr.bf16.gmra.mrb[0].mxu0 %v2050
        %v2086 = vpop.f32.mrb[0].mxu0
        %v2087 = vadd.f32 0.0, %v2086
        %v2088 = vpop.f32.mrb[0].mxu0
        %v2089 = vpop.f32.mrb[0].mxu0
        %v2090 = vadd.f32 0.0, %v2089
        %v2091 = vpop.f32.mrb[0].mxu0
        %2092 = vdwg.mxu0
        %v2093 = vadd.f32 %v1977, %v2087
        %v2094 = vadd.f32 %v1978, %v2090
        %s2095 = scalar_lea.vmem %s3, 104
        %v2096 = vld [vmem:[%s2095] sm:$0xf]
        %v2097 = vld [vmem:[%s2095 + $0x4] sm:$0x1]
        %v2100 = vunpack.c.l.b16 %v2096
        %v2101 = vunpack.c.l.b16 %v2097
        %v2102 = vpack.c.b16 %v2101, %v2100
        %v2104 = vsel %vm598, %v2102, 0
        %2106 = vmatprep.subr.bf16.mxu0 0
        %2107 = vmatpush1.bf16.msra.mxu0 %v587
        %2108 = vmatprep.subr.bf16.mxu0 0
        %2109 = vmatpush1.bf16.msra.mxu0 %v588
        %2110 = vmatprep.subr.bf16.mxu0 0
        %2111 = vmatpush1.bf16.msra.mxu0 %v589
        %2112 = vmatprep.subr.bf16.mxu0 0
        %2113 = vmatpush1.bf16.msra.mxu0 %v590
        %2114 = vmatprep.subr.bf16.mxu0 0
        %2115 = vmatpush1.bf16.msra.mxu0 0
        %2116 = vmatprep.subr.bf16.mxu0 0
        %2117 = vmatpush1.bf16.msra.mxu0 0
        %2118 = vmatprep.subr.bf16.mxu0 0
        %2119 = vmatpush1.bf16.msra.mxu0 0
        %2120 = vmatprep.subr.bf16.mxu0 0
        %2121 = vmatpush1.bf16.msra.mxu0 0
        %2122 = vmatprep.subr.bf16.mxu0 0
        %2123 = vmatpush1.bf16.msra.mxu0 0
        %2124 = vmatprep.subr.bf16.mxu0 0
        %2125 = vmatpush1.bf16.msra.mxu0 0
        %2126 = vmatprep.subr.bf16.mxu0 0
        %2127 = vmatpush1.bf16.msra.mxu0 0
        %2128 = vmatprep.subr.bf16.mxu0 0
        %2129 = vmatpush1.bf16.msra.mxu0 0
        %2130 = vmatprep.subr.bf16.mxu0 0
        %2131 = vmatpush1.bf16.msra.mxu0 0
        %2132 = vmatprep.subr.bf16.mxu0 0
        %2133 = vmatpush1.bf16.msra.mxu0 0
        %2134 = vmatprep.subr.bf16.mxu0 0
        %2135 = vmatpush1.bf16.msra.mxu0 0
        %2136 = vmatprep.subr.bf16.mxu0 0
        %2137 = vmatpush1.bf16.msra.mxu0 0
        %2138 = vmatprep.mubr.bf16.mxu0 0
        %2139 = vmatmul.mubr.bf16.gmra.mrb[0].mxu0 %v2104
        %v2140 = vpop.f32.mrb[0].mxu0
        %v2141 = vadd.f32 0.0, %v2140
        %v2142 = vpop.f32.mrb[0].mxu0
        %v2143 = vpop.f32.mrb[0].mxu0
        %v2144 = vadd.f32 0.0, %v2143
        %v2145 = vpop.f32.mrb[0].mxu0
        %2146 = vdwg.mxu0
        %v2147 = vpack.c.bf16 %v2144, %v2141
        %s2148 = scalar_lea.vmem %s4, 208
        %v2149 = vld [vmem:[%s2148] sm:$0xf]
        %v2150 = vld [vmem:[%s2148 + $0x4] sm:$0xf]
        %v2151 = vld [vmem:[%s2148 + $0x8] sm:$0xf]
        %v2152 = vld [vmem:[%s2148 + $0xc] sm:$0xf]
        %v2157 = vunpack.c.l.b16 %v2149
        %v2158 = vunpack.c.l.b16 %v2150
        %v2159 = vunpack.c.l.b16 %v2151
        %v2160 = vunpack.c.l.b16 %v2152
        %v2161 = vpack.c.b16 %v2158, %v2157
        %v2162 = vpack.c.b16 %v2160, %v2159
        %v2166 = vsel %vm718, %v2147, 0
        %2168 = vmatprep.subr.bf16.mxu0 0
        %2169 = vmatpush1.bf16.msra.mxu0 %v2161
        %2170 = vmatprep.subr.bf16.mxu0 0
        %2171 = vmatpush1.bf16.msra.mxu0 %v2162
        %2172 = vmatprep.subr.bf16.mxu0 0
        %2173 = vmatpush1.bf16.msra.mxu0 0
        %2174 = vmatprep.subr.bf16.mxu0 0
        %2175 = vmatpush1.bf16.msra.mxu0 0
        %2176 = vmatprep.subr.bf16.mxu0 0
        %2177 = vmatpush1.bf16.msra.mxu0 0
        %2178 = vmatprep.subr.bf16.mxu0 0
        %2179 = vmatpush1.bf16.msra.mxu0 0
        %2180 = vmatprep.subr.bf16.mxu0 0
        %2181 = vmatpush1.bf16.msra.mxu0 0
        %2182 = vmatprep.subr.bf16.mxu0 0
        %2183 = vmatpush1.bf16.msra.mxu0 0
        %2184 = vmatprep.subr.bf16.mxu0 0
        %2185 = vmatpush1.bf16.msra.mxu0 0
        %2186 = vmatprep.subr.bf16.mxu0 0
        %2187 = vmatpush1.bf16.msra.mxu0 0
        %2188 = vmatprep.subr.bf16.mxu0 0
        %2189 = vmatpush1.bf16.msra.mxu0 0
        %2190 = vmatprep.subr.bf16.mxu0 0
        %2191 = vmatpush1.bf16.msra.mxu0 0
        %2192 = vmatprep.subr.bf16.mxu0 0
        %2193 = vmatpush1.bf16.msra.mxu0 0
        %2194 = vmatprep.subr.bf16.mxu0 0
        %2195 = vmatpush1.bf16.msra.mxu0 0
        %2196 = vmatprep.subr.bf16.mxu0 0
        %2197 = vmatpush1.bf16.msra.mxu0 0
        %2198 = vmatprep.subr.bf16.mxu0 0
        %2199 = vmatpush1.bf16.msra.mxu0 0
        %2200 = vmatprep.mubr.bf16.mxu0 0
        %2201 = vmatmul.mubr.bf16.gmra.mrb[0].mxu0 %v2166
        %v2202 = vpop.f32.mrb[0].mxu0
        %v2203 = vadd.f32 0.0, %v2202
        %v2204 = vpop.f32.mrb[0].mxu0
        %v2205 = vpop.f32.mrb[0].mxu0
        %v2206 = vadd.f32 0.0, %v2205
        %v2207 = vpop.f32.mrb[0].mxu0
        %2208 = vdwg.mxu0
        %v2209 = vadd.f32 %v2093, %v2203
        %v2210 = vadd.f32 %v2094, %v2206
        %s2211 = scalar_lea.vmem %s3, 112
        %v2212 = vld [vmem:[%s2211] sm:$0xf]
        %v2213 = vld [vmem:[%s2211 + $0x4] sm:$0x1]
        %v2216 = vunpack.c.l.b16 %v2212
        %v2217 = vunpack.c.l.b16 %v2213
        %v2218 = vpack.c.b16 %v2217, %v2216
        %v2220 = vsel %vm598, %v2218, 0
        %2222 = vmatprep.subr.bf16.mxu0 0
        %2223 = vmatpush1.bf16.msra.mxu0 %v587
        %2224 = vmatprep.subr.bf16.mxu0 0
        %2225 = vmatpush1.bf16.msra.mxu0 %v588
        %2226 = vmatprep.subr.bf16.mxu0 0
        %2227 = vmatpush1.bf16.msra.mxu0 %v589
        %2228 = vmatprep.subr.bf16.mxu0 0
        %2229 = vmatpush1.bf16.msra.mxu0 %v590
        %2230 = vmatprep.subr.bf16.mxu0 0
        %2231 = vmatpush1.bf16.msra.mxu0 0
        %2232 = vmatprep.subr.bf16.mxu0 0
        %2233 = vmatpush1.bf16.msra.mxu0 0
        %2234 = vmatprep.subr.bf16.mxu0 0
        %2235 = vmatpush1.bf16.msra.mxu0 0
        %2236 = vmatprep.subr.bf16.mxu0 0
        %2237 = vmatpush1.bf16.msra.mxu0 0
        %2238 = vmatprep.subr.bf16.mxu0 0
        %2239 = vmatpush1.bf16.msra.mxu0 0
        %2240 = vmatprep.subr.bf16.mxu0 0
        %2241 = vmatpush1.bf16.msra.mxu0 0
        %2242 = vmatprep.subr.bf16.mxu0 0
        %2243 = vmatpush1.bf16.msra.mxu0 0
        %2244 = vmatprep.subr.bf16.mxu0 0
        %2245 = vmatpush1.bf16.msra.mxu0 0
        %2246 = vmatprep.subr.bf16.mxu0 0
        %2247 = vmatpush1.bf16.msra.mxu0 0
        %2248 = vmatprep.subr.bf16.mxu0 0
        %2249 = vmatpush1.bf16.msra.mxu0 0
        %2250 = vmatprep.subr.bf16.mxu0 0
        %2251 = vmatpush1.bf16.msra.mxu0 0
        %2252 = vmatprep.subr.bf16.mxu0 0
        %2253 = vmatpush1.bf16.msra.mxu0 0
        %2254 = vmatprep.mubr.bf16.mxu0 0
        %2255 = vmatmul.mubr.bf16.gmra.mrb[0].mxu0 %v2220
        %v2256 = vpop.f32.mrb[0].mxu0
        %v2257 = vadd.f32 0.0, %v2256
        %v2258 = vpop.f32.mrb[0].mxu0
        %v2259 = vpop.f32.mrb[0].mxu0
        %v2260 = vadd.f32 0.0, %v2259
        %v2261 = vpop.f32.mrb[0].mxu0
        %2262 = vdwg.mxu0
        %v2263 = vpack.c.bf16 %v2260, %v2257
        %s2264 = scalar_lea.vmem %s4, 224
        %v2265 = vld [vmem:[%s2264] sm:$0xf]
        %v2266 = vld [vmem:[%s2264 + $0x4] sm:$0xf]
        %v2267 = vld [vmem:[%s2264 + $0x8] sm:$0xf]
        %v2268 = vld [vmem:[%s2264 + $0xc] sm:$0xf]
        %v2273 = vunpack.c.l.b16 %v2265
        %v2274 = vunpack.c.l.b16 %v2266
        %v2275 = vunpack.c.l.b16 %v2267
        %v2276 = vunpack.c.l.b16 %v2268
        %v2277 = vpack.c.b16 %v2274, %v2273
        %v2278 = vpack.c.b16 %v2276, %v2275
        %v2282 = vsel %vm718, %v2263, 0
        %2284 = vmatprep.subr.bf16.mxu0 0
        %2285 = vmatpush1.bf16.msra.mxu0 %v2277
        %2286 = vmatprep.subr.bf16.mxu0 0
        %2287 = vmatpush1.bf16.msra.mxu0 %v2278
        %2288 = vmatprep.subr.bf16.mxu0 0
        %2289 = vmatpush1.bf16.msra.mxu0 0
        %2290 = vmatprep.subr.bf16.mxu0 0
        %2291 = vmatpush1.bf16.msra.mxu0 0
        %2292 = vmatprep.subr.bf16.mxu0 0
        %2293 = vmatpush1.bf16.msra.mxu0 0
        %2294 = vmatprep.subr.bf16.mxu0 0
        %2295 = vmatpush1.bf16.msra.mxu0 0
        %2296 = vmatprep.subr.bf16.mxu0 0
        %2297 = vmatpush1.bf16.msra.mxu0 0
        %2298 = vmatprep.subr.bf16.mxu0 0
        %2299 = vmatpush1.bf16.msra.mxu0 0
        %2300 = vmatprep.subr.bf16.mxu0 0
        %2301 = vmatpush1.bf16.msra.mxu0 0
        %2302 = vmatprep.subr.bf16.mxu0 0
        %2303 = vmatpush1.bf16.msra.mxu0 0
        %2304 = vmatprep.subr.bf16.mxu0 0
        %2305 = vmatpush1.bf16.msra.mxu0 0
        %2306 = vmatprep.subr.bf16.mxu0 0
        %2307 = vmatpush1.bf16.msra.mxu0 0
        %2308 = vmatprep.subr.bf16.mxu0 0
        %2309 = vmatpush1.bf16.msra.mxu0 0
        %2310 = vmatprep.subr.bf16.mxu0 0
        %2311 = vmatpush1.bf16.msra.mxu0 0
        %2312 = vmatprep.subr.bf16.mxu0 0
        %2313 = vmatpush1.bf16.msra.mxu0 0
        %2314 = vmatprep.subr.bf16.mxu0 0
        %2315 = vmatpush1.bf16.msra.mxu0 0
        %2316 = vmatprep.mubr.bf16.mxu0 0
        %2317 = vmatmul.mubr.bf16.gmra.mrb[0].mxu0 %v2282
        %v2318 = vpop.f32.mrb[0].mxu0
        %v2319 = vadd.f32 0.0, %v2318
        %v2320 = vpop.f32.mrb[0].mxu0
        %v2321 = vpop.f32.mrb[0].mxu0
        %v2322 = vadd.f32 0.0, %v2321
        %v2323 = vpop.f32.mrb[0].mxu0
        %2324 = vdwg.mxu0
        %v2325 = vadd.f32 %v2209, %v2319
        %v2326 = vadd.f32 %v2210, %v2322
        %s2327 = scalar_lea.vmem %s3, 120
        %v2328 = vld [vmem:[%s2327] sm:$0xf]
        %v2329 = vld [vmem:[%s2327 + $0x4] sm:$0x1]
        %v2332 = vunpack.c.l.b16 %v2328
        %v2333 = vunpack.c.l.b16 %v2329
        %v2334 = vpack.c.b16 %v2333, %v2332
        %v2336 = vsel %vm598, %v2334, 0
        %2338 = vmatprep.subr.bf16.mxu0 0
        %2339 = vmatpush1.bf16.msra.mxu0 %v587
        %2340 = vmatprep.subr.bf16.mxu0 0
        %2341 = vmatpush1.bf16.msra.mxu0 %v588
        %2342 = vmatprep.subr.bf16.mxu0 0
        %2343 = vmatpush1.bf16.msra.mxu0 %v589
        %2344 = vmatprep.subr.bf16.mxu0 0
        %2345 = vmatpush1.bf16.msra.mxu0 %v590
        %2346 = vmatprep.subr.bf16.mxu0 0
        %2347 = vmatpush1.bf16.msra.mxu0 0
        %2348 = vmatprep.subr.bf16.mxu0 0
        %2349 = vmatpush1.bf16.msra.mxu0 0
        %2350 = vmatprep.subr.bf16.mxu0 0
        %2351 = vmatpush1.bf16.msra.mxu0 0
        %2352 = vmatprep.subr.bf16.mxu0 0
        %2353 = vmatpush1.bf16.msra.mxu0 0
        %2354 = vmatprep.subr.bf16.mxu0 0
        %2355 = vmatpush1.bf16.msra.mxu0 0
        %2356 = vmatprep.subr.bf16.mxu0 0
        %2357 = vmatpush1.bf16.msra.mxu0 0
        %2358 = vmatprep.subr.bf16.mxu0 0
        %2359 = vmatpush1.bf16.msra.mxu0 0
        %2360 = vmatprep.subr.bf16.mxu0 0
        %2361 = vmatpush1.bf16.msra.mxu0 0
        %2362 = vmatprep.subr.bf16.mxu0 0
        %2363 = vmatpush1.bf16.msra.mxu0 0
        %2364 = vmatprep.subr.bf16.mxu0 0
        %2365 = vmatpush1.bf16.msra.mxu0 0
        %2366 = vmatprep.subr.bf16.mxu0 0
        %2367 = vmatpush1.bf16.msra.mxu0 0
        %2368 = vmatprep.subr.bf16.mxu0 0
        %2369 = vmatpush1.bf16.msra.mxu0 0
        %2370 = vmatprep.mubr.bf16.mxu0 0
        %2371 = vmatmul.mubr.bf16.gmra.mrb[0].mxu0 %v2336
        %v2372 = vpop.f32.mrb[0].mxu0
        %v2373 = vadd.f32 0.0, %v2372
        %v2374 = vpop.f32.mrb[0].mxu0
        %v2375 = vpop.f32.mrb[0].mxu0
        %v2376 = vadd.f32 0.0, %v2375
        %v2377 = vpop.f32.mrb[0].mxu0
        %2378 = vdwg.mxu0
        %v2379 = vpack.c.bf16 %v2376, %v2373
        %s2380 = scalar_lea.vmem %s4, 240
        %v2381 = vld [vmem:[%s2380] sm:$0xf]
        %v2382 = vld [vmem:[%s2380 + $0x4] sm:$0xf]
        %v2383 = vld [vmem:[%s2380 + $0x8] sm:$0xf]
        %v2384 = vld [vmem:[%s2380 + $0xc] sm:$0xf]
        %v2389 = vunpack.c.l.b16 %v2381
        %v2390 = vunpack.c.l.b16 %v2382
        %v2391 = vunpack.c.l.b16 %v2383
        %v2392 = vunpack.c.l.b16 %v2384
        %v2393 = vpack.c.b16 %v2390, %v2389
        %v2394 = vpack.c.b16 %v2392, %v2391
        %v2398 = vsel %vm718, %v2379, 0
        %2400 = vmatprep.subr.bf16.mxu0 0
        %2401 = vmatpush1.bf16.msra.mxu0 %v2393
        %2402 = vmatprep.subr.bf16.mxu0 0
        %2403 = vmatpush1.bf16.msra.mxu0 %v2394
        %2404 = vmatprep.subr.bf16.mxu0 0
        %2405 = vmatpush1.bf16.msra.mxu0 0
        %2406 = vmatprep.subr.bf16.mxu0 0
        %2407 = vmatpush1.bf16.msra.mxu0 0
        %2408 = vmatprep.subr.bf16.mxu0 0
        %2409 = vmatpush1.bf16.msra.mxu0 0
        %2410 = vmatprep.subr.bf16.mxu0 0
        %2411 = vmatpush1.bf16.msra.mxu0 0
        %2412 = vmatprep.subr.bf16.mxu0 0
        %2413 = vmatpush1.bf16.msra.mxu0 0
        %2414 = vmatprep.subr.bf16.mxu0 0
        %2415 = vmatpush1.bf16.msra.mxu0 0
        %2416 = vmatprep.subr.bf16.mxu0 0
        %2417 = vmatpush1.bf16.msra.mxu0 0
        %2418 = vmatprep.subr.bf16.mxu0 0
        %2419 = vmatpush1.bf16.msra.mxu0 0
        %2420 = vmatprep.subr.bf16.mxu0 0
        %2421 = vmatpush1.bf16.msra.mxu0 0
        %2422 = vmatprep.subr.bf16.mxu0 0
        %2423 = vmatpush1.bf16.msra.mxu0 0
        %2424 = vmatprep.subr.bf16.mxu0 0
        %2425 = vmatpush1.bf16.msra.mxu0 0
        %2426 = vmatprep.subr.bf16.mxu0 0
        %2427 = vmatpush1.bf16.msra.mxu0 0
        %2428 = vmatprep.subr.bf16.mxu0 0
        %2429 = vmatpush1.bf16.msra.mxu0 0
        %2430 = vmatprep.subr.bf16.mxu0 0
        %2431 = vmatpush1.bf16.msra.mxu0 0
        %2432 = vmatprep.mubr.bf16.mxu0 0
        %2433 = vmatmul.mubr.bf16.gmra.mrb[0].mxu0 %v2398
        %v2434 = vpop.f32.mrb[0].mxu0
        %v2435 = vadd.f32 0.0, %v2434
        %v2436 = vpop.f32.mrb[0].mxu0
        %v2437 = vpop.f32.mrb[0].mxu0
        %v2438 = vadd.f32 0.0, %v2437
        %v2439 = vpop.f32.mrb[0].mxu0
        %2440 = vdwg.mxu0
        %v2441 = vadd.f32 %v2325, %v2435
        %v2442 = vadd.f32 %v2326, %v2438
        %v2443 = vld [vmem:[%s5] sm:$0x1]
        %v2445 = vlaneseq
        %v2446 = vshrl.u32 %v2445, 7
        %v2447 = vsub.s32 0, %v2446
        %v2448 = vrot.slane %v2443, %v2447
        %v2450 = vadd.f32 %v2441, %v2448
        %v2451 = vadd.f32 %v2442, %v2448
        %v2452 = vmax.f32 %v2450, 0.0
        %v2453 = vmax.f32 %v2451, 0.0
        %v2454 = vpack.c.bf16 %v2453, %v2452
        %v2455 = vld [vmem:[%s6] sm:$0x1]
        %vm2456 = vcmask 72704
        %v2458 = vsel %vm2456, %v2455, 0
        %vm2460 = vcmask 1043456
        %vm2461 = vcmask 1044480
        %v2462 = vsel %vm2460, 4294967295, 65535
        %v2463 = vsel %vm2461, %v2462, 0
        %v2465 = vand.u32 %v2454, %v2463
        %2467 = vmatprep.subr.bf16.mxu0 0
        %2468 = vmatpush1.bf16.msra.mxu0 %v2465
        %2469 = vmatprep.subr.bf16.mxu0 0
        %2470 = vmatpush1.bf16.msra.mxu0 0
        %2471 = vmatprep.subr.bf16.mxu0 0
        %2472 = vmatpush1.bf16.msra.mxu0 0
        %2473 = vmatprep.subr.bf16.mxu0 0
        %2474 = vmatpush1.bf16.msra.mxu0 0
        %2475 = vmatprep.subr.bf16.mxu0 0
        %2476 = vmatpush1.bf16.msra.mxu0 0
        %2477 = vmatprep.subr.bf16.mxu0 0
        %2478 = vmatpush1.bf16.msra.mxu0 0
        %2479 = vmatprep.subr.bf16.mxu0 0
        %2480 = vmatpush1.bf16.msra.mxu0 0
        %2481 = vmatprep.subr.bf16.mxu0 0
        %2482 = vmatpush1.bf16.msra.mxu0 0
        %2483 = vmatprep.subr.bf16.mxu0 0
        %2484 = vmatpush1.bf16.msra.mxu0 0
        %2485 = vmatprep.subr.bf16.mxu0 0
        %2486 = vmatpush1.bf16.msra.mxu0 0
        %2487 = vmatprep.subr.bf16.mxu0 0
        %2488 = vmatpush1.bf16.msra.mxu0 0
        %2489 = vmatprep.subr.bf16.mxu0 0
        %2490 = vmatpush1.bf16.msra.mxu0 0
        %2491 = vmatprep.subr.bf16.mxu0 0
        %2492 = vmatpush1.bf16.msra.mxu0 0
        %2493 = vmatprep.subr.bf16.mxu0 0
        %2494 = vmatpush1.bf16.msra.mxu0 0
        %2495 = vmatprep.subr.bf16.mxu0 0
        %2496 = vmatpush1.bf16.msra.mxu0 0
        %2497 = vmatprep.subr.bf16.mxu0 0
        %2498 = vmatpush1.bf16.msra.mxu0 0
        %2499 = vmatprep.mubr.bf16.mxu0 0
        %2500 = vmatmul.mubr.bf16.gmra.mrb[0].mxu0 %v2458
        %v2501 = vpop.f32.mrb[0].mxu0
        %v2502 = vadd.f32 0.0, %v2501
        %v2503 = vpop.f32.mrb[0].mxu0
        %v2504 = vpop.f32.mrb[0].mxu0
        %v2505 = vpop.f32.mrb[0].mxu0
        %2506 = vdwg.mxu0
        %v2507 = vpack.c.bf16 %v2502, %v2502
        %v2508 = vld [vmem:[%s7] sm:$0xf]
        %v2509 = vld [vmem:[%s7 + $0x4] sm:$0xf]
        %v2510 = vld [vmem:[%s7 + $0x8] sm:$0xf]
        %v2511 = vld [vmem:[%s7 + $0xc] sm:$0xf]
        %v2512 = vld [vmem:[%s7 + $0x10] sm:$0xf]
        %v2513 = vld [vmem:[%s7 + $0x14] sm:$0xf]
        %v2514 = vld [vmem:[%s7 + $0x18] sm:$0xf]
        %v2515 = vld [vmem:[%s7 + $0x1c] sm:$0xf]
        %s2516 = scalar_lea.vmem %s6, 1
        %v2517 = vld [vmem:[%s2516] sm:$0x1]
        %v2519 = vsel %vm2456, %v2517, 0
        %2521 = vmatprep.subr.bf16.mxu0 0
        %2522 = vmatpush1.bf16.msra.mxu0 %v2465
        %2523 = vmatprep.subr.bf16.mxu0 0
        %2524 = vmatpush1.bf16.msra.mxu0 0
        %2525 = vmatprep.subr.bf16.mxu0 0
        %2526 = vmatpush1.bf16.msra.mxu0 0
        %2527 = vmatprep.subr.bf16.mxu0 0
        %2528 = vmatpush1.bf16.msra.mxu0 0
        %2529 = vmatprep.subr.bf16.mxu0 0
        %2530 = vmatpush1.bf16.msra.mxu0 0
        %2531 = vmatprep.subr.bf16.mxu0 0
        %2532 = vmatpush1.bf16.msra.mxu0 0
        %2533 = vmatprep.subr.bf16.mxu0 0
        %2534 = vmatpush1.bf16.msra.mxu0 0
        %2535 = vmatprep.subr.bf16.mxu0 0
        %2536 = vmatpush1.bf16.msra.mxu0 0
        %2537 = vmatprep.subr.bf16.mxu0 0
        %2538 = vmatpush1.bf16.msra.mxu0 0
        %2539 = vmatprep.subr.bf16.mxu0 0
        %2540 = vmatpush1.bf16.msra.mxu0 0
        %2541 = vmatprep.subr.bf16.mxu0 0
        %2542 = vmatpush1.bf16.msra.mxu0 0
        %2543 = vmatprep.subr.bf16.mxu0 0
        %2544 = vmatpush1.bf16.msra.mxu0 0
        %2545 = vmatprep.subr.bf16.mxu0 0
        %2546 = vmatpush1.bf16.msra.mxu0 0
        %2547 = vmatprep.subr.bf16.mxu0 0
        %2548 = vmatpush1.bf16.msra.mxu0 0
        %2549 = vmatprep.subr.bf16.mxu0 0
        %2550 = vmatpush1.bf16.msra.mxu0 0
        %2551 = vmatprep.subr.bf16.mxu0 0
        %2552 = vmatpush1.bf16.msra.mxu0 0
        %2553 = vmatprep.mubr.bf16.mxu0 0
        %2554 = vmatmul.mubr.bf16.gmra.mrb[0].mxu0 %v2519
        %v2555 = vpop.f32.mrb[0].mxu0
        %v2556 = vadd.f32 0.0, %v2555
        %v2557 = vpop.f32.mrb[0].mxu0
        %v2558 = vpop.f32.mrb[0].mxu0
        %v2559 = vpop.f32.mrb[0].mxu0
        %2560 = vdwg.mxu0
        %v2561 = vpack.c.bf16 %v2556, %v2556
        %s2562 = scalar_lea.vmem %s7, 32
        %v2563 = vld [vmem:[%s2562] sm:$0xf]
        %v2564 = vld [vmem:[%s2562 + $0x4] sm:$0xf]
        %v2565 = vld [vmem:[%s2562 + $0x8] sm:$0xf]
        %v2566 = vld [vmem:[%s2562 + $0xc] sm:$0xf]
        %v2567 = vld [vmem:[%s2562 + $0x10] sm:$0xf]
        %v2568 = vld [vmem:[%s2562 + $0x14] sm:$0xf]
        %v2569 = vld [vmem:[%s2562 + $0x18] sm:$0xf]
        %v2570 = vld [vmem:[%s2562 + $0x1c] sm:$0xf]
        %v2579 = vunpack.c.l.b16 %v2563
        %v2580 = vunpack.c.l.b16 %v2564
        %v2581 = vunpack.c.l.b16 %v2565
        %v2582 = vunpack.c.l.b16 %v2566
        %v2583 = vunpack.c.l.b16 %v2567
        %v2584 = vunpack.c.l.b16 %v2568
        %v2585 = vunpack.c.l.b16 %v2569
        %v2586 = vunpack.c.l.b16 %v2570
        %v2587 = vpack.c.b16 %v2580, %v2579
        %v2588 = vpack.c.b16 %v2582, %v2581
        %v2589 = vpack.c.b16 %v2584, %v2583
        %v2590 = vpack.c.b16 %v2586, %v2585
        %v2596 = vsel %vm598, %v2561, 0
        %2598 = vmatprep.subr.bf16.mxu0 0
        %2599 = vmatpush1.bf16.msra.mxu0 %v2587
        %2600 = vmatprep.subr.bf16.mxu0 0
        %2601 = vmatpush1.bf16.msra.mxu0 %v2588
        %2602 = vmatprep.subr.bf16.mxu0 0
        %2603 = vmatpush1.bf16.msra.mxu0 %v2589
        %2604 = vmatprep.subr.bf16.mxu0 0
        %2605 = vmatpush1.bf16.msra.mxu0 %v2590
        %2606 = vmatprep.subr.bf16.mxu0 0
        %2607 = vmatpush1.bf16.msra.mxu0 0
        %2608 = vmatprep.subr.bf16.mxu0 0
        %2609 = vmatpush1.bf16.msra.mxu0 0
        %2610 = vmatprep.subr.bf16.mxu0 0
        %2611 = vmatpush1.bf16.msra.mxu0 0
        %2612 = vmatprep.subr.bf16.mxu0 0
        %2613 = vmatpush1.bf16.msra.mxu0 0
        %2614 = vmatprep.subr.bf16.mxu0 0
        %2615 = vmatpush1.bf16.msra.mxu0 0
        %2616 = vmatprep.subr.bf16.mxu0 0
        %2617 = vmatpush1.bf16.msra.mxu0 0
        %2618 = vmatprep.subr.bf16.mxu0 0
        %2619 = vmatpush1.bf16.msra.mxu0 0
        %2620 = vmatprep.subr.bf16.mxu0 0
        %2621 = vmatpush1.bf16.msra.mxu0 0
        %2622 = vmatprep.subr.bf16.mxu0 0
        %2623 = vmatpush1.bf16.msra.mxu0 0
        %2624 = vmatprep.subr.bf16.mxu0 0
        %2625 = vmatpush1.bf16.msra.mxu0 0
        %2626 = vmatprep.subr.bf16.mxu0 0
        %2627 = vmatpush1.bf16.msra.mxu0 0
        %2628 = vmatprep.subr.bf16.mxu0 0
        %2629 = vmatpush1.bf16.msra.mxu0 0
        %2630 = vmatprep.mubr.bf16.mxu0 0
        %2631 = vmatmul.mubr.bf16.gmra.mrb[0].mxu0 %v2596
        %v2632 = vpop.f32.mrb[0].mxu0
        %v2633 = vadd.f32 0.0, %v2632
        %v2634 = vpop.f32.mrb[0].mxu0
        %v2635 = vpop.f32.mrb[0].mxu0
        %v2636 = vpop.f32.mrb[0].mxu0
        %2637 = vdwg.mxu0
        %v2646 = vunpack.c.l.b16 %v2508
        %v2647 = vunpack.c.l.b16 %v2509
        %v2648 = vunpack.c.l.b16 %v2510
        %v2649 = vunpack.c.l.b16 %v2511
        %v2650 = vunpack.c.l.b16 %v2512
        %v2651 = vunpack.c.l.b16 %v2513
        %v2652 = vunpack.c.l.b16 %v2514
        %v2653 = vunpack.c.l.b16 %v2515
        %v2654 = vpack.c.b16 %v2647, %v2646
        %v2655 = vpack.c.b16 %v2649, %v2648
        %v2656 = vpack.c.b16 %v2651, %v2650
        %v2657 = vpack.c.b16 %v2653, %v2652
        %v2663 = vsel %vm598, %v2507, 0
        %2665 = vmatprep.subr.bf16.mxu0 0
        %2666 = vmatpush1.bf16.msra.mxu0 %v2654
        %2667 = vmatprep.subr.bf16.mxu0 0
        %2668 = vmatpush1.bf16.msra.mxu0 %v2655
        %2669 = vmatprep.subr.bf16.mxu0 0
        %2670 = vmatpush1.bf16.msra.mxu0 %v2656
        %2671 = vmatprep.subr.bf16.mxu0 0
        %2672 = vmatpush1.bf16.msra.mxu0 %v2657
        %2673 = vmatprep.subr.bf16.mxu0 0
        %2674 = vmatpush1.bf16.msra.mxu0 0
        %2675 = vmatprep.subr.bf16.mxu0 0
        %2676 = vmatpush1.bf16.msra.mxu0 0
        %2677 = vmatprep.subr.bf16.mxu0 0
        %2678 = vmatpush1.bf16.msra.mxu0 0
        %2679 = vmatprep.subr.bf16.mxu0 0
        %2680 = vmatpush1.bf16.msra.mxu0 0
        %2681 = vmatprep.subr.bf16.mxu0 0
        %2682 = vmatpush1.bf16.msra.mxu0 0
        %2683 = vmatprep.subr.bf16.mxu0 0
        %2684 = vmatpush1.bf16.msra.mxu0 0
        %2685 = vmatprep.subr.bf16.mxu0 0
        %2686 = vmatpush1.bf16.msra.mxu0 0
        %2687 = vmatprep.subr.bf16.mxu0 0
        %2688 = vmatpush1.bf16.msra.mxu0 0
        %2689 = vmatprep.subr.bf16.mxu0 0
        %2690 = vmatpush1.bf16.msra.mxu0 0
        %2691 = vmatprep.subr.bf16.mxu0 0
        %2692 = vmatpush1.bf16.msra.mxu0 0
        %2693 = vmatprep.subr.bf16.mxu0 0
        %2694 = vmatpush1.bf16.msra.mxu0 0
        %2695 = vmatprep.subr.bf16.mxu0 0
        %2696 = vmatpush1.bf16.msra.mxu0 0
        %2697 = vmatprep.mubr.bf16.mxu0 0
        %2698 = vmatmul.mubr.bf16.gmra.mrb[0].mxu0 %v2663
        %v2699 = vpop.f32.mrb[0].mxu0
        %v2700 = vadd.f32 %v2633, %v2699
        %v2701 = vpop.f32.mrb[0].mxu0
        %v2702 = vpop.f32.mrb[0].mxu0
        %v2703 = vpop.f32.mrb[0].mxu0
        %2704 = vdwg.mxu0
        %s2705 = scalar_lea.vmem %s6, 2
        %v2706 = vld [vmem:[%s2705] sm:$0x1]
        %v2708 = vsel %vm2456, %v2706, 0
        %2710 = vmatprep.subr.bf16.mxu0 0
        %2711 = vmatpush1.bf16.msra.mxu0 %v2465
        %2712 = vmatprep.subr.bf16.mxu0 0
        %2713 = vmatpush1.bf16.msra.mxu0 0
        %2714 = vmatprep.subr.bf16.mxu0 0
        %2715 = vmatpush1.bf16.msra.mxu0 0
        %2716 = vmatprep.subr.bf16.mxu0 0
        %2717 = vmatpush1.bf16.msra.mxu0 0
        %2718 = vmatprep.subr.bf16.mxu0 0
        %2719 = vmatpush1.bf16.msra.mxu0 0
        %2720 = vmatprep.subr.bf16.mxu0 0
        %2721 = vmatpush1.bf16.msra.mxu0 0
        %2722 = vmatprep.subr.bf16.mxu0 0
        %2723 = vmatpush1.bf16.msra.mxu0 0
        %2724 = vmatprep.subr.bf16.mxu0 0
        %2725 = vmatpush1.bf16.msra.mxu0 0
        %2726 = vmatprep.subr.bf16.mxu0 0
        %2727 = vmatpush1.bf16.msra.mxu0 0
        %2728 = vmatprep.subr.bf16.mxu0 0
        %2729 = vmatpush1.bf16.msra.mxu0 0
        %2730 = vmatprep.subr.bf16.mxu0 0
        %2731 = vmatpush1.bf16.msra.mxu0 0
        %2732 = vmatprep.subr.bf16.mxu0 0
        %2733 = vmatpush1.bf16.msra.mxu0 0
        %2734 = vmatprep.subr.bf16.mxu0 0
        %2735 = vmatpush1.bf16.msra.mxu0 0
        %2736 = vmatprep.subr.bf16.mxu0 0
        %2737 = vmatpush1.bf16.msra.mxu0 0
        %2738 = vmatprep.subr.bf16.mxu0 0
        %2739 = vmatpush1.bf16.msra.mxu0 0
        %2740 = vmatprep.subr.bf16.mxu0 0
        %2741 = vmatpush1.bf16.msra.mxu0 0
        %2742 = vmatprep.mubr.bf16.mxu0 0
        %2743 = vmatmul.mubr.bf16.gmra.mrb[0].mxu0 %v2708
        %v2744 = vpop.f32.mrb[0].mxu0
        %v2745 = vadd.f32 0.0, %v2744
        %v2746 = vpop.f32.mrb[0].mxu0
        %v2747 = vpop.f32.mrb[0].mxu0
        %v2748 = vpop.f32.mrb[0].mxu0
        %2749 = vdwg.mxu0
        %v2750 = vpack.c.bf16 %v2745, %v2745
        %s2751 = scalar_lea.vmem %s7, 64
        %v2752 = vld [vmem:[%s2751] sm:$0xf]
        %v2753 = vld [vmem:[%s2751 + $0x4] sm:$0xf]
        %v2754 = vld [vmem:[%s2751 + $0x8] sm:$0xf]
        %v2755 = vld [vmem:[%s2751 + $0xc] sm:$0xf]
        %v2756 = vld [vmem:[%s2751 + $0x10] sm:$0xf]
        %v2757 = vld [vmem:[%s2751 + $0x14] sm:$0xf]
        %v2758 = vld [vmem:[%s2751 + $0x18] sm:$0xf]
        %v2759 = vld [vmem:[%s2751 + $0x1c] sm:$0xf]
        %v2768 = vunpack.c.l.b16 %v2752
        %v2769 = vunpack.c.l.b16 %v2753
        %v2770 = vunpack.c.l.b16 %v2754
        %v2771 = vunpack.c.l.b16 %v2755
        %v2772 = vunpack.c.l.b16 %v2756
        %v2773 = vunpack.c.l.b16 %v2757
        %v2774 = vunpack.c.l.b16 %v2758
        %v2775 = vunpack.c.l.b16 %v2759
        %v2776 = vpack.c.b16 %v2769, %v2768
        %v2777 = vpack.c.b16 %v2771, %v2770
        %v2778 = vpack.c.b16 %v2773, %v2772
        %v2779 = vpack.c.b16 %v2775, %v2774
        %v2785 = vsel %vm598, %v2750, 0
        %2787 = vmatprep.subr.bf16.mxu0 0
        %2788 = vmatpush1.bf16.msra.mxu0 %v2776
        %2789 = vmatprep.subr.bf16.mxu0 0
        %2790 = vmatpush1.bf16.msra.mxu0 %v2777
        %2791 = vmatprep.subr.bf16.mxu0 0
        %2792 = vmatpush1.bf16.msra.mxu0 %v2778
        %2793 = vmatprep.subr.bf16.mxu0 0
        %2794 = vmatpush1.bf16.msra.mxu0 %v2779
        %2795 = vmatprep.subr.bf16.mxu0 0
        %2796 = vmatpush1.bf16.msra.mxu0 0
        %2797 = vmatprep.subr.bf16.mxu0 0
        %2798 = vmatpush1.bf16.msra.mxu0 0
        %2799 = vmatprep.subr.bf16.mxu0 0
        %2800 = vmatpush1.bf16.msra.mxu0 0
        %2801 = vmatprep.subr.bf16.mxu0 0
        %2802 = vmatpush1.bf16.msra.mxu0 0
        %2803 = vmatprep.subr.bf16.mxu0 0
        %2804 = vmatpush1.bf16.msra.mxu0 0
        %2805 = vmatprep.subr.bf16.mxu0 0
        %2806 = vmatpush1.bf16.msra.mxu0 0
        %2807 = vmatprep.subr.bf16.mxu0 0
        %2808 = vmatpush1.bf16.msra.mxu0 0
        %2809 = vmatprep.subr.bf16.mxu0 0
        %2810 = vmatpush1.bf16.msra.mxu0 0
        %2811 = vmatprep.subr.bf16.mxu0 0
        %2812 = vmatpush1.bf16.msra.mxu0 0
        %2813 = vmatprep.subr.bf16.mxu0 0
        %2814 = vmatpush1.bf16.msra.mxu0 0
        %2815 = vmatprep.subr.bf16.mxu0 0
        %2816 = vmatpush1.bf16.msra.mxu0 0
        %2817 = vmatprep.subr.bf16.mxu0 0
        %2818 = vmatpush1.bf16.msra.mxu0 0
        %2819 = vmatprep.mubr.bf16.mxu0 0
        %2820 = vmatmul.mubr.bf16.gmra.mrb[0].mxu0 %v2785
        %v2821 = vpop.f32.mrb[0].mxu0
        %v2822 = vadd.f32 0.0, %v2821
        %v2823 = vpop.f32.mrb[0].mxu0
        %v2824 = vpop.f32.mrb[0].mxu0
        %v2825 = vpop.f32.mrb[0].mxu0
        %2826 = vdwg.mxu0
        %v2827 = vadd.f32 %v2700, %v2822
        %s2828 = scalar_lea.vmem %s6, 3
        %v2829 = vld [vmem:[%s2828] sm:$0x1]
        %v2831 = vsel %vm2456, %v2829, 0
        %2833 = vmatprep.subr.bf16.mxu0 0
        %2834 = vmatpush1.bf16.msra.mxu0 %v2465
        %2835 = vmatprep.subr.bf16.mxu0 0
        %2836 = vmatpush1.bf16.msra.mxu0 0
        %2837 = vmatprep.subr.bf16.mxu0 0
        %2838 = vmatpush1.bf16.msra.mxu0 0
        %2839 = vmatprep.subr.bf16.mxu0 0
        %2840 = vmatpush1.bf16.msra.mxu0 0
        %2841 = vmatprep.subr.bf16.mxu0 0
        %2842 = vmatpush1.bf16.msra.mxu0 0
        %2843 = vmatprep.subr.bf16.mxu0 0
        %2844 = vmatpush1.bf16.msra.mxu0 0
        %2845 = vmatprep.subr.bf16.mxu0 0
        %2846 = vmatpush1.bf16.msra.mxu0 0
        %2847 = vmatprep.subr.bf16.mxu0 0
        %2848 = vmatpush1.bf16.msra.mxu0 0
        %2849 = vmatprep.subr.bf16.mxu0 0
        %2850 = vmatpush1.bf16.msra.mxu0 0
        %2851 = vmatprep.subr.bf16.mxu0 0
        %2852 = vmatpush1.bf16.msra.mxu0 0
        %2853 = vmatprep.subr.bf16.mxu0 0
        %2854 = vmatpush1.bf16.msra.mxu0 0
        %2855 = vmatprep.subr.bf16.mxu0 0
        %2856 = vmatpush1.bf16.msra.mxu0 0
        %2857 = vmatprep.subr.bf16.mxu0 0
        %2858 = vmatpush1.bf16.msra.mxu0 0
        %2859 = vmatprep.subr.bf16.mxu0 0
        %2860 = vmatpush1.bf16.msra.mxu0 0
        %2861 = vmatprep.subr.bf16.mxu0 0
        %2862 = vmatpush1.bf16.msra.mxu0 0
        %2863 = vmatprep.subr.bf16.mxu0 0
        %2864 = vmatpush1.bf16.msra.mxu0 0
        %2865 = vmatprep.mubr.bf16.mxu0 0
        %2866 = vmatmul.mubr.bf16.gmra.mrb[0].mxu0 %v2831
        %v2867 = vpop.f32.mrb[0].mxu0
        %v2868 = vadd.f32 0.0, %v2867
        %v2869 = vpop.f32.mrb[0].mxu0
        %v2870 = vpop.f32.mrb[0].mxu0
        %v2871 = vpop.f32.mrb[0].mxu0
        %2872 = vdwg.mxu0
        %v2873 = vpack.c.bf16 %v2868, %v2868
        %s2874 = scalar_lea.vmem %s7, 96
        %v2875 = vld [vmem:[%s2874] sm:$0xf]
        %v2876 = vld [vmem:[%s2874 + $0x4] sm:$0xf]
        %v2877 = vld [vmem:[%s2874 + $0x8] sm:$0xf]
        %v2878 = vld [vmem:[%s2874 + $0xc] sm:$0xf]
        %v2879 = vld [vmem:[%s2874 + $0x10] sm:$0xf]
        %v2880 = vld [vmem:[%s2874 + $0x14] sm:$0xf]
        %v2881 = vld [vmem:[%s2874 + $0x18] sm:$0xf]
        %v2882 = vld [vmem:[%s2874 + $0x1c] sm:$0xf]
        %v2891 = vunpack.c.l.b16 %v2875
        %v2892 = vunpack.c.l.b16 %v2876
        %v2893 = vunpack.c.l.b16 %v2877
        %v2894 = vunpack.c.l.b16 %v2878
        %v2895 = vunpack.c.l.b16 %v2879
        %v2896 = vunpack.c.l.b16 %v2880
        %v2897 = vunpack.c.l.b16 %v2881
        %v2898 = vunpack.c.l.b16 %v2882
        %v2899 = vpack.c.b16 %v2892, %v2891
        %v2900 = vpack.c.b16 %v2894, %v2893
        %v2901 = vpack.c.b16 %v2896, %v2895
        %v2902 = vpack.c.b16 %v2898, %v2897
        %v2908 = vsel %vm598, %v2873, 0
        %2910 = vmatprep.subr.bf16.mxu0 0
        %2911 = vmatpush1.bf16.msra.mxu0 %v2899
        %2912 = vmatprep.subr.bf16.mxu0 0
        %2913 = vmatpush1.bf16.msra.mxu0 %v2900
        %2914 = vmatprep.subr.bf16.mxu0 0
        %2915 = vmatpush1.bf16.msra.mxu0 %v2901
        %2916 = vmatprep.subr.bf16.mxu0 0
        %2917 = vmatpush1.bf16.msra.mxu0 %v2902
        %2918 = vmatprep.subr.bf16.mxu0 0
        %2919 = vmatpush1.bf16.msra.mxu0 0
        %2920 = vmatprep.subr.bf16.mxu0 0
        %2921 = vmatpush1.bf16.msra.mxu0 0
        %2922 = vmatprep.subr.bf16.mxu0 0
        %2923 = vmatpush1.bf16.msra.mxu0 0
        %2924 = vmatprep.subr.bf16.mxu0 0
        %2925 = vmatpush1.bf16.msra.mxu0 0
        %2926 = vmatprep.subr.bf16.mxu0 0
        %2927 = vmatpush1.bf16.msra.mxu0 0
        %2928 = vmatprep.subr.bf16.mxu0 0
        %2929 = vmatpush1.bf16.msra.mxu0 0
        %2930 = vmatprep.subr.bf16.mxu0 0
        %2931 = vmatpush1.bf16.msra.mxu0 0
        %2932 = vmatprep.subr.bf16.mxu0 0
        %2933 = vmatpush1.bf16.msra.mxu0 0
        %2934 = vmatprep.subr.bf16.mxu0 0
        %2935 = vmatpush1.bf16.msra.mxu0 0
        %2936 = vmatprep.subr.bf16.mxu0 0
        %2937 = vmatpush1.bf16.msra.mxu0 0
        %2938 = vmatprep.subr.bf16.mxu0 0
        %2939 = vmatpush1.bf16.msra.mxu0 0
        %2940 = vmatprep.subr.bf16.mxu0 0
        %2941 = vmatpush1.bf16.msra.mxu0 0
        %2942 = vmatprep.mubr.bf16.mxu0 0
        %2943 = vmatmul.mubr.bf16.gmra.mrb[0].mxu0 %v2908
        %v2944 = vpop.f32.mrb[0].mxu0
        %v2945 = vadd.f32 0.0, %v2944
        %v2946 = vpop.f32.mrb[0].mxu0
        %v2947 = vpop.f32.mrb[0].mxu0
        %v2948 = vpop.f32.mrb[0].mxu0
        %2949 = vdwg.mxu0
        %v2950 = vadd.f32 %v2827, %v2945
        %s2951 = scalar_lea.vmem %s6, 4
        %v2952 = vld [vmem:[%s2951] sm:$0x1]
        %v2954 = vsel %vm2456, %v2952, 0
        %2956 = vmatprep.subr.bf16.mxu0 0
        %2957 = vmatpush1.bf16.msra.mxu0 %v2465
        %2958 = vmatprep.subr.bf16.mxu0 0
        %2959 = vmatpush1.bf16.msra.mxu0 0
        %2960 = vmatprep.subr.bf16.mxu0 0
        %2961 = vmatpush1.bf16.msra.mxu0 0
        %2962 = vmatprep.subr.bf16.mxu0 0
        %2963 = vmatpush1.bf16.msra.mxu0 0
        %2964 = vmatprep.subr.bf16.mxu0 0
        %2965 = vmatpush1.bf16.msra.mxu0 0
        %2966 = vmatprep.subr.bf16.mxu0 0
        %2967 = vmatpush1.bf16.msra.mxu0 0
        %2968 = vmatprep.subr.bf16.mxu0 0
        %2969 = vmatpush1.bf16.msra.mxu0 0
        %2970 = vmatprep.subr.bf16.mxu0 0
        %2971 = vmatpush1.bf16.msra.mxu0 0
        %2972 = vmatprep.subr.bf16.mxu0 0
        %2973 = vmatpush1.bf16.msra.mxu0 0
        %2974 = vmatprep.subr.bf16.mxu0 0
        %2975 = vmatpush1.bf16.msra.mxu0 0
        %2976 = vmatprep.subr.bf16.mxu0 0
        %2977 = vmatpush1.bf16.msra.mxu0 0
        %2978 = vmatprep.subr.bf16.mxu0 0
        %2979 = vmatpush1.bf16.msra.mxu0 0
        %2980 = vmatprep.subr.bf16.mxu0 0
        %2981 = vmatpush1.bf16.msra.mxu0 0
        %2982 = vmatprep.subr.bf16.mxu0 0
        %2983 = vmatpush1.bf16.msra.mxu0 0
        %2984 = vmatprep.subr.bf16.mxu0 0
        %2985 = vmatpush1.bf16.msra.mxu0 0
        %2986 = vmatprep.subr.bf16.mxu0 0
        %2987 = vmatpush1.bf16.msra.mxu0 0
        %2988 = vmatprep.mubr.bf16.mxu0 0
        %2989 = vmatmul.mubr.bf16.gmra.mrb[0].mxu0 %v2954
        %v2990 = vpop.f32.mrb[0].mxu0
        %v2991 = vadd.f32 0.0, %v2990
        %v2992 = vpop.f32.mrb[0].mxu0
        %v2993 = vpop.f32.mrb[0].mxu0
        %v2994 = vpop.f32.mrb[0].mxu0
        %2995 = vdwg.mxu0
        %v2996 = vpack.c.bf16 %v2991, %v2991
        %s2997 = scalar_lea.vmem %s7, 128
        %v2998 = vld [vmem:[%s2997] sm:$0xf]
        %v2999 = vld [vmem:[%s2997 + $0x4] sm:$0xf]
        %v3000 = vld [vmem:[%s2997 + $0x8] sm:$0xf]
        %v3001 = vld [vmem:[%s2997 + $0xc] sm:$0xf]
        %v3002 = vld [vmem:[%s2997 + $0x10] sm:$0xf]
        %v3003 = vld [vmem:[%s2997 + $0x14] sm:$0xf]
        %v3004 = vld [vmem:[%s2997 + $0x18] sm:$0xf]
        %v3005 = vld [vmem:[%s2997 + $0x1c] sm:$0xf]
        %v3014 = vunpack.c.l.b16 %v2998
        %v3015 = vunpack.c.l.b16 %v2999
        %v3016 = vunpack.c.l.b16 %v3000
        %v3017 = vunpack.c.l.b16 %v3001
        %v3018 = vunpack.c.l.b16 %v3002
        %v3019 = vunpack.c.l.b16 %v3003
        %v3020 = vunpack.c.l.b16 %v3004
        %v3021 = vunpack.c.l.b16 %v3005
        %v3022 = vpack.c.b16 %v3015, %v3014
        %v3023 = vpack.c.b16 %v3017, %v3016
        %v3024 = vpack.c.b16 %v3019, %v3018
        %v3025 = vpack.c.b16 %v3021, %v3020
        %v3031 = vsel %vm598, %v2996, 0
        %3033 = vmatprep.subr.bf16.mxu0 0
        %3034 = vmatpush1.bf16.msra.mxu0 %v3022
        %3035 = vmatprep.subr.bf16.mxu0 0
        %3036 = vmatpush1.bf16.msra.mxu0 %v3023
        %3037 = vmatprep.subr.bf16.mxu0 0
        %3038 = vmatpush1.bf16.msra.mxu0 %v3024
        %3039 = vmatprep.subr.bf16.mxu0 0
        %3040 = vmatpush1.bf16.msra.mxu0 %v3025
        %3041 = vmatprep.subr.bf16.mxu0 0
        %3042 = vmatpush1.bf16.msra.mxu0 0
        %3043 = vmatprep.subr.bf16.mxu0 0
        %3044 = vmatpush1.bf16.msra.mxu0 0
        %3045 = vmatprep.subr.bf16.mxu0 0
        %3046 = vmatpush1.bf16.msra.mxu0 0
        %3047 = vmatprep.subr.bf16.mxu0 0
        %3048 = vmatpush1.bf16.msra.mxu0 0
        %3049 = vmatprep.subr.bf16.mxu0 0
        %3050 = vmatpush1.bf16.msra.mxu0 0
        %3051 = vmatprep.subr.bf16.mxu0 0
        %3052 = vmatpush1.bf16.msra.mxu0 0
        %3053 = vmatprep.subr.bf16.mxu0 0
        %3054 = vmatpush1.bf16.msra.mxu0 0
        %3055 = vmatprep.subr.bf16.mxu0 0
        %3056 = vmatpush1.bf16.msra.mxu0 0
        %3057 = vmatprep.subr.bf16.mxu0 0
        %3058 = vmatpush1.bf16.msra.mxu0 0
        %3059 = vmatprep.subr.bf16.mxu0 0
        %3060 = vmatpush1.bf16.msra.mxu0 0
        %3061 = vmatprep.subr.bf16.mxu0 0
        %3062 = vmatpush1.bf16.msra.mxu0 0
        %3063 = vmatprep.subr.bf16.mxu0 0
        %3064 = vmatpush1.bf16.msra.mxu0 0
        %3065 = vmatprep.mubr.bf16.mxu0 0
        %3066 = vmatmul.mubr.bf16.gmra.mrb[0].mxu0 %v3031
        %v3067 = vpop.f32.mrb[0].mxu0
        %v3068 = vadd.f32 0.0, %v3067
        %v3069 = vpop.f32.mrb[0].mxu0
        %v3070 = vpop.f32.mrb[0].mxu0
        %v3071 = vpop.f32.mrb[0].mxu0
        %3072 = vdwg.mxu0
        %v3073 = vadd.f32 %v2950, %v3068
        %s3074 = scalar_lea.vmem %s6, 5
        %v3075 = vld [vmem:[%s3074] sm:$0x1]
        %v3077 = vsel %vm2456, %v3075, 0
        %3079 = vmatprep.subr.bf16.mxu0 0
        %3080 = vmatpush1.bf16.msra.mxu0 %v2465
        %3081 = vmatprep.subr.bf16.mxu0 0
        %3082 = vmatpush1.bf16.msra.mxu0 0
        %3083 = vmatprep.subr.bf16.mxu0 0
        %3084 = vmatpush1.bf16.msra.mxu0 0
        %3085 = vmatprep.subr.bf16.mxu0 0
        %3086 = vmatpush1.bf16.msra.mxu0 0
        %3087 = vmatprep.subr.bf16.mxu0 0
        %3088 = vmatpush1.bf16.msra.mxu0 0
        %3089 = vmatprep.subr.bf16.mxu0 0
        %3090 = vmatpush1.bf16.msra.mxu0 0
        %3091 = vmatprep.subr.bf16.mxu0 0
        %3092 = vmatpush1.bf16.msra.mxu0 0
        %3093 = vmatprep.subr.bf16.mxu0 0
        %3094 = vmatpush1.bf16.msra.mxu0 0
        %3095 = vmatprep.subr.bf16.mxu0 0
        %3096 = vmatpush1.bf16.msra.mxu0 0
        %3097 = vmatprep.subr.bf16.mxu0 0
        %3098 = vmatpush1.bf16.msra.mxu0 0
        %3099 = vmatprep.subr.bf16.mxu0 0
        %3100 = vmatpush1.bf16.msra.mxu0 0
        %3101 = vmatprep.subr.bf16.mxu0 0
        %3102 = vmatpush1.bf16.msra.mxu0 0
        %3103 = vmatprep.subr.bf16.mxu0 0
        %3104 = vmatpush1.bf16.msra.mxu0 0
        %3105 = vmatprep.subr.bf16.mxu0 0
        %3106 = vmatpush1.bf16.msra.mxu0 0
        %3107 = vmatprep.subr.bf16.mxu0 0
        %3108 = vmatpush1.bf16.msra.mxu0 0
        %3109 = vmatprep.subr.bf16.mxu0 0
        %3110 = vmatpush1.bf16.msra.mxu0 0
        %3111 = vmatprep.mubr.bf16.mxu0 0
        %3112 = vmatmul.mubr.bf16.gmra.mrb[0].mxu0 %v3077
        %v3113 = vpop.f32.mrb[0].mxu0
        %v3114 = vadd.f32 0.0, %v3113
        %v3115 = vpop.f32.mrb[0].mxu0
        %v3116 = vpop.f32.mrb[0].mxu0
        %v3117 = vpop.f32.mrb[0].mxu0
        %3118 = vdwg.mxu0
        %v3119 = vpack.c.bf16 %v3114, %v3114
        %s3120 = scalar_lea.vmem %s7, 160
        %v3121 = vld [vmem:[%s3120] sm:$0xf]
        %v3122 = vld [vmem:[%s3120 + $0x4] sm:$0xf]
        %v3123 = vld [vmem:[%s3120 + $0x8] sm:$0xf]
        %v3124 = vld [vmem:[%s3120 + $0xc] sm:$0xf]
        %v3125 = vld [vmem:[%s3120 + $0x10] sm:$0xf]
        %v3126 = vld [vmem:[%s3120 + $0x14] sm:$0xf]
        %v3127 = vld [vmem:[%s3120 + $0x18] sm:$0xf]
        %v3128 = vld [vmem:[%s3120 + $0x1c] sm:$0xf]
        %v3137 = vunpack.c.l.b16 %v3121
        %v3138 = vunpack.c.l.b16 %v3122
        %v3139 = vunpack.c.l.b16 %v3123
        %v3140 = vunpack.c.l.b16 %v3124
        %v3141 = vunpack.c.l.b16 %v3125
        %v3142 = vunpack.c.l.b16 %v3126
        %v3143 = vunpack.c.l.b16 %v3127
        %v3144 = vunpack.c.l.b16 %v3128
        %v3145 = vpack.c.b16 %v3138, %v3137
        %v3146 = vpack.c.b16 %v3140, %v3139
        %v3147 = vpack.c.b16 %v3142, %v3141
        %v3148 = vpack.c.b16 %v3144, %v3143
        %v3154 = vsel %vm598, %v3119, 0
        %3156 = vmatprep.subr.bf16.mxu0 0
        %3157 = vmatpush1.bf16.msra.mxu0 %v3145
        %3158 = vmatprep.subr.bf16.mxu0 0
        %3159 = vmatpush1.bf16.msra.mxu0 %v3146
        %3160 = vmatprep.subr.bf16.mxu0 0
        %3161 = vmatpush1.bf16.msra.mxu0 %v3147
        %3162 = vmatprep.subr.bf16.mxu0 0
        %3163 = vmatpush1.bf16.msra.mxu0 %v3148
        %3164 = vmatprep.subr.bf16.mxu0 0
        %3165 = vmatpush1.bf16.msra.mxu0 0
        %3166 = vmatprep.subr.bf16.mxu0 0
        %3167 = vmatpush1.bf16.msra.mxu0 0
        %3168 = vmatprep.subr.bf16.mxu0 0
        %3169 = vmatpush1.bf16.msra.mxu0 0
        %3170 = vmatprep.subr.bf16.mxu0 0
        %3171 = vmatpush1.bf16.msra.mxu0 0
        %3172 = vmatprep.subr.bf16.mxu0 0
        %3173 = vmatpush1.bf16.msra.mxu0 0
        %3174 = vmatprep.subr.bf16.mxu0 0
        %3175 = vmatpush1.bf16.msra.mxu0 0
        %3176 = vmatprep.subr.bf16.mxu0 0
        %3177 = vmatpush1.bf16.msra.mxu0 0
        %3178 = vmatprep.subr.bf16.mxu0 0
        %3179 = vmatpush1.bf16.msra.mxu0 0
        %3180 = vmatprep.subr.bf16.mxu0 0
        %3181 = vmatpush1.bf16.msra.mxu0 0
        %3182 = vmatprep.subr.bf16.mxu0 0
        %3183 = vmatpush1.bf16.msra.mxu0 0
        %3184 = vmatprep.subr.bf16.mxu0 0
        %3185 = vmatpush1.bf16.msra.mxu0 0
        %3186 = vmatprep.subr.bf16.mxu0 0
        %3187 = vmatpush1.bf16.msra.mxu0 0
        %3188 = vmatprep.mubr.bf16.mxu0 0
        %3189 = vmatmul.mubr.bf16.gmra.mrb[0].mxu0 %v3154
        %v3190 = vpop.f32.mrb[0].mxu0
        %v3191 = vadd.f32 0.0, %v3190
        %v3192 = vpop.f32.mrb[0].mxu0
        %v3193 = vpop.f32.mrb[0].mxu0
        %v3194 = vpop.f32.mrb[0].mxu0
        %3195 = vdwg.mxu0
        %v3196 = vadd.f32 %v3073, %v3191
        %s3197 = scalar_lea.vmem %s6, 6
        %v3198 = vld [vmem:[%s3197] sm:$0x1]
        %v3200 = vsel %vm2456, %v3198, 0
        %3202 = vmatprep.subr.bf16.mxu0 0
        %3203 = vmatpush1.bf16.msra.mxu0 %v2465
        %3204 = vmatprep.subr.bf16.mxu0 0
        %3205 = vmatpush1.bf16.msra.mxu0 0
        %3206 = vmatprep.subr.bf16.mxu0 0
        %3207 = vmatpush1.bf16.msra.mxu0 0
        %3208 = vmatprep.subr.bf16.mxu0 0
        %3209 = vmatpush1.bf16.msra.mxu0 0
        %3210 = vmatprep.subr.bf16.mxu0 0
        %3211 = vmatpush1.bf16.msra.mxu0 0
        %3212 = vmatprep.subr.bf16.mxu0 0
        %3213 = vmatpush1.bf16.msra.mxu0 0
        %3214 = vmatprep.subr.bf16.mxu0 0
        %3215 = vmatpush1.bf16.msra.mxu0 0
        %3216 = vmatprep.subr.bf16.mxu0 0
        %3217 = vmatpush1.bf16.msra.mxu0 0
        %3218 = vmatprep.subr.bf16.mxu0 0
        %3219 = vmatpush1.bf16.msra.mxu0 0
        %3220 = vmatprep.subr.bf16.mxu0 0
        %3221 = vmatpush1.bf16.msra.mxu0 0
        %3222 = vmatprep.subr.bf16.mxu0 0
        %3223 = vmatpush1.bf16.msra.mxu0 0
        %3224 = vmatprep.subr.bf16.mxu0 0
        %3225 = vmatpush1.bf16.msra.mxu0 0
        %3226 = vmatprep.subr.bf16.mxu0 0
        %3227 = vmatpush1.bf16.msra.mxu0 0
        %3228 = vmatprep.subr.bf16.mxu0 0
        %3229 = vmatpush1.bf16.msra.mxu0 0
        %3230 = vmatprep.subr.bf16.mxu0 0
        %3231 = vmatpush1.bf16.msra.mxu0 0
        %3232 = vmatprep.subr.bf16.mxu0 0
        %3233 = vmatpush1.bf16.msra.mxu0 0
        %3234 = vmatprep.mubr.bf16.mxu0 0
        %3235 = vmatmul.mubr.bf16.gmra.mrb[0].mxu0 %v3200
        %v3236 = vpop.f32.mrb[0].mxu0
        %v3237 = vadd.f32 0.0, %v3236
        %v3238 = vpop.f32.mrb[0].mxu0
        %v3239 = vpop.f32.mrb[0].mxu0
        %v3240 = vpop.f32.mrb[0].mxu0
        %3241 = vdwg.mxu0
        %v3242 = vpack.c.bf16 %v3237, %v3237
        %s3243 = scalar_lea.vmem %s7, 192
        %v3244 = vld [vmem:[%s3243] sm:$0xf]
        %v3245 = vld [vmem:[%s3243 + $0x4] sm:$0xf]
        %v3246 = vld [vmem:[%s3243 + $0x8] sm:$0xf]
        %v3247 = vld [vmem:[%s3243 + $0xc] sm:$0xf]
        %v3248 = vld [vmem:[%s3243 + $0x10] sm:$0xf]
        %v3249 = vld [vmem:[%s3243 + $0x14] sm:$0xf]
        %v3250 = vld [vmem:[%s3243 + $0x18] sm:$0xf]
        %v3251 = vld [vmem:[%s3243 + $0x1c] sm:$0xf]
        %v3260 = vunpack.c.l.b16 %v3244
        %v3261 = vunpack.c.l.b16 %v3245
        %v3262 = vunpack.c.l.b16 %v3246
        %v3263 = vunpack.c.l.b16 %v3247
        %v3264 = vunpack.c.l.b16 %v3248
        %v3265 = vunpack.c.l.b16 %v3249
        %v3266 = vunpack.c.l.b16 %v3250
        %v3267 = vunpack.c.l.b16 %v3251
        %v3268 = vpack.c.b16 %v3261, %v3260
        %v3269 = vpack.c.b16 %v3263, %v3262
        %v3270 = vpack.c.b16 %v3265, %v3264
        %v3271 = vpack.c.b16 %v3267, %v3266
        %v3277 = vsel %vm598, %v3242, 0
        %3279 = vmatprep.subr.bf16.mxu0 0
        %3280 = vmatpush1.bf16.msra.mxu0 %v3268
        %3281 = vmatprep.subr.bf16.mxu0 0
        %3282 = vmatpush1.bf16.msra.mxu0 %v3269
        %3283 = vmatprep.subr.bf16.mxu0 0
        %3284 = vmatpush1.bf16.msra.mxu0 %v3270
        %3285 = vmatprep.subr.bf16.mxu0 0
        %3286 = vmatpush1.bf16.msra.mxu0 %v3271
        %3287 = vmatprep.subr.bf16.mxu0 0
        %3288 = vmatpush1.bf16.msra.mxu0 0
        %3289 = vmatprep.subr.bf16.mxu0 0
        %3290 = vmatpush1.bf16.msra.mxu0 0
        %3291 = vmatprep.subr.bf16.mxu0 0
        %3292 = vmatpush1.bf16.msra.mxu0 0
        %3293 = vmatprep.subr.bf16.mxu0 0
        %3294 = vmatpush1.bf16.msra.mxu0 0
        %3295 = vmatprep.subr.bf16.mxu0 0
        %3296 = vmatpush1.bf16.msra.mxu0 0
        %3297 = vmatprep.subr.bf16.mxu0 0
        %3298 = vmatpush1.bf16.msra.mxu0 0
        %3299 = vmatprep.subr.bf16.mxu0 0
        %3300 = vmatpush1.bf16.msra.mxu0 0
        %3301 = vmatprep.subr.bf16.mxu0 0
        %3302 = vmatpush1.bf16.msra.mxu0 0
        %3303 = vmatprep.subr.bf16.mxu0 0
        %3304 = vmatpush1.bf16.msra.mxu0 0
        %3305 = vmatprep.subr.bf16.mxu0 0
        %3306 = vmatpush1.bf16.msra.mxu0 0
        %3307 = vmatprep.subr.bf16.mxu0 0
        %3308 = vmatpush1.bf16.msra.mxu0 0
        %3309 = vmatprep.subr.bf16.mxu0 0
        %3310 = vmatpush1.bf16.msra.mxu0 0
        %3311 = vmatprep.mubr.bf16.mxu0 0
        %3312 = vmatmul.mubr.bf16.gmra.mrb[0].mxu0 %v3277
        %v3313 = vpop.f32.mrb[0].mxu0
        %v3314 = vadd.f32 0.0, %v3313
        %v3315 = vpop.f32.mrb[0].mxu0
        %v3316 = vpop.f32.mrb[0].mxu0
        %v3317 = vpop.f32.mrb[0].mxu0
        %3318 = vdwg.mxu0
        %v3319 = vadd.f32 %v3196, %v3314
        %s3320 = scalar_lea.vmem %s6, 7
        %v3321 = vld [vmem:[%s3320] sm:$0x1]
        %v3323 = vsel %vm2456, %v3321, 0
        %3325 = vmatprep.subr.bf16.mxu0 0
        %3326 = vmatpush1.bf16.msra.mxu0 %v2465
        %3327 = vmatprep.subr.bf16.mxu0 0
        %3328 = vmatpush1.bf16.msra.mxu0 0
        %3329 = vmatprep.subr.bf16.mxu0 0
        %3330 = vmatpush1.bf16.msra.mxu0 0
        %3331 = vmatprep.subr.bf16.mxu0 0
        %3332 = vmatpush1.bf16.msra.mxu0 0
        %3333 = vmatprep.subr.bf16.mxu0 0
        %3334 = vmatpush1.bf16.msra.mxu0 0
        %3335 = vmatprep.subr.bf16.mxu0 0
        %3336 = vmatpush1.bf16.msra.mxu0 0
        %3337 = vmatprep.subr.bf16.mxu0 0
        %3338 = vmatpush1.bf16.msra.mxu0 0
        %3339 = vmatprep.subr.bf16.mxu0 0
        %3340 = vmatpush1.bf16.msra.mxu0 0
        %3341 = vmatprep.subr.bf16.mxu0 0
        %3342 = vmatpush1.bf16.msra.mxu0 0
        %3343 = vmatprep.subr.bf16.mxu0 0
        %3344 = vmatpush1.bf16.msra.mxu0 0
        %3345 = vmatprep.subr.bf16.mxu0 0
        %3346 = vmatpush1.bf16.msra.mxu0 0
        %3347 = vmatprep.subr.bf16.mxu0 0
        %3348 = vmatpush1.bf16.msra.mxu0 0
        %3349 = vmatprep.subr.bf16.mxu0 0
        %3350 = vmatpush1.bf16.msra.mxu0 0
        %3351 = vmatprep.subr.bf16.mxu0 0
        %3352 = vmatpush1.bf16.msra.mxu0 0
        %3353 = vmatprep.subr.bf16.mxu0 0
        %3354 = vmatpush1.bf16.msra.mxu0 0
        %3355 = vmatprep.subr.bf16.mxu0 0
        %3356 = vmatpush1.bf16.msra.mxu0 0
        %3357 = vmatprep.mubr.bf16.mxu0 0
        %3358 = vmatmul.mubr.bf16.gmra.mrb[0].mxu0 %v3323
        %v3359 = vpop.f32.mrb[0].mxu0
        %v3360 = vadd.f32 0.0, %v3359
        %v3361 = vpop.f32.mrb[0].mxu0
        %v3362 = vpop.f32.mrb[0].mxu0
        %v3363 = vpop.f32.mrb[0].mxu0
        %3364 = vdwg.mxu0
        %v3365 = vpack.c.bf16 %v3360, %v3360
        %s3366 = scalar_lea.vmem %s7, 224
        %v3367 = vld [vmem:[%s3366] sm:$0xf]
        %v3368 = vld [vmem:[%s3366 + $0x4] sm:$0xf]
        %v3369 = vld [vmem:[%s3366 + $0x8] sm:$0xf]
        %v3370 = vld [vmem:[%s3366 + $0xc] sm:$0xf]
        %v3371 = vld [vmem:[%s3366 + $0x10] sm:$0xf]
        %v3372 = vld [vmem:[%s3366 + $0x14] sm:$0xf]
        %v3373 = vld [vmem:[%s3366 + $0x18] sm:$0xf]
        %v3374 = vld [vmem:[%s3366 + $0x1c] sm:$0xf]
        %v3383 = vunpack.c.l.b16 %v3367
        %v3384 = vunpack.c.l.b16 %v3368
        %v3385 = vunpack.c.l.b16 %v3369
        %v3386 = vunpack.c.l.b16 %v3370
        %v3387 = vunpack.c.l.b16 %v3371
        %v3388 = vunpack.c.l.b16 %v3372
        %v3389 = vunpack.c.l.b16 %v3373
        %v3390 = vunpack.c.l.b16 %v3374
        %v3391 = vpack.c.b16 %v3384, %v3383
        %v3392 = vpack.c.b16 %v3386, %v3385
        %v3393 = vpack.c.b16 %v3388, %v3387
        %v3394 = vpack.c.b16 %v3390, %v3389
        %v3400 = vsel %vm598, %v3365, 0
        %3402 = vmatprep.subr.bf16.mxu0 0
        %3403 = vmatpush1.bf16.msra.mxu0 %v3391
        %3404 = vmatprep.subr.bf16.mxu0 0
        %3405 = vmatpush1.bf16.msra.mxu0 %v3392
        %3406 = vmatprep.subr.bf16.mxu0 0
        %3407 = vmatpush1.bf16.msra.mxu0 %v3393
        %3408 = vmatprep.subr.bf16.mxu0 0
        %3409 = vmatpush1.bf16.msra.mxu0 %v3394
        %3410 = vmatprep.subr.bf16.mxu0 0
        %3411 = vmatpush1.bf16.msra.mxu0 0
        %3412 = vmatprep.subr.bf16.mxu0 0
        %3413 = vmatpush1.bf16.msra.mxu0 0
        %3414 = vmatprep.subr.bf16.mxu0 0
        %3415 = vmatpush1.bf16.msra.mxu0 0
        %3416 = vmatprep.subr.bf16.mxu0 0
        %3417 = vmatpush1.bf16.msra.mxu0 0
        %3418 = vmatprep.subr.bf16.mxu0 0
        %3419 = vmatpush1.bf16.msra.mxu0 0
        %3420 = vmatprep.subr.bf16.mxu0 0
        %3421 = vmatpush1.bf16.msra.mxu0 0
        %3422 = vmatprep.subr.bf16.mxu0 0
        %3423 = vmatpush1.bf16.msra.mxu0 0
        %3424 = vmatprep.subr.bf16.mxu0 0
        %3425 = vmatpush1.bf16.msra.mxu0 0
        %3426 = vmatprep.subr.bf16.mxu0 0
        %3427 = vmatpush1.bf16.msra.mxu0 0
        %3428 = vmatprep.subr.bf16.mxu0 0
        %3429 = vmatpush1.bf16.msra.mxu0 0
        %3430 = vmatprep.subr.bf16.mxu0 0
        %3431 = vmatpush1.bf16.msra.mxu0 0
        %3432 = vmatprep.subr.bf16.mxu0 0
        %3433 = vmatpush1.bf16.msra.mxu0 0
        %3434 = vmatprep.mubr.bf16.mxu0 0
        %3435 = vmatmul.mubr.bf16.gmra.mrb[0].mxu0 %v3400
        %v3436 = vpop.f32.mrb[0].mxu0
        %v3437 = vadd.f32 0.0, %v3436
        %v3438 = vpop.f32.mrb[0].mxu0
        %v3439 = vpop.f32.mrb[0].mxu0
        %v3440 = vpop.f32.mrb[0].mxu0
        %3441 = vdwg.mxu0
        %v3442 = vadd.f32 %v3319, %v3437
        %s3443 = scalar_lea.vmem %s6, 8
        %v3444 = vld [vmem:[%s3443] sm:$0x1]
        %v3446 = vsel %vm2456, %v3444, 0
        %3448 = vmatprep.subr.bf16.mxu0 0
        %3449 = vmatpush1.bf16.msra.mxu0 %v2465
        %3450 = vmatprep.subr.bf16.mxu0 0
        %3451 = vmatpush1.bf16.msra.mxu0 0
        %3452 = vmatprep.subr.bf16.mxu0 0
        %3453 = vmatpush1.bf16.msra.mxu0 0
        %3454 = vmatprep.subr.bf16.mxu0 0
        %3455 = vmatpush1.bf16.msra.mxu0 0
        %3456 = vmatprep.subr.bf16.mxu0 0
        %3457 = vmatpush1.bf16.msra.mxu0 0
        %3458 = vmatprep.subr.bf16.mxu0 0
        %3459 = vmatpush1.bf16.msra.mxu0 0
        %3460 = vmatprep.subr.bf16.mxu0 0
        %3461 = vmatpush1.bf16.msra.mxu0 0
        %3462 = vmatprep.subr.bf16.mxu0 0
        %3463 = vmatpush1.bf16.msra.mxu0 0
        %3464 = vmatprep.subr.bf16.mxu0 0
        %3465 = vmatpush1.bf16.msra.mxu0 0
        %3466 = vmatprep.subr.bf16.mxu0 0
        %3467 = vmatpush1.bf16.msra.mxu0 0
        %3468 = vmatprep.subr.bf16.mxu0 0
        %3469 = vmatpush1.bf16.msra.mxu0 0
        %3470 = vmatprep.subr.bf16.mxu0 0
        %3471 = vmatpush1.bf16.msra.mxu0 0
        %3472 = vmatprep.subr.bf16.mxu0 0
        %3473 = vmatpush1.bf16.msra.mxu0 0
        %3474 = vmatprep.subr.bf16.mxu0 0
        %3475 = vmatpush1.bf16.msra.mxu0 0
        %3476 = vmatprep.subr.bf16.mxu0 0
        %3477 = vmatpush1.bf16.msra.mxu0 0
        %3478 = vmatprep.subr.bf16.mxu0 0
        %3479 = vmatpush1.bf16.msra.mxu0 0
        %3480 = vmatprep.mubr.bf16.mxu0 0
        %3481 = vmatmul.mubr.bf16.gmra.mrb[0].mxu0 %v3446
        %v3482 = vpop.f32.mrb[0].mxu0
        %v3483 = vadd.f32 0.0, %v3482
        %v3484 = vpop.f32.mrb[0].mxu0
        %v3485 = vpop.f32.mrb[0].mxu0
        %v3486 = vpop.f32.mrb[0].mxu0
        %3487 = vdwg.mxu0
        %v3488 = vpack.c.bf16 %v3483, %v3483
        %s3489 = scalar_lea.vmem %s7, 256
        %v3490 = vld [vmem:[%s3489] sm:$0xf]
        %v3491 = vld [vmem:[%s3489 + $0x4] sm:$0xf]
        %v3492 = vld [vmem:[%s3489 + $0x8] sm:$0xf]
        %v3493 = vld [vmem:[%s3489 + $0xc] sm:$0xf]
        %v3494 = vld [vmem:[%s3489 + $0x10] sm:$0xf]
        %v3495 = vld [vmem:[%s3489 + $0x14] sm:$0xf]
        %v3496 = vld [vmem:[%s3489 + $0x18] sm:$0xf]
        %v3497 = vld [vmem:[%s3489 + $0x1c] sm:$0xf]
        %v3506 = vunpack.c.l.b16 %v3490
        %v3507 = vunpack.c.l.b16 %v3491
        %v3508 = vunpack.c.l.b16 %v3492
        %v3509 = vunpack.c.l.b16 %v3493
        %v3510 = vunpack.c.l.b16 %v3494
        %v3511 = vunpack.c.l.b16 %v3495
        %v3512 = vunpack.c.l.b16 %v3496
        %v3513 = vunpack.c.l.b16 %v3497
        %v3514 = vpack.c.b16 %v3507, %v3506
        %v3515 = vpack.c.b16 %v3509, %v3508
        %v3516 = vpack.c.b16 %v3511, %v3510
        %v3517 = vpack.c.b16 %v3513, %v3512
        %v3523 = vsel %vm598, %v3488, 0
        %3525 = vmatprep.subr.bf16.mxu0 0
        %3526 = vmatpush1.bf16.msra.mxu0 %v3514
        %3527 = vmatprep.subr.bf16.mxu0 0
        %3528 = vmatpush1.bf16.msra.mxu0 %v3515
        %3529 = vmatprep.subr.bf16.mxu0 0
        %3530 = vmatpush1.bf16.msra.mxu0 %v3516
        %3531 = vmatprep.subr.bf16.mxu0 0
        %3532 = vmatpush1.bf16.msra.mxu0 %v3517
        %3533 = vmatprep.subr.bf16.mxu0 0
        %3534 = vmatpush1.bf16.msra.mxu0 0
        %3535 = vmatprep.subr.bf16.mxu0 0
        %3536 = vmatpush1.bf16.msra.mxu0 0
        %3537 = vmatprep.subr.bf16.mxu0 0
        %3538 = vmatpush1.bf16.msra.mxu0 0
        %3539 = vmatprep.subr.bf16.mxu0 0
        %3540 = vmatpush1.bf16.msra.mxu0 0
        %3541 = vmatprep.subr.bf16.mxu0 0
        %3542 = vmatpush1.bf16.msra.mxu0 0
        %3543 = vmatprep.subr.bf16.mxu0 0
        %3544 = vmatpush1.bf16.msra.mxu0 0
        %3545 = vmatprep.subr.bf16.mxu0 0
        %3546 = vmatpush1.bf16.msra.mxu0 0
        %3547 = vmatprep.subr.bf16.mxu0 0
        %3548 = vmatpush1.bf16.msra.mxu0 0
        %3549 = vmatprep.subr.bf16.mxu0 0
        %3550 = vmatpush1.bf16.msra.mxu0 0
        %3551 = vmatprep.subr.bf16.mxu0 0
        %3552 = vmatpush1.bf16.msra.mxu0 0
        %3553 = vmatprep.subr.bf16.mxu0 0
        %3554 = vmatpush1.bf16.msra.mxu0 0
        %3555 = vmatprep.subr.bf16.mxu0 0
        %3556 = vmatpush1.bf16.msra.mxu0 0
        %3557 = vmatprep.mubr.bf16.mxu0 0
        %3558 = vmatmul.mubr.bf16.gmra.mrb[0].mxu0 %v3523
        %v3559 = vpop.f32.mrb[0].mxu0
        %v3560 = vadd.f32 0.0, %v3559
        %v3561 = vpop.f32.mrb[0].mxu0
        %v3562 = vpop.f32.mrb[0].mxu0
        %v3563 = vpop.f32.mrb[0].mxu0
        %3564 = vdwg.mxu0
        %v3565 = vadd.f32 %v3442, %v3560
        %v3566 = vld [vmem:[%s8] sm:$0x1]
        %v3567 = vadd.f32 %v3565, %v3566
        %v3568 = vmax.f32 %v3567, 0.0
        %vm3569 = vcmask 516096
        %3570 = vst.msk [vmem:[%s324] sm:$0x1] %vm3569, %v3568
        %s3571 = sand.u32 %s225, 1
        %s3572 = scalar_lea.sflag [#allocation3], %s3571
        %s3573 = sand.u32 %s225, 1
        %s3574 = scalar_lea.vmem [#allocation2], %s3573
        // Predicated region
        $region57: #{dqn_forward.1} parent=55 // pred_check
          %p3575 = pneg %p235
        $region58: #{dqn_forward.1} parent=55 // pred_check_branch
          %3577 = sbr.rel (%p3575) target = $region60
        $region59: #{dqn_forward.1} parent=55 // pred_region
          %s3579 = ssub.s32 16, 16
          %3580 = vsyncadd %s3572, %s3579
          %s3581 = smul.addr %s23, 16
          %s3582 = scalar_lea.hbm %s9, %s3581
          %s3584 = sshll.u32 %s3574, 4
          %s3585 = int_to_ptr.vmem [resolvable:$true] %s3584
          %3587 = dma.vmem_to_hbm [thread:$0]  %s3585, 16, %s3582, %s3572
        $region60: #{dqn_forward.1} parent=55 // pred_fallthru
          _
      $region56: #{dqn_forward.1} parent=5 // pred_fallthru
        _
      %p3588 = scmp.le.s32.totalorder 2, %s18
      // Predicated region
      $region61: #{dqn_forward.1} parent=5 // pred_check
        %p3589 = pneg %p3588
      $region62: #{dqn_forward.1} parent=5 // pred_check_branch
        %3591 = sbr.rel (%p3589) target = $region64
      $region63: #{dqn_forward.1} parent=5 // pred_region
        %s3592 = ssub.s32 %s18, 2
        // Predicated region
        $region65: #{dqn_forward.1} parent=63 // pred_check
          %p3593 = pneg %p241
        $region66: #{dqn_forward.1} parent=63 // pred_check_branch
          %3595 = sbr.rel (%p3593) target = $region68
        $region67: #{dqn_forward.1} parent=63 // pred_region
          %s3596 = sand.u32 %s226, 1
          %s3597 = scalar_lea.sflag [#allocation3], %s3596
          %s3598 = sand.u32 %s226, 1
          %s3599 = scalar_lea.vmem [#allocation2], %s3598
          %3600 = dma.done %s3597, 16
        $region68: #{dqn_forward.1} parent=63 // pred_fallthru
          _
      $region64: #{dqn_forward.1} parent=5 // pred_fallthru
        _
    $region6: #{dqn_forward.1} parent=1 // loop_footer
      %s22 = sadd.s32 1, %s18
    $region7: #{dqn_forward.1} parent=1 // loop_footer_branch
      %17 = sbr.rel target = $region3
    $region8: #{dqn_forward.1} parent=1 // loop_exit
      _
    %3601 = vsyncpa [#allocation3], 1
    %s3602 = scalar_lea.sflag [#allocation3], 1
    %3603 = vsyncpa %s3602, 1

</llo_original>
